<compile_context>
chip_gen: v5e
topology: v5e:2x2
jax: 0.10.0
libtpu: 0.0.40
codegen_flags: <defaults>
</compile_context>

<pallas_src>
import jax
import jax.numpy as jnp
from jax.experimental import pallas as pl
from jax.experimental.pallas import tpu as pltpu


# ----------------------------- fused Pallas kernel -----------------------------

def _maml_fused_kernel(x_ref, w1_ref, b1_ref, w2_ref, b2_ref, sel_ref, wl_ref, bl_ref,
                       o_ref, h1p_ref, p1_ref, p2_ref):
    # x_ref  : (1, H+2, Cin, W+2)  zero-padded input, spatial-in-lane layout (W+2 in lanes)
    # w1_ref : (C, 9*Cin)          conv1 weight, taps folded into K: [(dy*3+dx)*Cin + cin]
    # b1_ref : (C, 1)
    # w2_ref : (C, 9*C)            conv2 weight, same folding
    # b2_ref : (C, 1)
    # sel_ref: (3, W+2, Wp)        0/1 column-subsample matrices in PADDED column coords
    # wl_ref : (O, Hp*C, Wp)       l1.weight; wl[o, py*C+c, px] == l1.weight[o, c*Hp*Wp+py*Wp+px]
    #                              (minor dim is Wp, not O -> no 10->128 lane-padding blowup)
    # bl_ref : (O, 1)
    # o_ref  : (1, O, 1)           softmax output (column vector) for this batch element
    # h1p_ref: (H+2, C, W+2)       VMEM scratch: zero-row-padded conv1 activation (conv2 input)
    # p1_ref : (H, 9*Cin, W+2)     VMEM scratch: conv1 im2col patches (taps folded into K)
    # p2_ref : (H, 9*C,  W+2)      VMEM scratch: conv2 im2col patches
    O, R, Wp = wl_ref.shape
    C = w1_ref.shape[0]
    Hp = R // C
    H = x_ref.shape[1] - 2
    Wf = x_ref.shape[3]                      # W + 2 (padded width, lane dim)
    f32 = jnp.float32

    def conv3x3_silu(src, p_ref, w_ref, b_ref):
        # src: (H+2, Ci, Wf) zero-padded activation (valid rows 1..H, cols 1..W).
        # Builds im2col patches with taps folded into the contraction dim, then does ONE
        # row-batched MXU contraction with K = 9*Ci (review item: fold taps into K).
        Ci = src.shape[1]
        for dx in range(3):
            sh = (1 - dx) % Wf
            # column shift on the XLU (free slot) instead of a lane-offset slice; reused 3x (dy).
            shifted = pltpu.roll(src, sh, axis=2) if sh else src
            for dy in range(3):
                k = dy * 3 + dx
                p_ref[:, k * Ci:(k + 1) * Ci, :] = shifted[dy:dy + H]
        # hoisted broadcast of the small weight (done once per conv, not per tap)
        wb = jnp.broadcast_to(w_ref[...][None], (H,) + w_ref.shape)          # (H, C, 9*Ci)
        acc = jax.lax.dot_general(wb, p_ref[...], (((2,), (1,)), ((0,), (0,))),
                                  preferred_element_type=f32)                # (H, C, Wf)
        acc = acc + b_ref[...]                   # (C, 1) broadcasts over rows (H) and lanes (Wf)
        return acc * jax.nn.sigmoid(acc)         # SiLU in f32

    # ---- conv1 + SiLU ---------------------------------------------------------------------------
    h1 = conv3x3_silu(x_ref[0], p1_ref, w1_ref, b1_ref)                      # (H, C, Wf)

    # zero the two border lane columns (they become conv2's zero padding); full-width aligned store
    col = jax.lax.broadcasted_iota(jnp.int32, (H, C, Wf), 2)
    h1 = jnp.where((col >= 1) & (col <= Wf - 2), h1, 0.0)

    # only the two border ROWS are written with zeros; interior rows are stored full-width, aligned
    h1p_ref[0:1] = jnp.zeros((1, C, Wf), f32)
    h1p_ref[H + 1:H + 2] = jnp.zeros((1, C, Wf), f32)
    h1p_ref[1:H + 1] = h1

    # ---- conv2 + SiLU ---------------------------------------------------------------------------
    h2 = conv3x3_silu(h1p_ref[...], p2_ref, w2_ref, b2_ref)                  # (H, C, Wf)

    # ---- 3x3 / stride-3 max-pool (hoisted: one row-max, then 3 merged selection matmuls) ---------
    # leading-dim -> sublane merge; free when C is a multiple of 8 (true at this config).
    r5 = h2[:3 * Hp].reshape(Hp, 3 * C, Wf)
    rowmax = jnp.maximum(jnp.maximum(r5[:, 0:C, :], r5[:, C:2 * C, :]), r5[:, 2 * C:3 * C, :])
    r2 = rowmax.reshape(Hp * C, Wf)                                          # (R, Wf)
    c0 = jnp.dot(r2, sel_ref[0], preferred_element_type=f32)                 # (R, Wp)
    c1 = jnp.dot(r2, sel_ref[1], preferred_element_type=f32)
    c2 = jnp.dot(r2, sel_ref[2], preferred_element_type=f32)
    pooled = jnp.maximum(jnp.maximum(c0, c1), c2)                            # (R, Wp)

    # ---- flatten + linear: one broadcast-multiply + minor-axis reductions (no M=1 matmuls) -------
    prod = pooled[None, :, :] * wl_ref[...]                                  # (O, R, Wp)
    s = jnp.sum(prod, axis=2)                                                # (O, R)
    logits = jnp.sum(s, axis=1, keepdims=True) + bl_ref[...]                 # (O, 1)

    # ---- softmax over classes (dim=1 of the (N, O) output) ---------------------------------------
    m = jnp.max(logits, axis=0, keepdims=True)
    e = jnp.exp(logits - m)
    o_ref[0] = (e / jnp.sum(e, axis=0, keepdims=True)).astype(o_ref.dtype)


# ----------------------------- wrappers -----------------------------

def prepare_params(params, image_hw):
    """One-time re-layout of PyTorch-layout parameters into the kernel's layouts (outside jit)."""
    H, W = image_hw
    Hp, Wp = H // 3, W // 3
    C, Cin = params["conv1.weight"].shape[:2]
    O = params["l1.weight"].shape[0]
    assert params["l1.weight"].shape[1] == C * Hp * Wp, "l1.in_features must equal C*(H//3)*(W//3)"
    f32 = jnp.float32
    # conv weights (C_out, C_in, 3, 3) -> (C_out, 9*C_in), k = (dy*3 + dx)*C_in + cin
    w1 = jnp.transpose(params["conv1.weight"], (0, 2, 3, 1)).reshape(C, 9 * Cin).astype(f32)
    w2 = jnp.transpose(params["conv2.weight"], (0, 2, 3, 1)).reshape(C, 9 * C).astype(f32)
    b1 = params["conv1.bias"].reshape(C, 1).astype(f32)
    b2 = params["conv2.bias"].reshape(C, 1).astype(f32)
    # l1.weight (O, C*Hp*Wp) -> (O, Hp*C, Wp): minor (lane) dim is Wp, NOT O (avoids 10->128 pad)
    wl = jnp.transpose(params["l1.weight"].reshape(O, C, Hp, Wp),
                       (0, 2, 1, 3)).reshape(O, Hp * C, Wp).astype(f32)
    bl = params["l1.bias"].reshape(O, 1).astype(f32)
    # column subsample matrices in PADDED column coords: sel[j, x, px] = (x == 3*px + 1 + j)
    sel = (jnp.arange(W + 2)[None, :, None]
           == 3 * jnp.arange(Wp)[None, None, :] + 1 + jnp.arange(3)[:, None, None]).astype(f32)
    return {"w1": w1, "b1": b1, "w2": w2, "b2": b2, "sel": sel, "wl": wl, "bl": bl}


def maml_forward(x_nchw, prep):
    """Equivalent of MAML.forward(x); x_nchw is (N, Cin, H, W) in the PyTorch layout."""
    N, Cin, H, W = x_nchw.shape
    C = prep["w1"].shape[0]
    O, R, Wp = prep["wl"].shape
    Wf = W + 2
    # zero-pad + move to spatial-in-lane layout (N, H+2, Cin, W+2); the only host-side data prep
    # (~1.36x pad, no 9x im2col materialisation in HBM).
    xp = jnp.pad(x_nchw, ((0, 0), (0, 0), (1, 1), (1, 1)))
    xp = jnp.transpose(xp, (0, 2, 1, 3)).astype(jnp.float32)

    # constant weights: index_map never changes -> single-buffer them (halves weight VMEM).
    def weight_spec(shape):
        return pl.BlockSpec(shape, lambda n: (0,) * len(shape), pipeline_mode=pl.Buffered(1))

    out = pl.pallas_call(
        _maml_fused_kernel,
        out_shape=jax.ShapeDtypeStruct((N, O, 1), jnp.float32),
        grid=(N,),
        in_specs=[
            pl.BlockSpec((1, H + 2, Cin, Wf), lambda n: (n, 0, 0, 0)),
            weight_spec((C, 9 * Cin)),
            weight_spec((C, 1)),
            weight_spec((C, 9 * C)),
            weight_spec((C, 1)),
            weight_spec((3, Wf, Wp)),
            weight_spec((O, R, Wp)),
            weight_spec((O, 1)),
        ],
        out_specs=pl.BlockSpec((1, O, 1), lambda n: (n, 0, 0)),
        scratch_shapes=[
            pltpu.VMEM((H + 2, C, Wf), jnp.float32),      # padded conv1 activation (conv2 input)
            pltpu.VMEM((H, 9 * Cin, Wf), jnp.float32),    # conv1 im2col patches (taps folded in K)
            pltpu.VMEM((H, 9 * C, Wf), jnp.float32),      # conv2 im2col patches
        ],
        compiler_params=pltpu.CompilerParams(
            dimension_semantics=("parallel",),
            # explicit VMEM budget with headroom; re-derive for the real 222x222 config per chip
            # generation (v5e/v6e/v7x). At this size total use is a few hundred KB.
            vmem_limit_bytes=48 * 1024 * 1024),
    )(xp, prep["w1"], prep["b1"], prep["w2"], prep["b2"], prep["sel"], prep["wl"], prep["bl"])
    return out.reshape(N, O)

# TODO(synk): `inner_update` (MAML inner loop with torch.autograd.grad / DataLoader) is training
#             logic, not part of the forward pass, and is not implemented here.
# TODO(synk): for N==1 on v7x, add a second "parallel" grid axis over H row-blocks (with a 2-row
#             halo) so the second TensorCore gets work; bf16 activation storage is a further
#             v6e/v7x HBM-traffic optimisation left out to keep numerics comparable to f32.


# ----------------------------- pure-JAX reference (test only) -----------------------------

def maml_reference(x, params):
    def conv(h, w, b):
        y = jax.lax.conv_general_dilated(
            h, w, window_strides=(1, 1), padding=((1, 1), (1, 1)),
            dimension_numbers=("NCHW", "OIHW", "NCHW"),
            precision=jax.lax.Precision.HIGHEST)
        return y + b[None, :, None, None]
    h = jax.nn.silu(conv(x, params["conv1.weight"], params["conv1.bias"]))
    h = jax.nn.silu(conv(h, params["conv2.weight"], params["conv2.bias"]))
    h = jax.lax.reduce_window(h, -jnp.inf, jax.lax.max,
                              window_dimensions=(1, 1, 3, 3),
                              window_strides=(1, 1, 3, 3), padding="VALID")
    h = h.reshape(h.shape[0], -1)
    logits = jnp.dot(h, params["l1.weight"].T, precision=jax.lax.Precision.HIGHEST) + params["l1.bias"]
    return jax.nn.softmax(logits, axis=1)


# ----------------------------- deterministic parameter init -----------------------------

def init_params(key, cin, chid, cout, feat):
    ks = jax.random.split(key, 6)

    def u(k, shape, fan_in):
        bound = 1.0 / jnp.sqrt(jnp.float32(fan_in))
        return jax.random.uniform(k, shape, jnp.float32, -bound, bound)

    return {
        "conv1.weight": u(ks[0], (chid, cin, 3, 3), cin * 9),
        "conv1.bias":   u(ks[1], (chid,), cin * 9),
        "conv2.weight": u(ks[2], (chid, chid, 3, 3), chid * 9),
        "conv2.bias":   u(ks[3], (chid,), chid * 9),
        "l1.weight":    u(ks[4], (cout, feat), feat),
        "l1.bias":      u(ks[5], (cout,), feat),
    }


if __name__ == "__main__":
    # Scaled-down but shape-consistent configuration (the original hard-codes in_features=32856,
    # i.e. 6 hidden channels and 222x222 inputs): Linear in_features = Chid * (H//3) * (W//3).
    N, Cin, Chid, O = 2, 4, 8, 10
    H = W = 12
    feat = Chid * (H // 3) * (W // 3)    # 128

    key = jax.random.PRNGKey(0)
    kx, kp = jax.random.split(key)
    x = jax.random.normal(kx, (N, Cin, H, W), jnp.float32)
    params = init_params(kp, Cin, Chid, O, feat)

    prep = prepare_params(params, (H, W))          # one-time weight re-layout (outside jit)
    fwd = jax.jit(maml_forward)
    out = jax.block_until_ready(fwd(x, prep))
    ref = jax.block_until_ready(maml_reference(x, params))

    assert out.shape == (N, O)
    assert bool(jnp.all(jnp.isfinite(out)))
    assert bool(jnp.allclose(jnp.sum(out, axis=1), 1.0, atol=1e-5))      # softmax rows sum to 1
    assert bool(jnp.allclose(out, ref, atol=2e-3, rtol=0.0)), float(jnp.max(jnp.abs(out - ref)))
    print("KERNEL_OK")
</pallas_src>

<mosaic_0001>
module attributes {stable_mosaic.version = 11 : i64} {
  func.func @_maml_fused_kernel(%arg0: i32, %arg1: memref<1x14x4x14xf32, #tpu.memory_space<vmem>>, %arg2: memref<8x36xf32, #tpu.memory_space<vmem>>, %arg3: memref<8x1xf32, #tpu.memory_space<vmem>>, %arg4: memref<8x72xf32, #tpu.memory_space<vmem>>, %arg5: memref<8x1xf32, #tpu.memory_space<vmem>>, %arg6: memref<3x14x4xf32, #tpu.memory_space<vmem>>, %arg7: memref<10x32x4xf32, #tpu.memory_space<vmem>>, %arg8: memref<10x1xf32, #tpu.memory_space<vmem>>, %arg9: memref<1x10x1xf32, #tpu.memory_space<vmem>>, %arg10: memref<14x8x14xf32, #tpu.memory_space<vmem>>, %arg11: memref<12x36x14xf32, #tpu.memory_space<vmem>>, %arg12: memref<12x72x14xf32, #tpu.memory_space<vmem>>) attributes {dimension_semantics = [#tpu.dimension_semantics<parallel>], iteration_bounds = array<i64: 2>, scalar_prefetch = 0 : i64, scratch_operands = 3 : i64, tpu.core_type = #tpu.core_type<tc>, window_params = [{transform_indices = @transform_0, window_bounds = array<i64: 1, 14, 4, 14>}, {pipeline_mode = #tpu.pipeline_mode<synchronous>, transform_indices = @transform_1, window_bounds = array<i64: 8, 36>}, {pipeline_mode = #tpu.pipeline_mode<synchronous>, transform_indices = @transform_2, window_bounds = array<i64: 8, 1>}, {pipeline_mode = #tpu.pipeline_mode<synchronous>, transform_indices = @transform_3, window_bounds = array<i64: 8, 72>}, {pipeline_mode = #tpu.pipeline_mode<synchronous>, transform_indices = @transform_4, window_bounds = array<i64: 8, 1>}, {pipeline_mode = #tpu.pipeline_mode<synchronous>, transform_indices = @transform_5, window_bounds = array<i64: 3, 14, 4>}, {pipeline_mode = #tpu.pipeline_mode<synchronous>, transform_indices = @transform_6, window_bounds = array<i64: 10, 32, 4>}, {pipeline_mode = #tpu.pipeline_mode<synchronous>, transform_indices = @transform_7, window_bounds = array<i64: 10, 1>}, {transform_indices = @transform_8, window_bounds = array<i64: 1, 10, 1>}]} {
    %c0 = arith.constant 0 : index
    %c0_0 = arith.constant 0 : index
    %c0_1 = arith.constant 0 : index
    %c0_2 = arith.constant 0 : index
    %0 = vector.load %arg1[%c0, %c0_0, %c0_1, %c0_2] : memref<1x14x4x14xf32, #tpu.memory_space<vmem>>, vector<1x14x4x14xf32>
    %1 = vector.shape_cast %0 : vector<1x14x4x14xf32> to vector<14x4x14xf32>
    %c1_i32 = arith.constant 1 : i32
    %2 = tpu.dynamic_rotate %1 by %c1_i32 dim 2 : vector<14x4x14xf32>, i32 -> vector<14x4x14xf32>
    %3 = vector.extract_strided_slice %2 {offsets = [0, 0, 0], sizes = [12, 4, 14], strides = [1, 1, 1]} : vector<14x4x14xf32> to vector<12x4x14xf32>
    %c0_3 = arith.constant 0 : index
    %c0_4 = arith.constant 0 : index
    %c0_5 = arith.constant 0 : index
    %4 = vector.load %arg11[%c0_3, %c0_4, %c0_5] : memref<12x36x14xf32, #tpu.memory_space<vmem>>, vector<12x4x14xf32>
    tpu.vector_store %arg11[%c0_3, %c0_4, %c0_5], %3 {strides = array<i32>} : memref<12x36x14xf32, #tpu.memory_space<vmem>>, vector<12x4x14xf32>,
    %5 = vector.extract_strided_slice %2 {offsets = [1, 0, 0], sizes = [12, 4, 14], strides = [1, 1, 1]} : vector<14x4x14xf32> to vector<12x4x14xf32>
    %c0_6 = arith.constant 0 : index
    %c12 = arith.constant 12 : index
    %c0_7 = arith.constant 0 : index
    %6 = vector.load %arg11[%c0_6, %c12, %c0_7] : memref<12x36x14xf32, #tpu.memory_space<vmem>>, vector<12x4x14xf32>
    tpu.vector_store %arg11[%c0_6, %c12, %c0_7], %5 {strides = array<i32>} : memref<12x36x14xf32, #tpu.memory_space<vmem>>, vector<12x4x14xf32>,
    %7 = vector.extract_strided_slice %2 {offsets = [2, 0, 0], sizes = [12, 4, 14], strides = [1, 1, 1]} : vector<14x4x14xf32> to vector<12x4x14xf32>
    %c0_8 = arith.constant 0 : index
    %c24 = arith.constant 24 : index
    %c0_9 = arith.constant 0 : index
    %8 = vector.load %arg11[%c0_8, %c24, %c0_9] : memref<12x36x14xf32, #tpu.memory_space<vmem>>, vector<12x4x14xf32>
    tpu.vector_store %arg11[%c0_8, %c24, %c0_9], %7 {strides = array<i32>} : memref<12x36x14xf32, #tpu.memory_space<vmem>>, vector<12x4x14xf32>,
    %9 = vector.extract_strided_slice %1 {offsets = [0, 0, 0], sizes = [12, 4, 14], strides = [1, 1, 1]} : vector<14x4x14xf32> to vector<12x4x14xf32>
    %c0_10 = arith.constant 0 : index
    %c4 = arith.constant 4 : index
    %c0_11 = arith.constant 0 : index
    %10 = vector.load %arg11[%c0_10, %c4, %c0_11] : memref<12x36x14xf32, #tpu.memory_space<vmem>>, vector<12x4x14xf32>
    tpu.vector_store %arg11[%c0_10, %c4, %c0_11], %9 {strides = array<i32>} : memref<12x36x14xf32, #tpu.memory_space<vmem>>, vector<12x4x14xf32>,
    %11 = vector.extract_strided_slice %1 {offsets = [1, 0, 0], sizes = [12, 4, 14], strides = [1, 1, 1]} : vector<14x4x14xf32> to vector<12x4x14xf32>
    %c0_12 = arith.constant 0 : index
    %c16 = arith.constant 16 : index
    %c0_13 = arith.constant 0 : index
    %12 = vector.load %arg11[%c0_12, %c16, %c0_13] : memref<12x36x14xf32, #tpu.memory_space<vmem>>, vector<12x4x14xf32>
    tpu.vector_store %arg11[%c0_12, %c16, %c0_13], %11 {strides = array<i32>} : memref<12x36x14xf32, #tpu.memory_space<vmem>>, vector<12x4x14xf32>,
    %13 = vector.extract_strided_slice %1 {offsets = [2, 0, 0], sizes = [12, 4, 14], strides = [1, 1, 1]} : vector<14x4x14xf32> to vector<12x4x14xf32>
    %c0_14 = arith.constant 0 : index
    %c28 = arith.constant 28 : index
    %c0_15 = arith.constant 0 : index
    %14 = vector.load %arg11[%c0_14, %c28, %c0_15] : memref<12x36x14xf32, #tpu.memory_space<vmem>>, vector<12x4x14xf32>
    tpu.vector_store %arg11[%c0_14, %c28, %c0_15], %13 {strides = array<i32>} : memref<12x36x14xf32, #tpu.memory_space<vmem>>, vector<12x4x14xf32>,
    %c13_i32 = arith.constant 13 : i32
    %15 = tpu.dynamic_rotate %1 by %c13_i32 dim 2 : vector<14x4x14xf32>, i32 -> vector<14x4x14xf32>
    %16 = vector.extract_strided_slice %15 {offsets = [0, 0, 0], sizes = [12, 4, 14], strides = [1, 1, 1]} : vector<14x4x14xf32> to vector<12x4x14xf32>
    %c0_16 = arith.constant 0 : index
    %c8 = arith.constant 8 : index
    %c0_17 = arith.constant 0 : index
    %17 = vector.load %arg11[%c0_16, %c8, %c0_17] : memref<12x36x14xf32, #tpu.memory_space<vmem>>, vector<12x4x14xf32>
    tpu.vector_store %arg11[%c0_16, %c8, %c0_17], %16 {strides = array<i32>} : memref<12x36x14xf32, #tpu.memory_space<vmem>>, vector<12x4x14xf32>,
    %18 = vector.extract_strided_slice %15 {offsets = [1, 0, 0], sizes = [12, 4, 14], strides = [1, 1, 1]} : vector<14x4x14xf32> to vector<12x4x14xf32>
    %c0_18 = arith.constant 0 : index
    %c20 = arith.constant 20 : index
    %c0_19 = arith.constant 0 : index
    %19 = vector.load %arg11[%c0_18, %c20, %c0_19] : memref<12x36x14xf32, #tpu.memory_space<vmem>>, vector<12x4x14xf32>
    tpu.vector_store %arg11[%c0_18, %c20, %c0_19], %18 {strides = array<i32>} : memref<12x36x14xf32, #tpu.memory_space<vmem>>, vector<12x4x14xf32>,
    %20 = vector.extract_strided_slice %15 {offsets = [2, 0, 0], sizes = [12, 4, 14], strides = [1, 1, 1]} : vector<14x4x14xf32> to vector<12x4x14xf32>
    %c0_20 = arith.constant 0 : index
    %c32 = arith.constant 32 : index
    %c0_21 = arith.constant 0 : index
    %21 = vector.load %arg11[%c0_20, %c32, %c0_21] : memref<12x36x14xf32, #tpu.memory_space<vmem>>, vector<12x4x14xf32>
    tpu.vector_store %arg11[%c0_20, %c32, %c0_21], %20 {strides = array<i32>} : memref<12x36x14xf32, #tpu.memory_space<vmem>>, vector<12x4x14xf32>,
    %c0_22 = arith.constant 0 : index
    %c0_23 = arith.constant 0 : index
    %22 = vector.load %arg2[%c0_22, %c0_23] : memref<8x36xf32, #tpu.memory_space<vmem>>, vector<8x36xf32>
    %23 = vector.shape_cast %22 : vector<8x36xf32> to vector<1x8x36xf32>
    %24 = vector.shape_cast %23 : vector<1x8x36xf32> to vector<1x8x36xf32>
    %25 = vector.broadcast %24 : vector<1x8x36xf32> to vector<12x8x36xf32>
    %c0_24 = arith.constant 0 : index
    %c0_25 = arith.constant 0 : index
    %c0_26 = arith.constant 0 : index
    %26 = vector.load %arg11[%c0_24, %c0_25, %c0_26] : memref<12x36x14xf32, #tpu.memory_space<vmem>>, vector<12x36x14xf32>
    %cst = arith.constant dense<0.000000e+00> : vector<12x8x14xf32>
    %27 = tpu.matmul %25, %26, %cst {dimension_numbers = #tpu.dot_dimension_numbers<[2], [1], [1], [2], [0, 0, 0, 1, 1, 2], [0], [0]>} : vector<12x8x36xf32>, vector<12x36x14xf32>, vector<12x8x14xf32> -> vector<12x8x14xf32>
    %c0_27 = arith.constant 0 : index
    %c0_28 = arith.constant 0 : index
    %28 = vector.load %arg3[%c0_27, %c0_28] : memref<8x1xf32, #tpu.memory_space<vmem>>, vector<8x1xf32>
    %29 = vector.shape_cast %28 : vector<8x1xf32> to vector<1x8x1xf32>
    %30 = vector.broadcast %29 : vector<1x8x1xf32> to vector<12x8x14xf32>
    %31 = arith.addf %27, %30 : vector<12x8x14xf32>
    %32 = arith.negf %31 : vector<12x8x14xf32>
    %33 = math.exp %32 : vector<12x8x14xf32>
    %cst_29 = arith.constant 1.000000e+00 : f32
    %34 = vector.broadcast %cst_29 : f32 to vector<12x8x14xf32>
    %35 = arith.addf %34, %33 : vector<12x8x14xf32>
    %36 = arith.divf %34, %35 : vector<12x8x14xf32>
    %37 = arith.mulf %31, %36 : vector<12x8x14xf32>
    %38 = tpu.iota {dimensions = array<i32: 2>} : vector<12x8x14xi32>
    %c1_i32_30 = arith.constant 1 : i32
    %39 = vector.broadcast %c1_i32_30 : i32 to vector<12x8x14xi32>
    %40 = arith.cmpi sge, %38, %39 : vector<12x8x14xi32>
    %c12_i32 = arith.constant 12 : i32
    %41 = vector.broadcast %c12_i32 : i32 to vector<12x8x14xi32>
    %42 = arith.cmpi sle, %38, %41 : vector<12x8x14xi32>
    %43 = arith.andi %40, %42 : vector<12x8x14xi1>
    %cst_31 = arith.constant 0.000000e+00 : f32
    %44 = vector.broadcast %cst_31 : f32 to vector<12x8x14xf32>
    %45 = arith.select %43, %37, %44 : vector<12x8x14xi1>, vector<12x8x14xf32>
    %cst_32 = arith.constant 0.000000e+00 : f32
    %46 = vector.broadcast %cst_32 : f32 to vector<1x8x14xf32>
    %c0_33 = arith.constant 0 : index
    %c0_34 = arith.constant 0 : index
    %c0_35 = arith.constant 0 : index
    %47 = vector.load %arg10[%c0_33, %c0_34, %c0_35] : memref<14x8x14xf32, #tpu.memory_space<vmem>>, vector<1x8x14xf32>
    tpu.vector_store %arg10[%c0_33, %c0_34, %c0_35], %46 {strides = array<i32>} : memref<14x8x14xf32, #tpu.memory_space<vmem>>, vector<1x8x14xf32>,
    %cst_36 = arith.constant 0.000000e+00 : f32
    %48 = vector.broadcast %cst_36 : f32 to vector<1x8x14xf32>
    %c13 = arith.constant 13 : index
    %c0_37 = arith.constant 0 : index
    %c0_38 = arith.constant 0 : index
    %49 = vector.load %arg10[%c13, %c0_37, %c0_38] : memref<14x8x14xf32, #tpu.memory_space<vmem>>, vector<1x8x14xf32>
    tpu.vector_store %arg10[%c13, %c0_37, %c0_38], %48 {strides = array<i32>} : memref<14x8x14xf32, #tpu.memory_space<vmem>>, vector<1x8x14xf32>,
    %c1 = arith.constant 1 : index
    %c0_39 = arith.constant 0 : index
    %c0_40 = arith.constant 0 : index
    %50 = vector.load %arg10[%c1, %c0_39, %c0_40] : memref<14x8x14xf32, #tpu.memory_space<vmem>>, vector<12x8x14xf32>
    tpu.vector_store %arg10[%c1, %c0_39, %c0_40], %45 {strides = array<i32>} : memref<14x8x14xf32, #tpu.memory_space<vmem>>, vector<12x8x14xf32>,
    %c0_41 = arith.constant 0 : index
    %c0_42 = arith.constant 0 : index
    %c0_43 = arith.constant 0 : index
    %51 = vector.load %arg10[%c0_41, %c0_42, %c0_43] : memref<14x8x14xf32, #tpu.memory_space<vmem>>, vector<14x8x14xf32>
    %c1_i32_44 = arith.constant 1 : i32
    %52 = tpu.dynamic_rotate %51 by %c1_i32_44 dim 2 : vector<14x8x14xf32>, i32 -> vector<14x8x14xf32>
    %53 = vector.extract_strided_slice %52 {offsets = [0, 0, 0], sizes = [12, 8, 14], strides = [1, 1, 1]} : vector<14x8x14xf32> to vector<12x8x14xf32>
    %c0_45 = arith.constant 0 : index
    %c0_46 = arith.constant 0 : index
    %c0_47 = arith.constant 0 : index
    %54 = vector.load %arg12[%c0_45, %c0_46, %c0_47] : memref<12x72x14xf32, #tpu.memory_space<vmem>>, vector<12x8x14xf32>
    tpu.vector_store %arg12[%c0_45, %c0_46, %c0_47], %53 {strides = array<i32>} : memref<12x72x14xf32, #tpu.memory_space<vmem>>, vector<12x8x14xf32>,
    %55 = vector.extract_strided_slice %52 {offsets = [1, 0, 0], sizes = [12, 8, 14], strides = [1, 1, 1]} : vector<14x8x14xf32> to vector<12x8x14xf32>
    %c0_48 = arith.constant 0 : index
    %c24_49 = arith.constant 24 : index
    %c0_50 = arith.constant 0 : index
    %56 = vector.load %arg12[%c0_48, %c24_49, %c0_50] : memref<12x72x14xf32, #tpu.memory_space<vmem>>, vector<12x8x14xf32>
    tpu.vector_store %arg12[%c0_48, %c24_49, %c0_50], %55 {strides = array<i32>} : memref<12x72x14xf32, #tpu.memory_space<vmem>>, vector<12x8x14xf32>,
    %57 = vector.extract_strided_slice %52 {offsets = [2, 0, 0], sizes = [12, 8, 14], strides = [1, 1, 1]} : vector<14x8x14xf32> to vector<12x8x14xf32>
    %c0_51 = arith.constant 0 : index
    %c48 = arith.constant 48 : index
    %c0_52 = arith.constant 0 : index
    %58 = vector.load %arg12[%c0_51, %c48, %c0_52] : memref<12x72x14xf32, #tpu.memory_space<vmem>>, vector<12x8x14xf32>
    tpu.vector_store %arg12[%c0_51, %c48, %c0_52], %57 {strides = array<i32>} : memref<12x72x14xf32, #tpu.memory_space<vmem>>, vector<12x8x14xf32>,
    %59 = vector.extract_strided_slice %51 {offsets = [0, 0, 0], sizes = [12, 8, 14], strides = [1, 1, 1]} : vector<14x8x14xf32> to vector<12x8x14xf32>
    %c0_53 = arith.constant 0 : index
    %c8_54 = arith.constant 8 : index
    %c0_55 = arith.constant 0 : index
    %60 = vector.load %arg12[%c0_53, %c8_54, %c0_55] : memref<12x72x14xf32, #tpu.memory_space<vmem>>, vector<12x8x14xf32>
    tpu.vector_store %arg12[%c0_53, %c8_54, %c0_55], %59 {strides = array<i32>} : memref<12x72x14xf32, #tpu.memory_space<vmem>>, vector<12x8x14xf32>,
    %61 = vector.extract_strided_slice %51 {offsets = [1, 0, 0], sizes = [12, 8, 14], strides = [1, 1, 1]} : vector<14x8x14xf32> to vector<12x8x14xf32>
    %c0_56 = arith.constant 0 : index
    %c32_57 = arith.constant 32 : index
    %c0_58 = arith.constant 0 : index
    %62 = vector.load %arg12[%c0_56, %c32_57, %c0_58] : memref<12x72x14xf32, #tpu.memory_space<vmem>>, vector<12x8x14xf32>
    tpu.vector_store %arg12[%c0_56, %c32_57, %c0_58], %61 {strides = array<i32>} : memref<12x72x14xf32, #tpu.memory_space<vmem>>, vector<12x8x14xf32>,
    %63 = vector.extract_strided_slice %51 {offsets = [2, 0, 0], sizes = [12, 8, 14], strides = [1, 1, 1]} : vector<14x8x14xf32> to vector<12x8x14xf32>
    %c0_59 = arith.constant 0 : index
    %c56 = arith.constant 56 : index
    %c0_60 = arith.constant 0 : index
    %64 = vector.load %arg12[%c0_59, %c56, %c0_60] : memref<12x72x14xf32, #tpu.memory_space<vmem>>, vector<12x8x14xf32>
    tpu.vector_store %arg12[%c0_59, %c56, %c0_60], %63 {strides = array<i32>} : memref<12x72x14xf32, #tpu.memory_space<vmem>>, vector<12x8x14xf32>,
    %c13_i32_61 = arith.constant 13 : i32
    %65 = tpu.dynamic_rotate %51 by %c13_i32_61 dim 2 : vector<14x8x14xf32>, i32 -> vector<14x8x14xf32>
    %66 = vector.extract_strided_slice %65 {offsets = [0, 0, 0], sizes = [12, 8, 14], strides = [1, 1, 1]} : vector<14x8x14xf32> to vector<12x8x14xf32>
    %c0_62 = arith.constant 0 : index
    %c16_63 = arith.constant 16 : index
    %c0_64 = arith.constant 0 : index
    %67 = vector.load %arg12[%c0_62, %c16_63, %c0_64] : memref<12x72x14xf32, #tpu.memory_space<vmem>>, vector<12x8x14xf32>
    tpu.vector_store %arg12[%c0_62, %c16_63, %c0_64], %66 {strides = array<i32>} : memref<12x72x14xf32, #tpu.memory_space<vmem>>, vector<12x8x14xf32>,
    %68 = vector.extract_strided_slice %65 {offsets = [1, 0, 0], sizes = [12, 8, 14], strides = [1, 1, 1]} : vector<14x8x14xf32> to vector<12x8x14xf32>
    %c0_65 = arith.constant 0 : index
    %c40 = arith.constant 40 : index
    %c0_66 = arith.constant 0 : index
    %69 = vector.load %arg12[%c0_65, %c40, %c0_66] : memref<12x72x14xf32, #tpu.memory_space<vmem>>, vector<12x8x14xf32>
    tpu.vector_store %arg12[%c0_65, %c40, %c0_66], %68 {strides = array<i32>} : memref<12x72x14xf32, #tpu.memory_space<vmem>>, vector<12x8x14xf32>,
    %70 = vector.extract_strided_slice %65 {offsets = [2, 0, 0], sizes = [12, 8, 14], strides = [1, 1, 1]} : vector<14x8x14xf32> to vector<12x8x14xf32>
    %c0_67 = arith.constant 0 : index
    %c64 = arith.constant 64 : index
    %c0_68 = arith.constant 0 : index
    %71 = vector.load %arg12[%c0_67, %c64, %c0_68] : memref<12x72x14xf32, #tpu.memory_space<vmem>>, vector<12x8x14xf32>
    tpu.vector_store %arg12[%c0_67, %c64, %c0_68], %70 {strides = array<i32>} : memref<12x72x14xf32, #tpu.memory_space<vmem>>, vector<12x8x14xf32>,
    %c0_69 = arith.constant 0 : index
    %c0_70 = arith.constant 0 : index
    %72 = vector.load %arg4[%c0_69, %c0_70] : memref<8x72xf32, #tpu.memory_space<vmem>>, vector<8x72xf32>
    %73 = vector.shape_cast %72 : vector<8x72xf32> to vector<1x8x72xf32>
    %74 = vector.shape_cast %73 : vector<1x8x72xf32> to vector<1x8x72xf32>
    %75 = vector.broadcast %74 : vector<1x8x72xf32> to vector<12x8x72xf32>
    %c0_71 = arith.constant 0 : index
    %c0_72 = arith.constant 0 : index
    %c0_73 = arith.constant 0 : index
    %76 = vector.load %arg12[%c0_71, %c0_72, %c0_73] : memref<12x72x14xf32, #tpu.memory_space<vmem>>, vector<12x72x14xf32>
    %cst_74 = arith.constant dense<0.000000e+00> : vector<12x8x14xf32>
    %77 = tpu.matmul %75, %76, %cst_74 {dimension_numbers = #tpu.dot_dimension_numbers<[2], [1], [1], [2], [0, 0, 0, 1, 1, 2], [0], [0]>} : vector<12x8x72xf32>, vector<12x72x14xf32>, vector<12x8x14xf32> -> vector<12x8x14xf32>
    %c0_75 = arith.constant 0 : index
    %c0_76 = arith.constant 0 : index
    %78 = vector.load %arg5[%c0_75, %c0_76] : memref<8x1xf32, #tpu.memory_space<vmem>>, vector<8x1xf32>
    %79 = vector.shape_cast %78 : vector<8x1xf32> to vector<1x8x1xf32>
    %80 = vector.broadcast %79 : vector<1x8x1xf32> to vector<12x8x14xf32>
    %81 = arith.addf %77, %80 : vector<12x8x14xf32>
    %82 = arith.negf %81 : vector<12x8x14xf32>
    %83 = math.exp %82 : vector<12x8x14xf32>
    %cst_77 = arith.constant 1.000000e+00 : f32
    %84 = vector.broadcast %cst_77 : f32 to vector<12x8x14xf32>
    %85 = arith.addf %84, %83 : vector<12x8x14xf32>
    %86 = arith.divf %84, %85 : vector<12x8x14xf32>
    %87 = arith.mulf %81, %86 : vector<12x8x14xf32>
    %88 = vector.shape_cast %87 : vector<12x8x14xf32> to vector<4x24x14xf32>
    %89 = vector.extract_strided_slice %88 {offsets = [0, 0, 0], sizes = [4, 8, 14], strides = [1, 1, 1]} : vector<4x24x14xf32> to vector<4x8x14xf32>
    %90 = vector.extract_strided_slice %88 {offsets = [0, 8, 0], sizes = [4, 8, 14], strides = [1, 1, 1]} : vector<4x24x14xf32> to vector<4x8x14xf32>
    %91 = arith.maximumf %89, %90 : vector<4x8x14xf32>
    %92 = vector.extract_strided_slice %88 {offsets = [0, 16, 0], sizes = [4, 8, 14], strides = [1, 1, 1]} : vector<4x24x14xf32> to vector<4x8x14xf32>
    %93 = arith.maximumf %91, %92 : vector<4x8x14xf32>
    %94 = vector.shape_cast %93 : vector<4x8x14xf32> to vector<32x14xf32>
    %c0_78 = arith.constant 0 : index
    %c0_79 = arith.constant 0 : index
    %c0_80 = arith.constant 0 : index
    %95 = vector.load %arg6[%c0_78, %c0_79, %c0_80] : memref<3x14x4xf32, #tpu.memory_space<vmem>>, vector<1x14x4xf32>
    %96 = vector.shape_cast %95 : vector<1x14x4xf32> to vector<14x4xf32>
    %cst_81 = arith.constant dense<0.000000e+00> : vector<32x4xf32>
    %97 = tpu.matmul %94, %96, %cst_81 {dimension_numbers = #tpu.dot_dimension_numbers<[1], [0], [0], [1], [0, 0, 1, 1], [], []>} : vector<32x14xf32>, vector<14x4xf32>, vector<32x4xf32> -> vector<32x4xf32>
    %c1_82 = arith.constant 1 : index
    %c0_83 = arith.constant 0 : index
    %c0_84 = arith.constant 0 : index
    %98 = vector.load %arg6[%c1_82, %c0_83, %c0_84] : memref<3x14x4xf32, #tpu.memory_space<vmem>>, vector<1x14x4xf32>
    %99 = vector.shape_cast %98 : vector<1x14x4xf32> to vector<14x4xf32>
    %cst_85 = arith.constant dense<0.000000e+00> : vector<32x4xf32>
    %100 = tpu.matmul %94, %99, %cst_85 {dimension_numbers = #tpu.dot_dimension_numbers<[1], [0], [0], [1], [0, 0, 1, 1], [], []>} : vector<32x14xf32>, vector<14x4xf32>, vector<32x4xf32> -> vector<32x4xf32>
    %c2 = arith.constant 2 : index
    %c0_86 = arith.constant 0 : index
    %c0_87 = arith.constant 0 : index
    %101 = vector.load %arg6[%c2, %c0_86, %c0_87] : memref<3x14x4xf32, #tpu.memory_space<vmem>>, vector<1x14x4xf32>
    %102 = vector.shape_cast %101 : vector<1x14x4xf32> to vector<14x4xf32>
    %cst_88 = arith.constant dense<0.000000e+00> : vector<32x4xf32>
    %103 = tpu.matmul %94, %102, %cst_88 {dimension_numbers = #tpu.dot_dimension_numbers<[1], [0], [0], [1], [0, 0, 1, 1], [], []>} : vector<32x14xf32>, vector<14x4xf32>, vector<32x4xf32> -> vector<32x4xf32>
    %104 = arith.maximumf %97, %100 : vector<32x4xf32>
    %105 = arith.maximumf %104, %103 : vector<32x4xf32>
    %106 = vector.shape_cast %105 : vector<32x4xf32> to vector<1x32x4xf32>
    %c0_89 = arith.constant 0 : index
    %c0_90 = arith.constant 0 : index
    %c0_91 = arith.constant 0 : index
    %107 = vector.load %arg7[%c0_89, %c0_90, %c0_91] : memref<10x32x4xf32, #tpu.memory_space<vmem>>, vector<10x32x4xf32>
    %108 = vector.broadcast %106 : vector<1x32x4xf32> to vector<10x32x4xf32>
    %109 = arith.mulf %108, %107 : vector<10x32x4xf32>
    %cst_92 = arith.constant dense<0.000000e+00> : vector<10x32xf32>
    %110 = vector.multi_reduction <add>, %109, %cst_92 [2] : vector<10x32x4xf32> to vector<10x32xf32>
    %cst_93 = arith.constant dense<0.000000e+00> : vector<10xf32>
    %111 = vector.multi_reduction <add>, %110, %cst_93 [1] : vector<10x32xf32> to vector<10xf32>
    %112 = vector.shape_cast %111 : vector<10xf32> to vector<10x1xf32>
    %c0_94 = arith.constant 0 : index
    %c0_95 = arith.constant 0 : index
    %113 = vector.load %arg8[%c0_94, %c0_95] : memref<10x1xf32, #tpu.memory_space<vmem>>, vector<10x1xf32>
    %114 = arith.addf %112, %113 : vector<10x1xf32>
    %cst_96 = arith.constant dense<0xFF800000> : vector<1xf32>
    %115 = vector.multi_reduction <maximumf>, %114, %cst_96 [0] : vector<10x1xf32> to vector<1xf32>
    %116 = vector.shape_cast %115 : vector<1xf32> to vector<1x1xf32>
    %117 = vector.broadcast %116 : vector<1x1xf32> to vector<10x1xf32>
    %118 = arith.subf %114, %117 : vector<10x1xf32>
    %119 = math.exp %118 : vector<10x1xf32>
    %cst_97 = arith.constant dense<0.000000e+00> : vector<1xf32>
    %120 = vector.multi_reduction <add>, %119, %cst_97 [0] : vector<10x1xf32> to vector<1xf32>
    %121 = vector.shape_cast %120 : vector<1xf32> to vector<1x1xf32>
    %122 = vector.broadcast %121 : vector<1x1xf32> to vector<10x1xf32>
    %123 = arith.divf %119, %122 : vector<10x1xf32>
    %c0_98 = arith.constant 0 : index
    %c0_99 = arith.constant 0 : index
    %c0_100 = arith.constant 0 : index
    %124 = vector.load %arg9[%c0_98, %c0_99, %c0_100] : memref<1x10x1xf32, #tpu.memory_space<vmem>>, vector<1x10x1xf32>
    %125 = vector.shape_cast %124 : vector<1x10x1xf32> to vector<10x1xf32>
    %126 = vector.shape_cast %123 : vector<10x1xf32> to vector<1x10x1xf32>
    tpu.vector_store %arg9[%c0_98, %c0_99, %c0_100], %126 {strides = array<i32>} : memref<1x10x1xf32, #tpu.memory_space<vmem>>, vector<1x10x1xf32>,
    return
  }
  func.func @transform_0(%arg0: i32) -> (i32, i32, i32, i32) {
    %c0_i32 = arith.constant 0 : i32
    %c0_i32_0 = arith.constant 0 : i32
    %c0_i32_1 = arith.constant 0 : i32
    %c0_i32_2 = arith.constant 0 : i32
    return %arg0, %c0_i32, %c0_i32_0, %c0_i32_1 : i32, i32, i32, i32
  }
  func.func @transform_1(%arg0: i32) -> (i32, i32) {
    %c0_i32 = arith.constant 0 : i32
    %c0_i32_0 = arith.constant 0 : i32
    %c0_i32_1 = arith.constant 0 : i32
    return %c0_i32, %c0_i32_0 : i32, i32
  }
  func.func @transform_2(%arg0: i32) -> (i32, i32) {
    %c0_i32 = arith.constant 0 : i32
    %c0_i32_0 = arith.constant 0 : i32
    %c0_i32_1 = arith.constant 0 : i32
    return %c0_i32, %c0_i32_0 : i32, i32
  }
  func.func @transform_3(%arg0: i32) -> (i32, i32) {
    %c0_i32 = arith.constant 0 : i32
    %c0_i32_0 = arith.constant 0 : i32
    %c0_i32_1 = arith.constant 0 : i32
    return %c0_i32, %c0_i32_0 : i32, i32
  }
  func.func @transform_4(%arg0: i32) -> (i32, i32) {
    %c0_i32 = arith.constant 0 : i32
    %c0_i32_0 = arith.constant 0 : i32
    %c0_i32_1 = arith.constant 0 : i32
    return %c0_i32, %c0_i32_0 : i32, i32
  }
  func.func @transform_5(%arg0: i32) -> (i32, i32, i32) {
    %c0_i32 = arith.constant 0 : i32
    %c0_i32_0 = arith.constant 0 : i32
    %c0_i32_1 = arith.constant 0 : i32
    %c0_i32_2 = arith.constant 0 : i32
    return %c0_i32, %c0_i32_0, %c0_i32_1 : i32, i32, i32
  }
  func.func @transform_6(%arg0: i32) -> (i32, i32, i32) {
    %c0_i32 = arith.constant 0 : i32
    %c0_i32_0 = arith.constant 0 : i32
    %c0_i32_1 = arith.constant 0 : i32
    %c0_i32_2 = arith.constant 0 : i32
    return %c0_i32, %c0_i32_0, %c0_i32_1 : i32, i32, i32
  }
  func.func @transform_7(%arg0: i32) -> (i32, i32) {
    %c0_i32 = arith.constant 0 : i32
    %c0_i32_0 = arith.constant 0 : i32
    %c0_i32_1 = arith.constant 0 : i32
    return %c0_i32, %c0_i32_0 : i32, i32
  }
  func.func @transform_8(%arg0: i32) -> (i32, i32, i32) {
    %c0_i32 = arith.constant 0 : i32
    %c0_i32_0 = arith.constant 0 : i32
    %c0_i32_1 = arith.constant 0 : i32
    return %arg0, %c0_i32, %c0_i32_0 : i32, i32, i32
  }
}

</mosaic_0001>

<llo_original>
// kernel: maml_forward.1
$region0: #{maml_forward.1}
  #allocation0 [shape = 'u32[]', space=smem, size = 0x4, offset = 0x4, fixed_abs, tag = 'smem constant byte address 0x4 - core index']
  #allocation1 [shape = 'u32[72,128]{1,0:T(1,128)}', space=vmem, size = 0x9000, scoped, tag = 'internal scratch']
  #allocation2 [shape = 'f32[14,8,14]{2,1,0:T(8,128)}', space=vmem, size = 0xe000, scoped, tag = 'scratch operand']
  #allocation3 [shape = 'f32[12,36,14]{2,1,0:T(8,128)}', space=vmem, size = 0x3c000, scoped, tag = 'scratch operand']
  #allocation4 [shape = 'f32[12,72,14]{2,1,0:T(8,128)}', space=vmem, size = 0x6c000, scoped, tag = 'scratch operand']
  %s0 = inlined_call_operand.vmem [shape: f32[2,14,4,14], index: 0, kind: input, shape index: {}]
  %s1 = inlined_call_operand.vmem [shape: f32[8,36], index: 1, kind: input, shape index: {}]
  %s2 = inlined_call_operand.vmem [shape: f32[8,1], index: 2, kind: input, shape index: {}]
  %s3 = inlined_call_operand.vmem [shape: f32[8,72], index: 3, kind: input, shape index: {}]
  %s4 = inlined_call_operand.vmem [shape: f32[8,1], index: 4, kind: input, shape index: {}]
  %s5 = inlined_call_operand.vmem [shape: f32[3,14,4], index: 5, kind: input, shape index: {}]
  %s6 = inlined_call_operand.vmem [shape: f32[10,32,4], index: 6, kind: input, shape index: {}]
  %s7 = inlined_call_operand.vmem [shape: f32[10,1], index: 7, kind: input, shape index: {}]
  %s8 = inlined_call_operand.vmem [shape: f32[2,10,1], index: 8, kind: output, shape index: {}]
  %s9 = sld [smem:[#allocation0]]
  $region65: #{maml_forward.1} parent=0
    _
  %s11 = ssub.s32 1, %s9
  %s12 = scalar_select 0, %s11, %s9
  loop: start=0, step=1, limit=4
  $region2: #{maml_forward.1} parent=0 // loop_pre_header
    _
  $region3: #{maml_forward.1} parent=0 // loop_header
    %s14 = sphi 0, %s18
    %p15 = scmp.ge.s32.totalorder %s14, 4
    %s24 = sphi 0, %s26
    %s27 = sphi 0, %s24
    %s28 = sphi 0, %s27
    %s44 = sphi 0, %s28
    %s48 = sphi 0, %s48
    %s50 = sphi 0, %s48
    %s51 = sphi 0, %s50
    %s65 = sphi 0, %s51
    %s69 = sphi 0, %s69
    %s71 = sphi 0, %s69
    %s72 = sphi 0, %s71
    %s86 = sphi 0, %s72
    %s90 = sphi 0, %s90
    %s92 = sphi 0, %s90
    %s93 = sphi 0, %s92
    %s107 = sphi 0, %s93
    %s111 = sphi 0, %s111
    %s113 = sphi 0, %s111
    %s114 = sphi 0, %s113
    %s128 = sphi 0, %s114
    %s132 = sphi 0, %s132
    %s134 = sphi 0, %s132
    %s135 = sphi 0, %s134
    %s149 = sphi 0, %s135
    %s153 = sphi 0, %s153
    %s155 = sphi 0, %s153
    %s156 = sphi 0, %s155
    %s170 = sphi 0, %s156
    %s174 = sphi 0, %s174
    %s176 = sphi 0, %s174
    %s177 = sphi 0, %s176
    %s191 = sphi 0, %s177
    %s197 = sphi 0, %s199
    %s200 = sphi 0, %s197
    %s201 = sphi 0, %s200
    %s217 = sphi 0, %s201
  $region4: #{maml_forward.1} parent=0 // loop_header_branch
    %17 = sbr.rel (%p15) target = $region8
  $region5: #{maml_forward.1} parent=0 // loop_body
    %s19 = ssub.s32 %s14, 1
    %s20 = ssub.s32 %s14, 2
    %s21 = sadd.s32 %s14, 1
    %s22 = ssub.s32 %s14, %s21
    %p23 = scmp.eq.s32.totalorder %s22, 0
    %s25 = sadd.s32 %s24, 1
    %s26 = scalar_select %p23, %s24, %s25
    %p29 = pneg %p23
    %p30 = scmp.eq.s32.totalorder %s14, 1
    %p31 = por %p29, %p30
    %p32 = scmp.ne.s32.totalorder %s24, %s27
    %p33 = scmp.eq.s32.totalorder %s14, 0
    %p34 = por %p32, %p33
    %p35 = scmp.ne.s32.totalorder %s24, %s27
    %p36 = scmp.eq.s32.totalorder %s19, 1
    %p37 = por %p35, %p36
    %p38 = scmp.ne.s32.totalorder %s27, %s28
    %p39 = scmp.eq.s32.totalorder %s19, 0
    %p40 = por %p38, %p39
    %p41 = scmp.ne.s32.totalorder %s27, %s28
    %p42 = scmp.eq.s32.totalorder %s20, 1
    %p43 = por %p41, %p42
    %p45 = scmp.ne.s32.totalorder %s28, %s44
    %p46 = scmp.eq.s32.totalorder %s20, 0
    %p47 = por %p45, %p46
    %s49 = sadd.s32 %s48, 1
    %p52 = scmp.eq.s32.totalorder %s14, 1
    %p53 = scmp.ne.s32.totalorder %s48, %s50
    %p54 = scmp.eq.s32.totalorder %s14, 0
    %p55 = por %p53, %p54
    %p56 = scmp.ne.s32.totalorder %s48, %s50
    %p57 = scmp.eq.s32.totalorder %s19, 1
    %p58 = por %p56, %p57
    %p59 = scmp.ne.s32.totalorder %s50, %s51
    %p60 = scmp.eq.s32.totalorder %s19, 0
    %p61 = por %p59, %p60
    %p62 = scmp.ne.s32.totalorder %s50, %s51
    %p63 = scmp.eq.s32.totalorder %s20, 1
    %p64 = por %p62, %p63
    %p66 = scmp.ne.s32.totalorder %s51, %s65
    %p67 = scmp.eq.s32.totalorder %s20, 0
    %p68 = por %p66, %p67
    %s70 = sadd.s32 %s69, 1
    %p73 = scmp.eq.s32.totalorder %s14, 1
    %p74 = scmp.ne.s32.totalorder %s69, %s71
    %p75 = scmp.eq.s32.totalorder %s14, 0
    %p76 = por %p74, %p75
    %p77 = scmp.ne.s32.totalorder %s69, %s71
    %p78 = scmp.eq.s32.totalorder %s19, 1
    %p79 = por %p77, %p78
    %p80 = scmp.ne.s32.totalorder %s71, %s72
    %p81 = scmp.eq.s32.totalorder %s19, 0
    %p82 = por %p80, %p81
    %p83 = scmp.ne.s32.totalorder %s71, %s72
    %p84 = scmp.eq.s32.totalorder %s20, 1
    %p85 = por %p83, %p84
    %p87 = scmp.ne.s32.totalorder %s72, %s86
    %p88 = scmp.eq.s32.totalorder %s20, 0
    %p89 = por %p87, %p88
    %s91 = sadd.s32 %s90, 1
    %p94 = scmp.eq.s32.totalorder %s14, 1
    %p95 = scmp.ne.s32.totalorder %s90, %s92
    %p96 = scmp.eq.s32.totalorder %s14, 0
    %p97 = por %p95, %p96
    %p98 = scmp.ne.s32.totalorder %s90, %s92
    %p99 = scmp.eq.s32.totalorder %s19, 1
    %p100 = por %p98, %p99
    %p101 = scmp.ne.s32.totalorder %s92, %s93
    %p102 = scmp.eq.s32.totalorder %s19, 0
    %p103 = por %p101, %p102
    %p104 = scmp.ne.s32.totalorder %s92, %s93
    %p105 = scmp.eq.s32.totalorder %s20, 1
    %p106 = por %p104, %p105
    %p108 = scmp.ne.s32.totalorder %s93, %s107
    %p109 = scmp.eq.s32.totalorder %s20, 0
    %p110 = por %p108, %p109
    %s112 = sadd.s32 %s111, 1
    %p115 = scmp.eq.s32.totalorder %s14, 1
    %p116 = scmp.ne.s32.totalorder %s111, %s113
    %p117 = scmp.eq.s32.totalorder %s14, 0
    %p118 = por %p116, %p117
    %p119 = scmp.ne.s32.totalorder %s111, %s113
    %p120 = scmp.eq.s32.totalorder %s19, 1
    %p121 = por %p119, %p120
    %p122 = scmp.ne.s32.totalorder %s113, %s114
    %p123 = scmp.eq.s32.totalorder %s19, 0
    %p124 = por %p122, %p123
    %p125 = scmp.ne.s32.totalorder %s113, %s114
    %p126 = scmp.eq.s32.totalorder %s20, 1
    %p127 = por %p125, %p126
    %p129 = scmp.ne.s32.totalorder %s114, %s128
    %p130 = scmp.eq.s32.totalorder %s20, 0
    %p131 = por %p129, %p130
    %s133 = sadd.s32 %s132, 1
    %p136 = scmp.eq.s32.totalorder %s14, 1
    %p137 = scmp.ne.s32.totalorder %s132, %s134
    %p138 = scmp.eq.s32.totalorder %s14, 0
    %p139 = por %p137, %p138
    %p140 = scmp.ne.s32.totalorder %s132, %s134
    %p141 = scmp.eq.s32.totalorder %s19, 1
    %p142 = por %p140, %p141
    %p143 = scmp.ne.s32.totalorder %s134, %s135
    %p144 = scmp.eq.s32.totalorder %s19, 0
    %p145 = por %p143, %p144
    %p146 = scmp.ne.s32.totalorder %s134, %s135
    %p147 = scmp.eq.s32.totalorder %s20, 1
    %p148 = por %p146, %p147
    %p150 = scmp.ne.s32.totalorder %s135, %s149
    %p151 = scmp.eq.s32.totalorder %s20, 0
    %p152 = por %p150, %p151
    %s154 = sadd.s32 %s153, 1
    %p157 = scmp.eq.s32.totalorder %s14, 1
    %p158 = scmp.ne.s32.totalorder %s153, %s155
    %p159 = scmp.eq.s32.totalorder %s14, 0
    %p160 = por %p158, %p159
    %p161 = scmp.ne.s32.totalorder %s153, %s155
    %p162 = scmp.eq.s32.totalorder %s19, 1
    %p163 = por %p161, %p162
    %p164 = scmp.ne.s32.totalorder %s155, %s156
    %p165 = scmp.eq.s32.totalorder %s19, 0
    %p166 = por %p164, %p165
    %p167 = scmp.ne.s32.totalorder %s155, %s156
    %p168 = scmp.eq.s32.totalorder %s20, 1
    %p169 = por %p167, %p168
    %p171 = scmp.ne.s32.totalorder %s156, %s170
    %p172 = scmp.eq.s32.totalorder %s20, 0
    %p173 = por %p171, %p172
    %s175 = sadd.s32 %s174, 1
    %p178 = scmp.eq.s32.totalorder %s14, 1
    %p179 = scmp.ne.s32.totalorder %s174, %s176
    %p180 = scmp.eq.s32.totalorder %s14, 0
    %p181 = por %p179, %p180
    %p182 = scmp.ne.s32.totalorder %s174, %s176
    %p183 = scmp.eq.s32.totalorder %s19, 1
    %p184 = por %p182, %p183
    %p185 = scmp.ne.s32.totalorder %s176, %s177
    %p186 = scmp.eq.s32.totalorder %s19, 0
    %p187 = por %p185, %p186
    %p188 = scmp.ne.s32.totalorder %s176, %s177
    %p189 = scmp.eq.s32.totalorder %s20, 1
    %p190 = por %p188, %p189
    %p192 = scmp.ne.s32.totalorder %s177, %s191
    %p193 = scmp.eq.s32.totalorder %s20, 0
    %p194 = por %p192, %p193
    %s195 = ssub.s32 %s14, %s21
    %p196 = scmp.eq.s32.totalorder %s195, 0
    %s198 = sadd.s32 %s197, 1
    %s199 = scalar_select %p196, %s197, %s198
    %p202 = pneg %p196
    %p203 = scmp.eq.s32.totalorder %s14, 1
    %p204 = por %p202, %p203
    %p205 = scmp.ne.s32.totalorder %s197, %s200
    %p206 = scmp.eq.s32.totalorder %s14, 0
    %p207 = por %p205, %p206
    %p208 = scmp.ne.s32.totalorder %s197, %s200
    %p209 = scmp.eq.s32.totalorder %s19, 1
    %p210 = por %p208, %p209
    %p211 = scmp.ne.s32.totalorder %s200, %s201
    %p212 = scmp.eq.s32.totalorder %s19, 0
    %p213 = por %p211, %p212
    %p214 = scmp.ne.s32.totalorder %s200, %s201
    %p215 = scmp.eq.s32.totalorder %s20, 1
    %p216 = por %p214, %p215
    %p218 = scmp.ne.s32.totalorder %s201, %s217
    %p219 = scmp.eq.s32.totalorder %s20, 0
    %p220 = por %p218, %p219
    %p221 = scmp.le.s32.totalorder 1, %s14
    %p222 = scmp.lt.s32.totalorder %s14, 3
    %p223 = pnand %p221, %p222
    %p224 = pneg %p223
    // Predicated region
    $region9: #{maml_forward.1} parent=5 // pred_check
      _
    $region10: #{maml_forward.1} parent=5 // pred_check_branch
      %226 = sbr.rel (%p223) target = $region12
    $region11: #{maml_forward.1} parent=5 // pred_region
      %s227 = ssub.s32 %s14, 1
      // Predicated region
      $region13: #{maml_forward.1} parent=11 // pred_check
        %p228 = pneg %p61
      $region14: #{maml_forward.1} parent=11 // pred_check_branch
        %230 = sbr.rel (%p228) target = $region16
      $region15: #{maml_forward.1} parent=11 // pred_region
        _
      $region16: #{maml_forward.1} parent=11 // pred_fallthru
        _
      // Predicated region
      $region17: #{maml_forward.1} parent=11 // pred_check
        %p231 = pneg %p82
      $region18: #{maml_forward.1} parent=11 // pred_check_branch
        %233 = sbr.rel (%p231) target = $region20
      $region19: #{maml_forward.1} parent=11 // pred_region
        _
      $region20: #{maml_forward.1} parent=11 // pred_fallthru
        _
      // Predicated region
      $region21: #{maml_forward.1} parent=11 // pred_check
        %p234 = pneg %p103
      $region22: #{maml_forward.1} parent=11 // pred_check_branch
        %236 = sbr.rel (%p234) target = $region24
      $region23: #{maml_forward.1} parent=11 // pred_region
        _
      $region24: #{maml_forward.1} parent=11 // pred_fallthru
        _
      // Predicated region
      $region25: #{maml_forward.1} parent=11 // pred_check
        %p237 = pneg %p124
      $region26: #{maml_forward.1} parent=11 // pred_check_branch
        %239 = sbr.rel (%p237) target = $region28
      $region27: #{maml_forward.1} parent=11 // pred_region
        _
      $region28: #{maml_forward.1} parent=11 // pred_fallthru
        _
      // Predicated region
      $region29: #{maml_forward.1} parent=11 // pred_check
        %p240 = pneg %p145
      $region30: #{maml_forward.1} parent=11 // pred_check_branch
        %242 = sbr.rel (%p240) target = $region32
      $region31: #{maml_forward.1} parent=11 // pred_region
        _
      $region32: #{maml_forward.1} parent=11 // pred_fallthru
        _
      // Predicated region
      $region33: #{maml_forward.1} parent=11 // pred_check
        %p243 = pneg %p166
      $region34: #{maml_forward.1} parent=11 // pred_check_branch
        %245 = sbr.rel (%p243) target = $region36
      $region35: #{maml_forward.1} parent=11 // pred_region
        _
      $region36: #{maml_forward.1} parent=11 // pred_fallthru
        _
      // Predicated region
      $region37: #{maml_forward.1} parent=11 // pred_check
        %p246 = pneg %p187
      $region38: #{maml_forward.1} parent=11 // pred_check_branch
        %248 = sbr.rel (%p246) target = $region40
      $region39: #{maml_forward.1} parent=11 // pred_region
        _
      $region40: #{maml_forward.1} parent=11 // pred_fallthru
        _
    $region12: #{maml_forward.1} parent=5 // pred_fallthru
      _
    %p249 = scmp.lt.s32.totalorder %s14, 2
    // Predicated region
    $region41: #{maml_forward.1} parent=5 // pred_check
      %p250 = pneg %p249
    $region42: #{maml_forward.1} parent=5 // pred_check_branch
      %252 = sbr.rel (%p250) target = $region44
    $region43: #{maml_forward.1} parent=5 // pred_region
      // Predicated region
      $region45: #{maml_forward.1} parent=43 // pred_check
        %p253 = pneg %p34
      $region46: #{maml_forward.1} parent=43 // pred_check_branch
        %255 = sbr.rel (%p253) target = $region48
      $region47: #{maml_forward.1} parent=43 // pred_region
        %p256 = scmp.lt.s32.totalorder %s14, 1
        %s257 = scalar_select %p256, %s14, 1
        %s258 = smul.addr %s257, 14
        %s259 = smul.addr %s258, 4
        %s260 = scalar_lea.vmem %s0, %s259
      $region48: #{maml_forward.1} parent=43 // pred_fallthru
        _
    $region44: #{maml_forward.1} parent=5 // pred_fallthru
      _
    %p261 = scmp.le.s32.totalorder 1, %s14
    %p262 = scmp.lt.s32.totalorder %s14, 3
    %p263 = pnand %p261, %p262
    %p264 = pneg %p263
    // Predicated region
    $region49: #{maml_forward.1} parent=5 // pred_check
      _
    $region50: #{maml_forward.1} parent=5 // pred_check_branch
      %266 = sbr.rel (%p263) target = $region52
    $region51: #{maml_forward.1} parent=5 // pred_region
      %s267 = ssub.s32 %s14, 1
      %p268 = scmp.lt.s32.totalorder %s19, 1
      %s269 = scalar_select %p268, %s19, 1
      %s270 = smul.addr %s269, 14
      %s271 = smul.addr %s270, 4
      %s272 = scalar_lea.vmem %s0, %s271
      %p273 = pneg %p40
      %p274 = pneg %p37
      %p275 = pneg %p61
      %p276 = pneg %p58
      %p277 = pneg %p82
      %p278 = pneg %p79
      %p279 = pneg %p103
      %p280 = pneg %p100
      %p281 = pneg %p124
      %p282 = pneg %p121
      %p283 = pneg %p145
      %p284 = pneg %p142
      %p285 = pneg %p166
      %p286 = pneg %p163
      %p287 = pneg %p187
      %p288 = pneg %p184
      %p289 = pneg %p213
      %p290 = pneg %p210
      %p291 = scmp.lt.s32.totalorder %s19, 1
      %s292 = scalar_select %p291, %s19, 1
      %s293 = smul.addr %s292, 2
      %s294 = smul.addr %s293, 8
      %s295 = scalar_lea.vmem %s8, %s294
      %p296 = scmp.lt.s32.totalorder %s19, 1
      %s297 = scalar_select %p296, %s19, 1
      %s298 = smul.addr %s297, 14
      %s299 = smul.addr %s298, 4
      %s300 = scalar_lea.vmem %s0, %s299
      %p301 = scmp.lt.s32.totalorder %s19, 1
      %s302 = scalar_select %p301, %s19, 1
      %s303 = smul.addr %s302, 2
      %s304 = smul.addr %s303, 8
      %s305 = scalar_lea.vmem %s8, %s304
      %v306 = vld [vmem:[%s300] sm:$0xf]
      %v307 = vld [vmem:[%s300 + $0x4] sm:$0xf]
      %v308 = vld [vmem:[%s300 + $0x8] sm:$0xf]
      %v309 = vld [vmem:[%s300 + $0xc] sm:$0xf]
      %v310 = vld [vmem:[%s300 + $0x10] sm:$0xf]
      %v311 = vld [vmem:[%s300 + $0x14] sm:$0xf]
      %v312 = vld [vmem:[%s300 + $0x18] sm:$0xf]
      %v313 = vld [vmem:[%s300 + $0x1c] sm:$0xf]
      %v314 = vld [vmem:[%s300 + $0x20] sm:$0xf]
      %v315 = vld [vmem:[%s300 + $0x24] sm:$0xf]
      %v316 = vld [vmem:[%s300 + $0x28] sm:$0xf]
      %v317 = vld [vmem:[%s300 + $0x2c] sm:$0xf]
      %v318 = vld [vmem:[%s300 + $0x30] sm:$0xf]
      %v319 = vld [vmem:[%s300 + $0x34] sm:$0xf]
      %vm320 = vcmask 1047664
      %321 = vrot.lane.b32.xlu0 %v306, 14
      %v322 = vpop.permute.xlu0 %321
      %v323 = vsel %vm320, %v322, %v306
      %324 = vrot.lane.b32.xlu0 %v307, 14
      %v325 = vpop.permute.xlu0 %324
      %v326 = vsel %vm320, %v325, %v307
      %327 = vrot.lane.b32.xlu0 %v308, 14
      %v328 = vpop.permute.xlu0 %327
      %v329 = vsel %vm320, %v328, %v308
      %330 = vrot.lane.b32.xlu0 %v309, 14
      %v331 = vpop.permute.xlu0 %330
      %v332 = vsel %vm320, %v331, %v309
      %333 = vrot.lane.b32.xlu0 %v310, 14
      %v334 = vpop.permute.xlu0 %333
      %v335 = vsel %vm320, %v334, %v310
      %336 = vrot.lane.b32.xlu0 %v311, 14
      %v337 = vpop.permute.xlu0 %336
      %v338 = vsel %vm320, %v337, %v311
      %339 = vrot.lane.b32.xlu0 %v312, 14
      %v340 = vpop.permute.xlu0 %339
      %v341 = vsel %vm320, %v340, %v312
      %342 = vrot.lane.b32.xlu0 %v313, 14
      %v343 = vpop.permute.xlu0 %342
      %v344 = vsel %vm320, %v343, %v313
      %345 = vrot.lane.b32.xlu0 %v314, 14
      %v346 = vpop.permute.xlu0 %345
      %v347 = vsel %vm320, %v346, %v314
      %348 = vrot.lane.b32.xlu0 %v315, 14
      %v349 = vpop.permute.xlu0 %348
      %v350 = vsel %vm320, %v349, %v315
      %351 = vrot.lane.b32.xlu0 %v316, 14
      %v352 = vpop.permute.xlu0 %351
      %v353 = vsel %vm320, %v352, %v316
      %354 = vrot.lane.b32.xlu0 %v317, 14
      %v355 = vpop.permute.xlu0 %354
      %v356 = vsel %vm320, %v355, %v317
      %357 = vrot.lane.b32.xlu0 %v318, 14
      %v358 = vpop.permute.xlu0 %357
      %v359 = vsel %vm320, %v358, %v318
      %360 = vrot.lane.b32.xlu0 %v319, 14
      %v361 = vpop.permute.xlu0 %360
      %v362 = vsel %vm320, %v361, %v319
      %363 = vrot.lane.b32.xlu0 %v323, 14
      %v364 = vpop.permute.xlu0 %363
      %365 = vrot.lane.b32.xlu0 %v326, 14
      %v366 = vpop.permute.xlu0 %365
      %367 = vrot.lane.b32.xlu0 %v329, 14
      %v368 = vpop.permute.xlu0 %367
      %369 = vrot.lane.b32.xlu0 %v332, 14
      %v370 = vpop.permute.xlu0 %369
      %371 = vrot.lane.b32.xlu0 %v335, 14
      %v372 = vpop.permute.xlu0 %371
      %373 = vrot.lane.b32.xlu0 %v338, 14
      %v374 = vpop.permute.xlu0 %373
      %375 = vrot.lane.b32.xlu0 %v341, 14
      %v376 = vpop.permute.xlu0 %375
      %377 = vrot.lane.b32.xlu0 %v344, 14
      %v378 = vpop.permute.xlu0 %377
      %379 = vrot.lane.b32.xlu0 %v347, 14
      %v380 = vpop.permute.xlu0 %379
      %381 = vrot.lane.b32.xlu0 %v350, 14
      %v382 = vpop.permute.xlu0 %381
      %383 = vrot.lane.b32.xlu0 %v353, 14
      %v384 = vpop.permute.xlu0 %383
      %385 = vrot.lane.b32.xlu0 %v356, 14
      %v386 = vpop.permute.xlu0 %385
      %387 = vrot.lane.b32.xlu0 %v359, 14
      %v388 = vpop.permute.xlu0 %387
      %389 = vrot.lane.b32.xlu0 %v362, 14
      %v390 = vpop.permute.xlu0 %389
      %v391 = vsel %vm320, %v364, %v306
      %v392 = vsel %vm320, %v366, %v307
      %v393 = vsel %vm320, %v368, %v308
      %v394 = vsel %vm320, %v370, %v309
      %v395 = vsel %vm320, %v372, %v310
      %v396 = vsel %vm320, %v374, %v311
      %v397 = vsel %vm320, %v376, %v312
      %v398 = vsel %vm320, %v378, %v313
      %v399 = vsel %vm320, %v380, %v314
      %v400 = vsel %vm320, %v382, %v315
      %v401 = vsel %vm320, %v384, %v316
      %v402 = vsel %vm320, %v386, %v317
      %v403 = vsel %vm320, %v388, %v318
      %v404 = vsel %vm320, %v390, %v319
      %417 = vrot.lane.b32.xlu0 %v391, 115
      %v418 = vpop.permute.xlu0 %417
      %419 = vrot.lane.b32.xlu0 %v392, 115
      %v420 = vpop.permute.xlu0 %419
      %421 = vrot.lane.b32.xlu0 %v393, 115
      %v422 = vpop.permute.xlu0 %421
      %423 = vrot.lane.b32.xlu0 %v394, 115
      %v424 = vpop.permute.xlu0 %423
      %425 = vrot.lane.b32.xlu0 %v395, 115
      %v426 = vpop.permute.xlu0 %425
      %427 = vrot.lane.b32.xlu0 %v396, 115
      %v428 = vpop.permute.xlu0 %427
      %429 = vrot.lane.b32.xlu0 %v397, 115
      %v430 = vpop.permute.xlu0 %429
      %431 = vrot.lane.b32.xlu0 %v398, 115
      %v432 = vpop.permute.xlu0 %431
      %433 = vrot.lane.b32.xlu0 %v399, 115
      %v434 = vpop.permute.xlu0 %433
      %435 = vrot.lane.b32.xlu0 %v400, 115
      %v436 = vpop.permute.xlu0 %435
      %437 = vrot.lane.b32.xlu0 %v401, 115
      %v438 = vpop.permute.xlu0 %437
      %439 = vrot.lane.b32.xlu0 %v402, 115
      %v440 = vpop.permute.xlu0 %439
      %vm453 = vcmask 109568
      %454 = vst.msk [vmem:[#allocation3] sm:$0xf] %vm453, %v418
      %455 = vst.msk [vmem:[#allocation3 + $0x28] sm:$0xf] %vm453, %v420
      %456 = vst.msk [vmem:[#allocation3 + $0x50] sm:$0xf] %vm453, %v422
      %457 = vst.msk [vmem:[#allocation3 + $0x78] sm:$0xf] %vm453, %v424
      %458 = vst.msk [vmem:[#allocation3 + $0xa0] sm:$0xf] %vm453, %v426
      %459 = vst.msk [vmem:[#allocation3 + $0xc8] sm:$0xf] %vm453, %v428
      %460 = vst.msk [vmem:[#allocation3 + $0xf0] sm:$0xf] %vm453, %v430
      %461 = vst.msk [vmem:[#allocation3 + $0x118] sm:$0xf] %vm453, %v432
      %462 = vst.msk [vmem:[#allocation3 + $0x140] sm:$0xf] %vm453, %v434
      %463 = vst.msk [vmem:[#allocation3 + $0x168] sm:$0xf] %vm453, %v436
      %464 = vst.msk [vmem:[#allocation3 + $0x190] sm:$0xf] %vm453, %v438
      %465 = vst.msk [vmem:[#allocation3 + $0x1b8] sm:$0xf] %vm453, %v440
      %467 = vrot.lane.b32.xlu0 %v403, 115
      %v468 = vpop.permute.xlu0 %467
      %470 = vst.msk [vmem:[#allocation3 + $0xc] sm:$0xf] %vm453, %v420
      %471 = vst.msk [vmem:[#allocation3 + $0x34] sm:$0xf] %vm453, %v422
      %472 = vst.msk [vmem:[#allocation3 + $0x5c] sm:$0xf] %vm453, %v424
      %473 = vst.msk [vmem:[#allocation3 + $0x84] sm:$0xf] %vm453, %v426
      %474 = vst.msk [vmem:[#allocation3 + $0xac] sm:$0xf] %vm453, %v428
      %475 = vst.msk [vmem:[#allocation3 + $0xd4] sm:$0xf] %vm453, %v430
      %476 = vst.msk [vmem:[#allocation3 + $0xfc] sm:$0xf] %vm453, %v432
      %477 = vst.msk [vmem:[#allocation3 + $0x124] sm:$0xf] %vm453, %v434
      %478 = vst.msk [vmem:[#allocation3 + $0x14c] sm:$0xf] %vm453, %v436
      %479 = vst.msk [vmem:[#allocation3 + $0x174] sm:$0xf] %vm453, %v438
      %480 = vst.msk [vmem:[#allocation3 + $0x19c] sm:$0xf] %vm453, %v440
      %481 = vst.msk [vmem:[#allocation3 + $0x1c4] sm:$0xf] %vm453, %v468
      %483 = vrot.lane.b32.xlu0 %v404, 115
      %v484 = vpop.permute.xlu0 %483
      %486 = vst.msk [vmem:[#allocation3 + $0x18] sm:$0xf] %vm453, %v422
      %487 = vst.msk [vmem:[#allocation3 + $0x40] sm:$0xf] %vm453, %v424
      %488 = vst.msk [vmem:[#allocation3 + $0x68] sm:$0xf] %vm453, %v426
      %489 = vst.msk [vmem:[#allocation3 + $0x90] sm:$0xf] %vm453, %v428
      %490 = vst.msk [vmem:[#allocation3 + $0xb8] sm:$0xf] %vm453, %v430
      %491 = vst.msk [vmem:[#allocation3 + $0xe0] sm:$0xf] %vm453, %v432
      %492 = vst.msk [vmem:[#allocation3 + $0x108] sm:$0xf] %vm453, %v434
      %493 = vst.msk [vmem:[#allocation3 + $0x130] sm:$0xf] %vm453, %v436
      %494 = vst.msk [vmem:[#allocation3 + $0x158] sm:$0xf] %vm453, %v438
      %495 = vst.msk [vmem:[#allocation3 + $0x180] sm:$0xf] %vm453, %v440
      %496 = vst.msk [vmem:[#allocation3 + $0x1a8] sm:$0xf] %vm453, %v468
      %497 = vst.msk [vmem:[#allocation3 + $0x1d0] sm:$0xf] %vm453, %v484
      %498 = vst.msk [vmem:[#allocation3 + $0x4] sm:$0xf] %vm453, %v306
      %499 = vst.msk [vmem:[#allocation3 + $0x2c] sm:$0xf] %vm453, %v307
      %500 = vst.msk [vmem:[#allocation3 + $0x54] sm:$0xf] %vm453, %v308
      %501 = vst.msk [vmem:[#allocation3 + $0x7c] sm:$0xf] %vm453, %v309
      %502 = vst.msk [vmem:[#allocation3 + $0xa4] sm:$0xf] %vm453, %v310
      %503 = vst.msk [vmem:[#allocation3 + $0xcc] sm:$0xf] %vm453, %v311
      %504 = vst.msk [vmem:[#allocation3 + $0xf4] sm:$0xf] %vm453, %v312
      %505 = vst.msk [vmem:[#allocation3 + $0x11c] sm:$0xf] %vm453, %v313
      %506 = vst.msk [vmem:[#allocation3 + $0x144] sm:$0xf] %vm453, %v314
      %507 = vst.msk [vmem:[#allocation3 + $0x16c] sm:$0xf] %vm453, %v315
      %508 = vst.msk [vmem:[#allocation3 + $0x194] sm:$0xf] %vm453, %v316
      %509 = vst.msk [vmem:[#allocation3 + $0x1bc] sm:$0xf] %vm453, %v317
      %510 = vst.msk [vmem:[#allocation3 + $0x10] sm:$0xf] %vm453, %v307
      %511 = vst.msk [vmem:[#allocation3 + $0x38] sm:$0xf] %vm453, %v308
      %512 = vst.msk [vmem:[#allocation3 + $0x60] sm:$0xf] %vm453, %v309
      %513 = vst.msk [vmem:[#allocation3 + $0x88] sm:$0xf] %vm453, %v310
      %514 = vst.msk [vmem:[#allocation3 + $0xb0] sm:$0xf] %vm453, %v311
      %515 = vst.msk [vmem:[#allocation3 + $0xd8] sm:$0xf] %vm453, %v312
      %516 = vst.msk [vmem:[#allocation3 + $0x100] sm:$0xf] %vm453, %v313
      %517 = vst.msk [vmem:[#allocation3 + $0x128] sm:$0xf] %vm453, %v314
      %518 = vst.msk [vmem:[#allocation3 + $0x150] sm:$0xf] %vm453, %v315
      %519 = vst.msk [vmem:[#allocation3 + $0x178] sm:$0xf] %vm453, %v316
      %520 = vst.msk [vmem:[#allocation3 + $0x1a0] sm:$0xf] %vm453, %v317
      %521 = vst.msk [vmem:[#allocation3 + $0x1c8] sm:$0xf] %vm453, %v318
      %522 = vst.msk [vmem:[#allocation3 + $0x1c] sm:$0xf] %vm453, %v308
      %523 = vst.msk [vmem:[#allocation3 + $0x44] sm:$0xf] %vm453, %v309
      %524 = vst.msk [vmem:[#allocation3 + $0x6c] sm:$0xf] %vm453, %v310
      %525 = vst.msk [vmem:[#allocation3 + $0x94] sm:$0xf] %vm453, %v311
      %526 = vst.msk [vmem:[#allocation3 + $0xbc] sm:$0xf] %vm453, %v312
      %527 = vst.msk [vmem:[#allocation3 + $0xe4] sm:$0xf] %vm453, %v313
      %528 = vst.msk [vmem:[#allocation3 + $0x10c] sm:$0xf] %vm453, %v314
      %529 = vst.msk [vmem:[#allocation3 + $0x134] sm:$0xf] %vm453, %v315
      %530 = vst.msk [vmem:[#allocation3 + $0x15c] sm:$0xf] %vm453, %v316
      %531 = vst.msk [vmem:[#allocation3 + $0x184] sm:$0xf] %vm453, %v317
      %532 = vst.msk [vmem:[#allocation3 + $0x1ac] sm:$0xf] %vm453, %v318
      %533 = vst.msk [vmem:[#allocation3 + $0x1d4] sm:$0xf] %vm453, %v319
      %534 = vrot.lane.b32.xlu0 %v391, 127
      %v535 = vpop.permute.xlu0 %534
      %536 = vrot.lane.b32.xlu0 %v392, 127
      %v537 = vpop.permute.xlu0 %536
      %538 = vrot.lane.b32.xlu0 %v393, 127
      %v539 = vpop.permute.xlu0 %538
      %540 = vrot.lane.b32.xlu0 %v394, 127
      %v541 = vpop.permute.xlu0 %540
      %542 = vrot.lane.b32.xlu0 %v395, 127
      %v543 = vpop.permute.xlu0 %542
      %544 = vrot.lane.b32.xlu0 %v396, 127
      %v545 = vpop.permute.xlu0 %544
      %546 = vrot.lane.b32.xlu0 %v397, 127
      %v547 = vpop.permute.xlu0 %546
      %548 = vrot.lane.b32.xlu0 %v398, 127
      %v549 = vpop.permute.xlu0 %548
      %550 = vrot.lane.b32.xlu0 %v399, 127
      %v551 = vpop.permute.xlu0 %550
      %552 = vrot.lane.b32.xlu0 %v400, 127
      %v553 = vpop.permute.xlu0 %552
      %554 = vrot.lane.b32.xlu0 %v401, 127
      %v555 = vpop.permute.xlu0 %554
      %556 = vrot.lane.b32.xlu0 %v402, 127
      %v557 = vpop.permute.xlu0 %556
      %570 = vst.msk [vmem:[#allocation3 + $0x8] sm:$0xf] %vm453, %v535
      %571 = vst.msk [vmem:[#allocation3 + $0x30] sm:$0xf] %vm453, %v537
      %572 = vst.msk [vmem:[#allocation3 + $0x58] sm:$0xf] %vm453, %v539
      %573 = vst.msk [vmem:[#allocation3 + $0x80] sm:$0xf] %vm453, %v541
      %574 = vst.msk [vmem:[#allocation3 + $0xa8] sm:$0xf] %vm453, %v543
      %575 = vst.msk [vmem:[#allocation3 + $0xd0] sm:$0xf] %vm453, %v545
      %576 = vst.msk [vmem:[#allocation3 + $0xf8] sm:$0xf] %vm453, %v547
      %577 = vst.msk [vmem:[#allocation3 + $0x120] sm:$0xf] %vm453, %v549
      %578 = vst.msk [vmem:[#allocation3 + $0x148] sm:$0xf] %vm453, %v551
      %579 = vst.msk [vmem:[#allocation3 + $0x170] sm:$0xf] %vm453, %v553
      %580 = vst.msk [vmem:[#allocation3 + $0x198] sm:$0xf] %vm453, %v555
      %581 = vst.msk [vmem:[#allocation3 + $0x1c0] sm:$0xf] %vm453, %v557
      %582 = vrot.lane.b32.xlu0 %v403, 127
      %v583 = vpop.permute.xlu0 %582
      %585 = vst.msk [vmem:[#allocation3 + $0x14] sm:$0xf] %vm453, %v537
      %586 = vst.msk [vmem:[#allocation3 + $0x3c] sm:$0xf] %vm453, %v539
      %587 = vst.msk [vmem:[#allocation3 + $0x64] sm:$0xf] %vm453, %v541
      %588 = vst.msk [vmem:[#allocation3 + $0x8c] sm:$0xf] %vm453, %v543
      %589 = vst.msk [vmem:[#allocation3 + $0xb4] sm:$0xf] %vm453, %v545
      %590 = vst.msk [vmem:[#allocation3 + $0xdc] sm:$0xf] %vm453, %v547
      %591 = vst.msk [vmem:[#allocation3 + $0x104] sm:$0xf] %vm453, %v549
      %592 = vst.msk [vmem:[#allocation3 + $0x12c] sm:$0xf] %vm453, %v551
      %593 = vst.msk [vmem:[#allocation3 + $0x154] sm:$0xf] %vm453, %v553
      %594 = vst.msk [vmem:[#allocation3 + $0x17c] sm:$0xf] %vm453, %v555
      %595 = vst.msk [vmem:[#allocation3 + $0x1a4] sm:$0xf] %vm453, %v557
      %596 = vst.msk [vmem:[#allocation3 + $0x1cc] sm:$0xf] %vm453, %v583
      %597 = vrot.lane.b32.xlu0 %v404, 127
      %v598 = vpop.permute.xlu0 %597
      %600 = vst.msk [vmem:[#allocation3 + $0x20] sm:$0xf] %vm453, %v539
      %601 = vst.msk [vmem:[#allocation3 + $0x48] sm:$0xf] %vm453, %v541
      %602 = vst.msk [vmem:[#allocation3 + $0x70] sm:$0xf] %vm453, %v543
      %603 = vst.msk [vmem:[#allocation3 + $0x98] sm:$0xf] %vm453, %v545
      %604 = vst.msk [vmem:[#allocation3 + $0xc0] sm:$0xf] %vm453, %v547
      %605 = vst.msk [vmem:[#allocation3 + $0xe8] sm:$0xf] %vm453, %v549
      %606 = vst.msk [vmem:[#allocation3 + $0x110] sm:$0xf] %vm453, %v551
      %607 = vst.msk [vmem:[#allocation3 + $0x138] sm:$0xf] %vm453, %v553
      %608 = vst.msk [vmem:[#allocation3 + $0x160] sm:$0xf] %vm453, %v555
      %609 = vst.msk [vmem:[#allocation3 + $0x188] sm:$0xf] %vm453, %v557
      %610 = vst.msk [vmem:[#allocation3 + $0x1b0] sm:$0xf] %vm453, %v583
      %611 = vst.msk [vmem:[#allocation3 + $0x1d8] sm:$0xf] %vm453, %v598
      %v612 = vld [vmem:[%s1] sm:$0xff]
      %v613 = vld [vmem:[#allocation3] sm:$0xff]
      %v614 = vld [vmem:[#allocation3 + $0x8] sm:$0xff]
      %v615 = vld [vmem:[#allocation3 + $0x10] sm:$0xff]
      %v616 = vld [vmem:[#allocation3 + $0x18] sm:$0xff]
      %v617 = vld [vmem:[#allocation3 + $0x20] sm:$0xf]
      %v618 = vld [vmem:[#allocation3 + $0x28] sm:$0xff]
      %v619 = vld [vmem:[#allocation3 + $0x30] sm:$0xff]
      %v620 = vld [vmem:[#allocation3 + $0x38] sm:$0xff]
      %v621 = vld [vmem:[#allocation3 + $0x40] sm:$0xff]
      %v622 = vld [vmem:[#allocation3 + $0x48] sm:$0xf]
      %v623 = vld [vmem:[#allocation3 + $0x50] sm:$0xff]
      %v624 = vld [vmem:[#allocation3 + $0x58] sm:$0xff]
      %v625 = vld [vmem:[#allocation3 + $0x60] sm:$0xff]
      %v626 = vld [vmem:[#allocation3 + $0x68] sm:$0xff]
      %v627 = vld [vmem:[#allocation3 + $0x70] sm:$0xf]
      %v628 = vld [vmem:[#allocation3 + $0x78] sm:$0xff]
      %v629 = vld [vmem:[#allocation3 + $0x80] sm:$0xff]
      %v630 = vld [vmem:[#allocation3 + $0x88] sm:$0xff]
      %v631 = vld [vmem:[#allocation3 + $0x90] sm:$0xff]
      %v632 = vld [vmem:[#allocation3 + $0x98] sm:$0xf]
      %v633 = vld [vmem:[#allocation3 + $0xa0] sm:$0xff]
      %v634 = vld [vmem:[#allocation3 + $0xa8] sm:$0xff]
      %v635 = vld [vmem:[#allocation3 + $0xb0] sm:$0xff]
      %v636 = vld [vmem:[#allocation3 + $0xb8] sm:$0xff]
      %v637 = vld [vmem:[#allocation3 + $0xc0] sm:$0xf]
      %v638 = vld [vmem:[#allocation3 + $0xc8] sm:$0xff]
      %v639 = vld [vmem:[#allocation3 + $0xd0] sm:$0xff]
      %v640 = vld [vmem:[#allocation3 + $0xd8] sm:$0xff]
      %v641 = vld [vmem:[#allocation3 + $0xe0] sm:$0xff]
      %v642 = vld [vmem:[#allocation3 + $0xe8] sm:$0xf]
      %v643 = vld [vmem:[#allocation3 + $0xf0] sm:$0xff]
      %v644 = vld [vmem:[#allocation3 + $0xf8] sm:$0xff]
      %v645 = vld [vmem:[#allocation3 + $0x100] sm:$0xff]
      %v646 = vld [vmem:[#allocation3 + $0x108] sm:$0xff]
      %v647 = vld [vmem:[#allocation3 + $0x110] sm:$0xf]
      %v648 = vld [vmem:[#allocation3 + $0x118] sm:$0xff]
      %v649 = vld [vmem:[#allocation3 + $0x120] sm:$0xff]
      %v650 = vld [vmem:[#allocation3 + $0x128] sm:$0xff]
      %v651 = vld [vmem:[#allocation3 + $0x130] sm:$0xff]
      %v652 = vld [vmem:[#allocation3 + $0x138] sm:$0xf]
      %v653 = vld [vmem:[#allocation3 + $0x140] sm:$0xff]
      %v654 = vld [vmem:[#allocation3 + $0x148] sm:$0xff]
      %v655 = vld [vmem:[#allocation3 + $0x150] sm:$0xff]
      %v656 = vld [vmem:[#allocation3 + $0x158] sm:$0xff]
      %v657 = vld [vmem:[#allocation3 + $0x160] sm:$0xf]
      %v658 = vld [vmem:[#allocation3 + $0x168] sm:$0xff]
      %v659 = vld [vmem:[#allocation3 + $0x170] sm:$0xff]
      %v660 = vld [vmem:[#allocation3 + $0x178] sm:$0xff]
      %v661 = vld [vmem:[#allocation3 + $0x180] sm:$0xff]
      %v662 = vld [vmem:[#allocation3 + $0x188] sm:$0xf]
      %v663 = vld [vmem:[#allocation3 + $0x190] sm:$0xff]
      %v664 = vld [vmem:[#allocation3 + $0x198] sm:$0xff]
      %v665 = vld [vmem:[#allocation3 + $0x1a0] sm:$0xff]
      %v666 = vld [vmem:[#allocation3 + $0x1a8] sm:$0xff]
      %v667 = vld [vmem:[#allocation3 + $0x1b0] sm:$0xf]
      %v668 = vld [vmem:[#allocation3 + $0x1b8] sm:$0xff]
      %v669 = vld [vmem:[#allocation3 + $0x1c0] sm:$0xff]
      %v670 = vld [vmem:[#allocation3 + $0x1c8] sm:$0xff]
      %v671 = vld [vmem:[#allocation3 + $0x1d0] sm:$0xff]
      %v672 = vld [vmem:[#allocation3 + $0x1d8] sm:$0xf]
      %v673 = vld [vmem:[%s2] sm:$0xff]
      %675 = vset.pattern.permute.xlu0 0
      %676 = vperm.xlu0 %675, %v673
      %v677 = vpop.permute.xlu0 %676
      %vm679 = vcmask 293888
      %v681 = vsel %vm679, %v612, 0
      %vm683 = vcmask 1043456
      %v685 = vsel %vm683, %v617, 0
      %687 = vmatpush.msra.mxu0 0.0
      %688 = vmatpush.msra.mxu0 0.0
      %689 = vmatpush.msra.mxu0 0.0
      %690 = vmatpush.msra.mxu0 0.0
      %691 = vmatpush.msra.mxu0 0.0
      %692 = vmatpush.msra.mxu0 0.0
      %693 = vmatpush.msra.mxu0 0.0
      %694 = vmatpush.msra.mxu0 0.0
      %695 = vmatpush.msra.mxu0 0.0
      %696 = vmatpush.msra.mxu0 0.0
      %697 = vmatpush.msra.mxu0 0.0
      %698 = vmatpush.msra.mxu0 %v685
      %699 = vmatpush.msra.mxu0 %v616
      %700 = vmatpush.msra.mxu0 %v615
      %701 = vmatpush.msra.mxu0 %v614
      %702 = vmatpush.msra.mxu0 %v613
      %703 = vmatmul.f32.gmra.mxu0 %v681
      %v704 = vpop.f32.mrf.mxu0
      %v705 = vadd.f32 %v677, %v704
      %706 = vdwg.mxu0
      %v708 = vsel %vm683, %v622, 0
      %710 = vmatpush.msra.mxu0 0.0
      %711 = vmatpush.msra.mxu0 0.0
      %712 = vmatpush.msra.mxu0 0.0
      %713 = vmatpush.msra.mxu0 0.0
      %714 = vmatpush.msra.mxu0 0.0
      %715 = vmatpush.msra.mxu0 0.0
      %716 = vmatpush.msra.mxu0 0.0
      %717 = vmatpush.msra.mxu0 0.0
      %718 = vmatpush.msra.mxu0 0.0
      %719 = vmatpush.msra.mxu0 0.0
      %720 = vmatpush.msra.mxu0 0.0
      %721 = vmatpush.msra.mxu0 %v708
      %722 = vmatpush.msra.mxu0 %v621
      %723 = vmatpush.msra.mxu0 %v620
      %724 = vmatpush.msra.mxu0 %v619
      %725 = vmatpush.msra.mxu0 %v618
      %726 = vmatmul.f32.gmra.mxu0 %v681
      %v727 = vpop.f32.mrf.mxu0
      %v728 = vadd.f32 %v677, %v727
      %729 = vdwg.mxu0
      %v731 = vsel %vm683, %v627, 0
      %733 = vmatpush.msra.mxu0 0.0
      %734 = vmatpush.msra.mxu0 0.0
      %735 = vmatpush.msra.mxu0 0.0
      %736 = vmatpush.msra.mxu0 0.0
      %737 = vmatpush.msra.mxu0 0.0
      %738 = vmatpush.msra.mxu0 0.0
      %739 = vmatpush.msra.mxu0 0.0
      %740 = vmatpush.msra.mxu0 0.0
      %741 = vmatpush.msra.mxu0 0.0
      %742 = vmatpush.msra.mxu0 0.0
      %743 = vmatpush.msra.mxu0 0.0
      %744 = vmatpush.msra.mxu0 %v731
      %745 = vmatpush.msra.mxu0 %v626
      %746 = vmatpush.msra.mxu0 %v625
      %747 = vmatpush.msra.mxu0 %v624
      %748 = vmatpush.msra.mxu0 %v623
      %749 = vmatmul.f32.gmra.mxu0 %v681
      %v750 = vpop.f32.mrf.mxu0
      %v751 = vadd.f32 %v677, %v750
      %752 = vdwg.mxu0
      %v754 = vsel %vm683, %v632, 0
      %756 = vmatpush.msra.mxu0 0.0
      %757 = vmatpush.msra.mxu0 0.0
      %758 = vmatpush.msra.mxu0 0.0
      %759 = vmatpush.msra.mxu0 0.0
      %760 = vmatpush.msra.mxu0 0.0
      %761 = vmatpush.msra.mxu0 0.0
      %762 = vmatpush.msra.mxu0 0.0
      %763 = vmatpush.msra.mxu0 0.0
      %764 = vmatpush.msra.mxu0 0.0
      %765 = vmatpush.msra.mxu0 0.0
      %766 = vmatpush.msra.mxu0 0.0
      %767 = vmatpush.msra.mxu0 %v754
      %768 = vmatpush.msra.mxu0 %v631
      %769 = vmatpush.msra.mxu0 %v630
      %770 = vmatpush.msra.mxu0 %v629
      %771 = vmatpush.msra.mxu0 %v628
      %772 = vmatmul.f32.gmra.mxu0 %v681
      %v773 = vpop.f32.mrf.mxu0
      %v774 = vadd.f32 %v677, %v773
      %775 = vdwg.mxu0
      %v777 = vsel %vm683, %v637, 0
      %779 = vmatpush.msra.mxu0 0.0
      %780 = vmatpush.msra.mxu0 0.0
      %781 = vmatpush.msra.mxu0 0.0
      %782 = vmatpush.msra.mxu0 0.0
      %783 = vmatpush.msra.mxu0 0.0
      %784 = vmatpush.msra.mxu0 0.0
      %785 = vmatpush.msra.mxu0 0.0
      %786 = vmatpush.msra.mxu0 0.0
      %787 = vmatpush.msra.mxu0 0.0
      %788 = vmatpush.msra.mxu0 0.0
      %789 = vmatpush.msra.mxu0 0.0
      %790 = vmatpush.msra.mxu0 %v777
      %791 = vmatpush.msra.mxu0 %v636
      %792 = vmatpush.msra.mxu0 %v635
      %793 = vmatpush.msra.mxu0 %v634
      %794 = vmatpush.msra.mxu0 %v633
      %795 = vmatmul.f32.gmra.mxu0 %v681
      %v796 = vpop.f32.mrf.mxu0
      %v797 = vadd.f32 %v677, %v796
      %798 = vdwg.mxu0
      %v800 = vsel %vm683, %v642, 0
      %802 = vmatpush.msra.mxu0 0.0
      %803 = vmatpush.msra.mxu0 0.0
      %804 = vmatpush.msra.mxu0 0.0
      %805 = vmatpush.msra.mxu0 0.0
      %806 = vmatpush.msra.mxu0 0.0
      %807 = vmatpush.msra.mxu0 0.0
      %808 = vmatpush.msra.mxu0 0.0
      %809 = vmatpush.msra.mxu0 0.0
      %810 = vmatpush.msra.mxu0 0.0
      %811 = vmatpush.msra.mxu0 0.0
      %812 = vmatpush.msra.mxu0 0.0
      %813 = vmatpush.msra.mxu0 %v800
      %814 = vmatpush.msra.mxu0 %v641
      %815 = vmatpush.msra.mxu0 %v640
      %816 = vmatpush.msra.mxu0 %v639
      %817 = vmatpush.msra.mxu0 %v638
      %818 = vmatmul.f32.gmra.mxu0 %v681
      %v819 = vpop.f32.mrf.mxu0
      %v820 = vadd.f32 %v677, %v819
      %821 = vdwg.mxu0
      %v823 = vsel %vm683, %v647, 0
      %825 = vmatpush.msra.mxu0 0.0
      %826 = vmatpush.msra.mxu0 0.0
      %827 = vmatpush.msra.mxu0 0.0
      %828 = vmatpush.msra.mxu0 0.0
      %829 = vmatpush.msra.mxu0 0.0
      %830 = vmatpush.msra.mxu0 0.0
      %831 = vmatpush.msra.mxu0 0.0
      %832 = vmatpush.msra.mxu0 0.0
      %833 = vmatpush.msra.mxu0 0.0
      %834 = vmatpush.msra.mxu0 0.0
      %835 = vmatpush.msra.mxu0 0.0
      %836 = vmatpush.msra.mxu0 %v823
      %837 = vmatpush.msra.mxu0 %v646
      %838 = vmatpush.msra.mxu0 %v645
      %839 = vmatpush.msra.mxu0 %v644
      %840 = vmatpush.msra.mxu0 %v643
      %841 = vmatmul.f32.gmra.mxu0 %v681
      %v842 = vpop.f32.mrf.mxu0
      %v843 = vadd.f32 %v677, %v842
      %844 = vdwg.mxu0
      %v846 = vsel %vm683, %v652, 0
      %848 = vmatpush.msra.mxu0 0.0
      %849 = vmatpush.msra.mxu0 0.0
      %850 = vmatpush.msra.mxu0 0.0
      %851 = vmatpush.msra.mxu0 0.0
      %852 = vmatpush.msra.mxu0 0.0
      %853 = vmatpush.msra.mxu0 0.0
      %854 = vmatpush.msra.mxu0 0.0
      %855 = vmatpush.msra.mxu0 0.0
      %856 = vmatpush.msra.mxu0 0.0
      %857 = vmatpush.msra.mxu0 0.0
      %858 = vmatpush.msra.mxu0 0.0
      %859 = vmatpush.msra.mxu0 %v846
      %860 = vmatpush.msra.mxu0 %v651
      %861 = vmatpush.msra.mxu0 %v650
      %862 = vmatpush.msra.mxu0 %v649
      %863 = vmatpush.msra.mxu0 %v648
      %864 = vmatmul.f32.gmra.mxu0 %v681
      %v865 = vpop.f32.mrf.mxu0
      %v866 = vadd.f32 %v677, %v865
      %867 = vdwg.mxu0
      %v869 = vsel %vm683, %v657, 0
      %871 = vmatpush.msra.mxu0 0.0
      %872 = vmatpush.msra.mxu0 0.0
      %873 = vmatpush.msra.mxu0 0.0
      %874 = vmatpush.msra.mxu0 0.0
      %875 = vmatpush.msra.mxu0 0.0
      %876 = vmatpush.msra.mxu0 0.0
      %877 = vmatpush.msra.mxu0 0.0
      %878 = vmatpush.msra.mxu0 0.0
      %879 = vmatpush.msra.mxu0 0.0
      %880 = vmatpush.msra.mxu0 0.0
      %881 = vmatpush.msra.mxu0 0.0
      %882 = vmatpush.msra.mxu0 %v869
      %883 = vmatpush.msra.mxu0 %v656
      %884 = vmatpush.msra.mxu0 %v655
      %885 = vmatpush.msra.mxu0 %v654
      %886 = vmatpush.msra.mxu0 %v653
      %887 = vmatmul.f32.gmra.mxu0 %v681
      %v888 = vpop.f32.mrf.mxu0
      %v889 = vadd.f32 %v677, %v888
      %890 = vdwg.mxu0
      %v892 = vsel %vm683, %v662, 0
      %894 = vmatpush.msra.mxu0 0.0
      %895 = vmatpush.msra.mxu0 0.0
      %896 = vmatpush.msra.mxu0 0.0
      %897 = vmatpush.msra.mxu0 0.0
      %898 = vmatpush.msra.mxu0 0.0
      %899 = vmatpush.msra.mxu0 0.0
      %900 = vmatpush.msra.mxu0 0.0
      %901 = vmatpush.msra.mxu0 0.0
      %902 = vmatpush.msra.mxu0 0.0
      %903 = vmatpush.msra.mxu0 0.0
      %904 = vmatpush.msra.mxu0 0.0
      %905 = vmatpush.msra.mxu0 %v892
      %906 = vmatpush.msra.mxu0 %v661
      %907 = vmatpush.msra.mxu0 %v660
      %908 = vmatpush.msra.mxu0 %v659
      %909 = vmatpush.msra.mxu0 %v658
      %910 = vmatmul.f32.gmra.mxu0 %v681
      %v911 = vpop.f32.mrf.mxu0
      %v912 = vadd.f32 %v677, %v911
      %913 = vdwg.mxu0
      %v915 = vsel %vm683, %v667, 0
      %917 = vmatpush.msra.mxu0 0.0
      %918 = vmatpush.msra.mxu0 0.0
      %919 = vmatpush.msra.mxu0 0.0
      %920 = vmatpush.msra.mxu0 0.0
      %921 = vmatpush.msra.mxu0 0.0
      %922 = vmatpush.msra.mxu0 0.0
      %923 = vmatpush.msra.mxu0 0.0
      %924 = vmatpush.msra.mxu0 0.0
      %925 = vmatpush.msra.mxu0 0.0
      %926 = vmatpush.msra.mxu0 0.0
      %927 = vmatpush.msra.mxu0 0.0
      %928 = vmatpush.msra.mxu0 %v915
      %929 = vmatpush.msra.mxu0 %v666
      %930 = vmatpush.msra.mxu0 %v665
      %931 = vmatpush.msra.mxu0 %v664
      %932 = vmatpush.msra.mxu0 %v663
      %933 = vmatmul.f32.gmra.mxu0 %v681
      %v934 = vpop.f32.mrf.mxu0
      %v935 = vadd.f32 %v677, %v934
      %936 = vdwg.mxu0
      %v938 = vsel %vm683, %v672, 0
      %940 = vmatpush.msra.mxu0 0.0
      %941 = vmatpush.msra.mxu0 0.0
      %942 = vmatpush.msra.mxu0 0.0
      %943 = vmatpush.msra.mxu0 0.0
      %944 = vmatpush.msra.mxu0 0.0
      %945 = vmatpush.msra.mxu0 0.0
      %946 = vmatpush.msra.mxu0 0.0
      %947 = vmatpush.msra.mxu0 0.0
      %948 = vmatpush.msra.mxu0 0.0
      %949 = vmatpush.msra.mxu0 0.0
      %950 = vmatpush.msra.mxu0 0.0
      %951 = vmatpush.msra.mxu0 %v938
      %952 = vmatpush.msra.mxu0 %v671
      %953 = vmatpush.msra.mxu0 %v670
      %954 = vmatpush.msra.mxu0 %v669
      %955 = vmatpush.msra.mxu0 %v668
      %956 = vmatmul.f32.gmra.mxu0 %v681
      %v957 = vpop.f32.mrf.mxu0
      %v958 = vadd.f32 %v677, %v957
      %959 = vdwg.mxu0
      %v960 = vxor.u32 %v705, 2147483648
      %v961 = vxor.u32 %v728, 2147483648
      %v962 = vxor.u32 %v751, 2147483648
      %v963 = vxor.u32 %v774, 2147483648
      %v964 = vxor.u32 %v797, 2147483648
      %v965 = vxor.u32 %v820, 2147483648
      %v966 = vxor.u32 %v843, 2147483648
      %v967 = vxor.u32 %v866, 2147483648
      %v968 = vxor.u32 %v889, 2147483648
      %v969 = vxor.u32 %v912, 2147483648
      %v970 = vxor.u32 %v935, 2147483648
      %v971 = vxor.u32 %v958, 2147483648
      %v972 = vmul.f32 %v960, 1.442695
      %v973 = vpow.pop %v972
      %v974 = vmul.f32 %v961, 1.442695
      %v975 = vpow.pop %v974
      %v976 = vmul.f32 %v962, 1.442695
      %v977 = vpow.pop %v976
      %v978 = vmul.f32 %v963, 1.442695
      %v979 = vpow.pop %v978
      %v980 = vmul.f32 %v964, 1.442695
      %v981 = vpow.pop %v980
      %v982 = vmul.f32 %v965, 1.442695
      %v983 = vpow.pop %v982
      %v984 = vmul.f32 %v966, 1.442695
      %v985 = vpow.pop %v984
      %v986 = vmul.f32 %v967, 1.442695
      %v987 = vpow.pop %v986
      %v988 = vmul.f32 %v968, 1.442695
      %v989 = vpow.pop %v988
      %v990 = vmul.f32 %v969, 1.442695
      %v991 = vpow.pop %v990
      %v992 = vmul.f32 %v970, 1.442695
      %v993 = vpow.pop %v992
      %v994 = vmul.f32 %v971, 1.442695
      %v995 = vpow.pop %v994
      %v996 = vadd.f32 %v973, 1.0
      %v997 = vadd.f32 %v975, 1.0
      %v998 = vadd.f32 %v977, 1.0
      %v999 = vadd.f32 %v979, 1.0
      %v1000 = vadd.f32 %v981, 1.0
      %v1001 = vadd.f32 %v983, 1.0
      %v1002 = vadd.f32 %v985, 1.0
      %v1003 = vadd.f32 %v987, 1.0
      %v1004 = vadd.f32 %v989, 1.0
      %v1005 = vadd.f32 %v991, 1.0
      %v1006 = vadd.f32 %v993, 1.0
      %v1007 = vadd.f32 %v995, 1.0
      %v1008 = vrcp.pop %v996
      %v1009 = vmul.f32 %v996, %v1008
      %v1010 = vsub.f32 1.0, %v1009
      %v1011 = vmul.f32 %v1008, %v1010
      %v1012 = vadd.f32 %v1008, %v1011
      %vm1013 = vweird.f32 %v996
      %vm1014 = vweird.f32 %v1008
      %vm1015 = vmor %vm1013, %vm1014
      %v1016 = vsel %vm1015, %v1008, %v1012
      %v1017 = vand.u32 2147483647, %v996
      %vm1018 = vcmp.eq.f32.partialorder %v1017, 8.507059e+37
      %v1019 = vand.u32 %v996, 2147483648
      %v1020 = vor.u32 1.1754944e-38, %v1019
      %v1021 = vsel %vm1018, %v1020, %v1016
      %v1022 = vmul.f32 1.0, %v1021
      %v1023 = vrcp.pop %v997
      %v1024 = vmul.f32 %v997, %v1023
      %v1025 = vsub.f32 1.0, %v1024
      %v1026 = vmul.f32 %v1023, %v1025
      %v1027 = vadd.f32 %v1023, %v1026
      %vm1028 = vweird.f32 %v997
      %vm1029 = vweird.f32 %v1023
      %vm1030 = vmor %vm1028, %vm1029
      %v1031 = vsel %vm1030, %v1023, %v1027
      %v1032 = vand.u32 2147483647, %v997
      %vm1033 = vcmp.eq.f32.partialorder %v1032, 8.507059e+37
      %v1034 = vand.u32 %v997, 2147483648
      %v1035 = vor.u32 1.1754944e-38, %v1034
      %v1036 = vsel %vm1033, %v1035, %v1031
      %v1037 = vmul.f32 1.0, %v1036
      %v1038 = vrcp.pop %v998
      %v1039 = vmul.f32 %v998, %v1038
      %v1040 = vsub.f32 1.0, %v1039
      %v1041 = vmul.f32 %v1038, %v1040
      %v1042 = vadd.f32 %v1038, %v1041
      %vm1043 = vweird.f32 %v998
      %vm1044 = vweird.f32 %v1038
      %vm1045 = vmor %vm1043, %vm1044
      %v1046 = vsel %vm1045, %v1038, %v1042
      %v1047 = vand.u32 2147483647, %v998
      %vm1048 = vcmp.eq.f32.partialorder %v1047, 8.507059e+37
      %v1049 = vand.u32 %v998, 2147483648
      %v1050 = vor.u32 1.1754944e-38, %v1049
      %v1051 = vsel %vm1048, %v1050, %v1046
      %v1052 = vmul.f32 1.0, %v1051
      %v1053 = vrcp.pop %v999
      %v1054 = vmul.f32 %v999, %v1053
      %v1055 = vsub.f32 1.0, %v1054
      %v1056 = vmul.f32 %v1053, %v1055
      %v1057 = vadd.f32 %v1053, %v1056
      %vm1058 = vweird.f32 %v999
      %vm1059 = vweird.f32 %v1053
      %vm1060 = vmor %vm1058, %vm1059
      %v1061 = vsel %vm1060, %v1053, %v1057
      %v1062 = vand.u32 2147483647, %v999
      %vm1063 = vcmp.eq.f32.partialorder %v1062, 8.507059e+37
      %v1064 = vand.u32 %v999, 2147483648
      %v1065 = vor.u32 1.1754944e-38, %v1064
      %v1066 = vsel %vm1063, %v1065, %v1061
      %v1067 = vmul.f32 1.0, %v1066
      %v1068 = vrcp.pop %v1000
      %v1069 = vmul.f32 %v1000, %v1068
      %v1070 = vsub.f32 1.0, %v1069
      %v1071 = vmul.f32 %v1068, %v1070
      %v1072 = vadd.f32 %v1068, %v1071
      %vm1073 = vweird.f32 %v1000
      %vm1074 = vweird.f32 %v1068
      %vm1075 = vmor %vm1073, %vm1074
      %v1076 = vsel %vm1075, %v1068, %v1072
      %v1077 = vand.u32 2147483647, %v1000
      %vm1078 = vcmp.eq.f32.partialorder %v1077, 8.507059e+37
      %v1079 = vand.u32 %v1000, 2147483648
      %v1080 = vor.u32 1.1754944e-38, %v1079
      %v1081 = vsel %vm1078, %v1080, %v1076
      %v1082 = vmul.f32 1.0, %v1081
      %v1083 = vrcp.pop %v1001
      %v1084 = vmul.f32 %v1001, %v1083
      %v1085 = vsub.f32 1.0, %v1084
      %v1086 = vmul.f32 %v1083, %v1085
      %v1087 = vadd.f32 %v1083, %v1086
      %vm1088 = vweird.f32 %v1001
      %vm1089 = vweird.f32 %v1083
      %vm1090 = vmor %vm1088, %vm1089
      %v1091 = vsel %vm1090, %v1083, %v1087
      %v1092 = vand.u32 2147483647, %v1001
      %vm1093 = vcmp.eq.f32.partialorder %v1092, 8.507059e+37
      %v1094 = vand.u32 %v1001, 2147483648
      %v1095 = vor.u32 1.1754944e-38, %v1094
      %v1096 = vsel %vm1093, %v1095, %v1091
      %v1097 = vmul.f32 1.0, %v1096
      %v1098 = vrcp.pop %v1002
      %v1099 = vmul.f32 %v1002, %v1098
      %v1100 = vsub.f32 1.0, %v1099
      %v1101 = vmul.f32 %v1098, %v1100
      %v1102 = vadd.f32 %v1098, %v1101
      %vm1103 = vweird.f32 %v1002
      %vm1104 = vweird.f32 %v1098
      %vm1105 = vmor %vm1103, %vm1104
      %v1106 = vsel %vm1105, %v1098, %v1102
      %v1107 = vand.u32 2147483647, %v1002
      %vm1108 = vcmp.eq.f32.partialorder %v1107, 8.507059e+37
      %v1109 = vand.u32 %v1002, 2147483648
      %v1110 = vor.u32 1.1754944e-38, %v1109
      %v1111 = vsel %vm1108, %v1110, %v1106
      %v1112 = vmul.f32 1.0, %v1111
      %v1113 = vrcp.pop %v1003
      %v1114 = vmul.f32 %v1003, %v1113
      %v1115 = vsub.f32 1.0, %v1114
      %v1116 = vmul.f32 %v1113, %v1115
      %v1117 = vadd.f32 %v1113, %v1116
      %vm1118 = vweird.f32 %v1003
      %vm1119 = vweird.f32 %v1113
      %vm1120 = vmor %vm1118, %vm1119
      %v1121 = vsel %vm1120, %v1113, %v1117
      %v1122 = vand.u32 2147483647, %v1003
      %vm1123 = vcmp.eq.f32.partialorder %v1122, 8.507059e+37
      %v1124 = vand.u32 %v1003, 2147483648
      %v1125 = vor.u32 1.1754944e-38, %v1124
      %v1126 = vsel %vm1123, %v1125, %v1121
      %v1127 = vmul.f32 1.0, %v1126
      %v1128 = vrcp.pop %v1004
      %v1129 = vmul.f32 %v1004, %v1128
      %v1130 = vsub.f32 1.0, %v1129
      %v1131 = vmul.f32 %v1128, %v1130
      %v1132 = vadd.f32 %v1128, %v1131
      %vm1133 = vweird.f32 %v1004
      %vm1134 = vweird.f32 %v1128
      %vm1135 = vmor %vm1133, %vm1134
      %v1136 = vsel %vm1135, %v1128, %v1132
      %v1137 = vand.u32 2147483647, %v1004
      %vm1138 = vcmp.eq.f32.partialorder %v1137, 8.507059e+37
      %v1139 = vand.u32 %v1004, 2147483648
      %v1140 = vor.u32 1.1754944e-38, %v1139
      %v1141 = vsel %vm1138, %v1140, %v1136
      %v1142 = vmul.f32 1.0, %v1141
      %v1143 = vrcp.pop %v1005
      %v1144 = vmul.f32 %v1005, %v1143
      %v1145 = vsub.f32 1.0, %v1144
      %v1146 = vmul.f32 %v1143, %v1145
      %v1147 = vadd.f32 %v1143, %v1146
      %vm1148 = vweird.f32 %v1005
      %vm1149 = vweird.f32 %v1143
      %vm1150 = vmor %vm1148, %vm1149
      %v1151 = vsel %vm1150, %v1143, %v1147
      %v1152 = vand.u32 2147483647, %v1005
      %vm1153 = vcmp.eq.f32.partialorder %v1152, 8.507059e+37
      %v1154 = vand.u32 %v1005, 2147483648
      %v1155 = vor.u32 1.1754944e-38, %v1154
      %v1156 = vsel %vm1153, %v1155, %v1151
      %v1157 = vmul.f32 1.0, %v1156
      %v1158 = vrcp.pop %v1006
      %v1159 = vmul.f32 %v1006, %v1158
      %v1160 = vsub.f32 1.0, %v1159
      %v1161 = vmul.f32 %v1158, %v1160
      %v1162 = vadd.f32 %v1158, %v1161
      %vm1163 = vweird.f32 %v1006
      %vm1164 = vweird.f32 %v1158
      %vm1165 = vmor %vm1163, %vm1164
      %v1166 = vsel %vm1165, %v1158, %v1162
      %v1167 = vand.u32 2147483647, %v1006
      %vm1168 = vcmp.eq.f32.partialorder %v1167, 8.507059e+37
      %v1169 = vand.u32 %v1006, 2147483648
      %v1170 = vor.u32 1.1754944e-38, %v1169
      %v1171 = vsel %vm1168, %v1170, %v1166
      %v1172 = vmul.f32 1.0, %v1171
      %v1173 = vrcp.pop %v1007
      %v1174 = vmul.f32 %v1007, %v1173
      %v1175 = vsub.f32 1.0, %v1174
      %v1176 = vmul.f32 %v1173, %v1175
      %v1177 = vadd.f32 %v1173, %v1176
      %vm1178 = vweird.f32 %v1007
      %vm1179 = vweird.f32 %v1173
      %vm1180 = vmor %vm1178, %vm1179
      %v1181 = vsel %vm1180, %v1173, %v1177
      %v1182 = vand.u32 2147483647, %v1007
      %vm1183 = vcmp.eq.f32.partialorder %v1182, 8.507059e+37
      %v1184 = vand.u32 %v1007, 2147483648
      %v1185 = vor.u32 1.1754944e-38, %v1184
      %v1186 = vsel %vm1183, %v1185, %v1181
      %v1187 = vmul.f32 1.0, %v1186
      %v1188 = vmul.f32 %v705, %v1022
      %v1189 = vmul.f32 %v728, %v1037
      %v1190 = vmul.f32 %v751, %v1052
      %v1191 = vmul.f32 %v774, %v1067
      %v1192 = vmul.f32 %v797, %v1082
      %v1193 = vmul.f32 %v820, %v1097
      %v1194 = vmul.f32 %v843, %v1112
      %v1195 = vmul.f32 %v866, %v1127
      %v1196 = vmul.f32 %v889, %v1142
      %v1197 = vmul.f32 %v912, %v1157
      %v1198 = vmul.f32 %v935, %v1172
      %v1199 = vmul.f32 %v958, %v1187
      %v1200 = vlaneseq
      %v1201 = vand.u32 %v1200, 127
      %vm1202 = vcmp.ge.s32.totalorder %v1201, 1
      %vm1203 = vcmp.le.s32.totalorder %v1201, 12
      %vm1204 = vmand %vm1202, %vm1203
      %v1205 = vsel %vm1204, %v1188, 0.0
      %v1206 = vsel %vm1204, %v1189, 0.0
      %v1207 = vsel %vm1204, %v1190, 0.0
      %v1208 = vsel %vm1204, %v1191, 0.0
      %v1209 = vsel %vm1204, %v1192, 0.0
      %v1210 = vsel %vm1204, %v1193, 0.0
      %v1211 = vsel %vm1204, %v1194, 0.0
      %v1212 = vsel %vm1204, %v1195, 0.0
      %v1213 = vsel %vm1204, %v1196, 0.0
      %v1214 = vsel %vm1204, %v1197, 0.0
      %v1215 = vsel %vm1204, %v1198, 0.0
      %v1216 = vsel %vm1204, %v1199, 0.0
      %vm1217 = vcmask 113664
      %1218 = vst.msk [vmem:[#allocation2] sm:$0xff] %vm1217, 0.0
      %s1219 = scalar_lea.vmem [#allocation2], 104
      %1220 = vst.msk [vmem:[%s1219] sm:$0xff] %vm1217, 0.0
      %s1221 = scalar_lea.vmem [#allocation2], 8
      %1222 = vst.msk [vmem:[%s1221] sm:$0xff] %vm1217, %v1205
      %1223 = vst.msk [vmem:[%s1221 + $0x8] sm:$0xff] %vm1217, %v1206
      %1224 = vst.msk [vmem:[%s1221 + $0x10] sm:$0xff] %vm1217, %v1207
      %1225 = vst.msk [vmem:[%s1221 + $0x18] sm:$0xff] %vm1217, %v1208
      %1226 = vst.msk [vmem:[%s1221 + $0x20] sm:$0xff] %vm1217, %v1209
      %1227 = vst.msk [vmem:[%s1221 + $0x28] sm:$0xff] %vm1217, %v1210
      %1228 = vst.msk [vmem:[%s1221 + $0x30] sm:$0xff] %vm1217, %v1211
      %1229 = vst.msk [vmem:[%s1221 + $0x38] sm:$0xff] %vm1217, %v1212
      %1230 = vst.msk [vmem:[%s1221 + $0x40] sm:$0xff] %vm1217, %v1213
      %1231 = vst.msk [vmem:[%s1221 + $0x48] sm:$0xff] %vm1217, %v1214
      %1232 = vst.msk [vmem:[%s1221 + $0x50] sm:$0xff] %vm1217, %v1215
      %1233 = vst.msk [vmem:[%s1221 + $0x58] sm:$0xff] %vm1217, %v1216
      %v1234 = vld [vmem:[#allocation2] sm:$0xff]
      %v1235 = vld [vmem:[#allocation2 + $0x8] sm:$0xff]
      %v1236 = vld [vmem:[#allocation2 + $0x10] sm:$0xff]
      %v1237 = vld [vmem:[#allocation2 + $0x18] sm:$0xff]
      %v1238 = vld [vmem:[#allocation2 + $0x20] sm:$0xff]
      %v1239 = vld [vmem:[#allocation2 + $0x28] sm:$0xff]
      %v1240 = vld [vmem:[#allocation2 + $0x30] sm:$0xff]
      %v1241 = vld [vmem:[#allocation2 + $0x38] sm:$0xff]
      %v1242 = vld [vmem:[#allocation2 + $0x40] sm:$0xff]
      %v1243 = vld [vmem:[#allocation2 + $0x48] sm:$0xff]
      %v1244 = vld [vmem:[#allocation2 + $0x50] sm:$0xff]
      %v1245 = vld [vmem:[#allocation2 + $0x58] sm:$0xff]
      %v1246 = vld [vmem:[#allocation2 + $0x60] sm:$0xff]
      %v1247 = vld [vmem:[#allocation2 + $0x68] sm:$0xff]
      %1248 = vrot.lane.b32.xlu0 %v1234, 14
      %v1249 = vpop.permute.xlu0 %1248
      %v1250 = vsel %vm320, %v1249, %v1234
      %1251 = vrot.lane.b32.xlu0 %v1235, 14
      %v1252 = vpop.permute.xlu0 %1251
      %v1253 = vsel %vm320, %v1252, %v1235
      %1254 = vrot.lane.b32.xlu0 %v1236, 14
      %v1255 = vpop.permute.xlu0 %1254
      %v1256 = vsel %vm320, %v1255, %v1236
      %1257 = vrot.lane.b32.xlu0 %v1237, 14
      %v1258 = vpop.permute.xlu0 %1257
      %v1259 = vsel %vm320, %v1258, %v1237
      %1260 = vrot.lane.b32.xlu0 %v1238, 14
      %v1261 = vpop.permute.xlu0 %1260
      %v1262 = vsel %vm320, %v1261, %v1238
      %1263 = vrot.lane.b32.xlu0 %v1239, 14
      %v1264 = vpop.permute.xlu0 %1263
      %v1265 = vsel %vm320, %v1264, %v1239
      %1266 = vrot.lane.b32.xlu0 %v1240, 14
      %v1267 = vpop.permute.xlu0 %1266
      %v1268 = vsel %vm320, %v1267, %v1240
      %1269 = vrot.lane.b32.xlu0 %v1241, 14
      %v1270 = vpop.permute.xlu0 %1269
      %v1271 = vsel %vm320, %v1270, %v1241
      %1272 = vrot.lane.b32.xlu0 %v1242, 14
      %v1273 = vpop.permute.xlu0 %1272
      %v1274 = vsel %vm320, %v1273, %v1242
      %1275 = vrot.lane.b32.xlu0 %v1243, 14
      %v1276 = vpop.permute.xlu0 %1275
      %v1277 = vsel %vm320, %v1276, %v1243
      %1278 = vrot.lane.b32.xlu0 %v1244, 14
      %v1279 = vpop.permute.xlu0 %1278
      %v1280 = vsel %vm320, %v1279, %v1244
      %1281 = vrot.lane.b32.xlu0 %v1245, 14
      %v1282 = vpop.permute.xlu0 %1281
      %v1283 = vsel %vm320, %v1282, %v1245
      %1284 = vrot.lane.b32.xlu0 %v1246, 14
      %v1285 = vpop.permute.xlu0 %1284
      %v1286 = vsel %vm320, %v1285, %v1246
      %1287 = vrot.lane.b32.xlu0 %v1247, 14
      %v1288 = vpop.permute.xlu0 %1287
      %v1289 = vsel %vm320, %v1288, %v1247
      %1290 = vrot.lane.b32.xlu0 %v1250, 14
      %v1291 = vpop.permute.xlu0 %1290
      %1292 = vrot.lane.b32.xlu0 %v1253, 14
      %v1293 = vpop.permute.xlu0 %1292
      %1294 = vrot.lane.b32.xlu0 %v1256, 14
      %v1295 = vpop.permute.xlu0 %1294
      %1296 = vrot.lane.b32.xlu0 %v1259, 14
      %v1297 = vpop.permute.xlu0 %1296
      %1298 = vrot.lane.b32.xlu0 %v1262, 14
      %v1299 = vpop.permute.xlu0 %1298
      %1300 = vrot.lane.b32.xlu0 %v1265, 14
      %v1301 = vpop.permute.xlu0 %1300
      %1302 = vrot.lane.b32.xlu0 %v1268, 14
      %v1303 = vpop.permute.xlu0 %1302
      %1304 = vrot.lane.b32.xlu0 %v1271, 14
      %v1305 = vpop.permute.xlu0 %1304
      %1306 = vrot.lane.b32.xlu0 %v1274, 14
      %v1307 = vpop.permute.xlu0 %1306
      %1308 = vrot.lane.b32.xlu0 %v1277, 14
      %v1309 = vpop.permute.xlu0 %1308
      %1310 = vrot.lane.b32.xlu0 %v1280, 14
      %v1311 = vpop.permute.xlu0 %1310
      %1312 = vrot.lane.b32.xlu0 %v1283, 14
      %v1313 = vpop.permute.xlu0 %1312
      %1314 = vrot.lane.b32.xlu0 %v1286, 14
      %v1315 = vpop.permute.xlu0 %1314
      %1316 = vrot.lane.b32.xlu0 %v1289, 14
      %v1317 = vpop.permute.xlu0 %1316
      %v1318 = vsel %vm320, %v1291, %v1234
      %v1319 = vsel %vm320, %v1293, %v1235
      %v1320 = vsel %vm320, %v1295, %v1236
      %v1321 = vsel %vm320, %v1297, %v1237
      %v1322 = vsel %vm320, %v1299, %v1238
      %v1323 = vsel %vm320, %v1301, %v1239
      %v1324 = vsel %vm320, %v1303, %v1240
      %v1325 = vsel %vm320, %v1305, %v1241
      %v1326 = vsel %vm320, %v1307, %v1242
      %v1327 = vsel %vm320, %v1309, %v1243
      %v1328 = vsel %vm320, %v1311, %v1244
      %v1329 = vsel %vm320, %v1313, %v1245
      %v1330 = vsel %vm320, %v1315, %v1246
      %v1331 = vsel %vm320, %v1317, %v1247
      %1344 = vrot.lane.b32.xlu0 %v1318, 115
      %v1345 = vpop.permute.xlu0 %1344
      %1346 = vrot.lane.b32.xlu0 %v1319, 115
      %v1347 = vpop.permute.xlu0 %1346
      %1348 = vrot.lane.b32.xlu0 %v1320, 115
      %v1349 = vpop.permute.xlu0 %1348
      %1350 = vrot.lane.b32.xlu0 %v1321, 115
      %v1351 = vpop.permute.xlu0 %1350
      %1352 = vrot.lane.b32.xlu0 %v1322, 115
      %v1353 = vpop.permute.xlu0 %1352
      %1354 = vrot.lane.b32.xlu0 %v1323, 115
      %v1355 = vpop.permute.xlu0 %1354
      %1356 = vrot.lane.b32.xlu0 %v1324, 115
      %v1357 = vpop.permute.xlu0 %1356
      %1358 = vrot.lane.b32.xlu0 %v1325, 115
      %v1359 = vpop.permute.xlu0 %1358
      %1360 = vrot.lane.b32.xlu0 %v1326, 115
      %v1361 = vpop.permute.xlu0 %1360
      %1362 = vrot.lane.b32.xlu0 %v1327, 115
      %v1363 = vpop.permute.xlu0 %1362
      %1364 = vrot.lane.b32.xlu0 %v1328, 115
      %v1365 = vpop.permute.xlu0 %1364
      %1366 = vrot.lane.b32.xlu0 %v1329, 115
      %v1367 = vpop.permute.xlu0 %1366
      %1380 = vst.msk [vmem:[#allocation4] sm:$0xff] %vm1217, %v1345
      %1381 = vst.msk [vmem:[#allocation4 + $0x48] sm:$0xff] %vm1217, %v1347
      %1382 = vst.msk [vmem:[#allocation4 + $0x90] sm:$0xff] %vm1217, %v1349
      %1383 = vst.msk [vmem:[#allocation4 + $0xd8] sm:$0xff] %vm1217, %v1351
      %1384 = vst.msk [vmem:[#allocation4 + $0x120] sm:$0xff] %vm1217, %v1353
      %1385 = vst.msk [vmem:[#allocation4 + $0x168] sm:$0xff] %vm1217, %v1355
      %1386 = vst.msk [vmem:[#allocation4 + $0x1b0] sm:$0xff] %vm1217, %v1357
      %1387 = vst.msk [vmem:[#allocation4 + $0x1f8] sm:$0xff] %vm1217, %v1359
      %1388 = vst.msk [vmem:[#allocation4 + $0x240] sm:$0xff] %vm1217, %v1361
      %1389 = vst.msk [vmem:[#allocation4 + $0x288] sm:$0xff] %vm1217, %v1363
      %1390 = vst.msk [vmem:[#allocation4 + $0x2d0] sm:$0xff] %vm1217, %v1365
      %1391 = vst.msk [vmem:[#allocation4 + $0x318] sm:$0xff] %vm1217, %v1367
      %1393 = vrot.lane.b32.xlu0 %v1330, 115
      %v1394 = vpop.permute.xlu0 %1393
      %1396 = vst.msk [vmem:[#allocation4 + $0x18] sm:$0xff] %vm1217, %v1347
      %1397 = vst.msk [vmem:[#allocation4 + $0x60] sm:$0xff] %vm1217, %v1349
      %1398 = vst.msk [vmem:[#allocation4 + $0xa8] sm:$0xff] %vm1217, %v1351
      %1399 = vst.msk [vmem:[#allocation4 + $0xf0] sm:$0xff] %vm1217, %v1353
      %1400 = vst.msk [vmem:[#allocation4 + $0x138] sm:$0xff] %vm1217, %v1355
      %1401 = vst.msk [vmem:[#allocation4 + $0x180] sm:$0xff] %vm1217, %v1357
      %1402 = vst.msk [vmem:[#allocation4 + $0x1c8] sm:$0xff] %vm1217, %v1359
      %1403 = vst.msk [vmem:[#allocation4 + $0x210] sm:$0xff] %vm1217, %v1361
      %1404 = vst.msk [vmem:[#allocation4 + $0x258] sm:$0xff] %vm1217, %v1363
      %1405 = vst.msk [vmem:[#allocation4 + $0x2a0] sm:$0xff] %vm1217, %v1365
      %1406 = vst.msk [vmem:[#allocation4 + $0x2e8] sm:$0xff] %vm1217, %v1367
      %1407 = vst.msk [vmem:[#allocation4 + $0x330] sm:$0xff] %vm1217, %v1394
      %1409 = vrot.lane.b32.xlu0 %v1331, 115
      %v1410 = vpop.permute.xlu0 %1409
      %1412 = vst.msk [vmem:[#allocation4 + $0x30] sm:$0xff] %vm1217, %v1349
      %1413 = vst.msk [vmem:[#allocation4 + $0x78] sm:$0xff] %vm1217, %v1351
      %1414 = vst.msk [vmem:[#allocation4 + $0xc0] sm:$0xff] %vm1217, %v1353
      %1415 = vst.msk [vmem:[#allocation4 + $0x108] sm:$0xff] %vm1217, %v1355
      %1416 = vst.msk [vmem:[#allocation4 + $0x150] sm:$0xff] %vm1217, %v1357
      %1417 = vst.msk [vmem:[#allocation4 + $0x198] sm:$0xff] %vm1217, %v1359
      %1418 = vst.msk [vmem:[#allocation4 + $0x1e0] sm:$0xff] %vm1217, %v1361
      %1419 = vst.msk [vmem:[#allocation4 + $0x228] sm:$0xff] %vm1217, %v1363
      %1420 = vst.msk [vmem:[#allocation4 + $0x270] sm:$0xff] %vm1217, %v1365
      %1421 = vst.msk [vmem:[#allocation4 + $0x2b8] sm:$0xff] %vm1217, %v1367
      %1422 = vst.msk [vmem:[#allocation4 + $0x300] sm:$0xff] %vm1217, %v1394
      %1423 = vst.msk [vmem:[#allocation4 + $0x348] sm:$0xff] %vm1217, %v1410
      %1424 = vst.msk [vmem:[#allocation4 + $0x8] sm:$0xff] %vm1217, %v1234
      %1425 = vst.msk [vmem:[#allocation4 + $0x50] sm:$0xff] %vm1217, %v1235
      %1426 = vst.msk [vmem:[#allocation4 + $0x98] sm:$0xff] %vm1217, %v1236
      %1427 = vst.msk [vmem:[#allocation4 + $0xe0] sm:$0xff] %vm1217, %v1237
      %1428 = vst.msk [vmem:[#allocation4 + $0x128] sm:$0xff] %vm1217, %v1238
      %1429 = vst.msk [vmem:[#allocation4 + $0x170] sm:$0xff] %vm1217, %v1239
      %1430 = vst.msk [vmem:[#allocation4 + $0x1b8] sm:$0xff] %vm1217, %v1240
      %1431 = vst.msk [vmem:[#allocation4 + $0x200] sm:$0xff] %vm1217, %v1241
      %1432 = vst.msk [vmem:[#allocation4 + $0x248] sm:$0xff] %vm1217, %v1242
      %1433 = vst.msk [vmem:[#allocation4 + $0x290] sm:$0xff] %vm1217, %v1243
      %1434 = vst.msk [vmem:[#allocation4 + $0x2d8] sm:$0xff] %vm1217, %v1244
      %1435 = vst.msk [vmem:[#allocation4 + $0x320] sm:$0xff] %vm1217, %v1245
      %1436 = vst.msk [vmem:[#allocation4 + $0x20] sm:$0xff] %vm1217, %v1235
      %1437 = vst.msk [vmem:[#allocation4 + $0x68] sm:$0xff] %vm1217, %v1236
      %1438 = vst.msk [vmem:[#allocation4 + $0xb0] sm:$0xff] %vm1217, %v1237
      %1439 = vst.msk [vmem:[#allocation4 + $0xf8] sm:$0xff] %vm1217, %v1238
      %1440 = vst.msk [vmem:[#allocation4 + $0x140] sm:$0xff] %vm1217, %v1239
      %1441 = vst.msk [vmem:[#allocation4 + $0x188] sm:$0xff] %vm1217, %v1240
      %1442 = vst.msk [vmem:[#allocation4 + $0x1d0] sm:$0xff] %vm1217, %v1241
      %1443 = vst.msk [vmem:[#allocation4 + $0x218] sm:$0xff] %vm1217, %v1242
      %1444 = vst.msk [vmem:[#allocation4 + $0x260] sm:$0xff] %vm1217, %v1243
      %1445 = vst.msk [vmem:[#allocation4 + $0x2a8] sm:$0xff] %vm1217, %v1244
      %1446 = vst.msk [vmem:[#allocation4 + $0x2f0] sm:$0xff] %vm1217, %v1245
      %1447 = vst.msk [vmem:[#allocation4 + $0x338] sm:$0xff] %vm1217, %v1246
      %1448 = vst.msk [vmem:[#allocation4 + $0x38] sm:$0xff] %vm1217, %v1236
      %1449 = vst.msk [vmem:[#allocation4 + $0x80] sm:$0xff] %vm1217, %v1237
      %1450 = vst.msk [vmem:[#allocation4 + $0xc8] sm:$0xff] %vm1217, %v1238
      %1451 = vst.msk [vmem:[#allocation4 + $0x110] sm:$0xff] %vm1217, %v1239
      %1452 = vst.msk [vmem:[#allocation4 + $0x158] sm:$0xff] %vm1217, %v1240
      %1453 = vst.msk [vmem:[#allocation4 + $0x1a0] sm:$0xff] %vm1217, %v1241
      %1454 = vst.msk [vmem:[#allocation4 + $0x1e8] sm:$0xff] %vm1217, %v1242
      %1455 = vst.msk [vmem:[#allocation4 + $0x230] sm:$0xff] %vm1217, %v1243
      %1456 = vst.msk [vmem:[#allocation4 + $0x278] sm:$0xff] %vm1217, %v1244
      %1457 = vst.msk [vmem:[#allocation4 + $0x2c0] sm:$0xff] %vm1217, %v1245
      %1458 = vst.msk [vmem:[#allocation4 + $0x308] sm:$0xff] %vm1217, %v1246
      %1459 = vst.msk [vmem:[#allocation4 + $0x350] sm:$0xff] %vm1217, %v1247
      %1460 = vrot.lane.b32.xlu0 %v1318, 127
      %v1461 = vpop.permute.xlu0 %1460
      %1462 = vrot.lane.b32.xlu0 %v1319, 127
      %v1463 = vpop.permute.xlu0 %1462
      %1464 = vrot.lane.b32.xlu0 %v1320, 127
      %v1465 = vpop.permute.xlu0 %1464
      %1466 = vrot.lane.b32.xlu0 %v1321, 127
      %v1467 = vpop.permute.xlu0 %1466
      %1468 = vrot.lane.b32.xlu0 %v1322, 127
      %v1469 = vpop.permute.xlu0 %1468
      %1470 = vrot.lane.b32.xlu0 %v1323, 127
      %v1471 = vpop.permute.xlu0 %1470
      %1472 = vrot.lane.b32.xlu0 %v1324, 127
      %v1473 = vpop.permute.xlu0 %1472
      %1474 = vrot.lane.b32.xlu0 %v1325, 127
      %v1475 = vpop.permute.xlu0 %1474
      %1476 = vrot.lane.b32.xlu0 %v1326, 127
      %v1477 = vpop.permute.xlu0 %1476
      %1478 = vrot.lane.b32.xlu0 %v1327, 127
      %v1479 = vpop.permute.xlu0 %1478
      %1480 = vrot.lane.b32.xlu0 %v1328, 127
      %v1481 = vpop.permute.xlu0 %1480
      %1482 = vrot.lane.b32.xlu0 %v1329, 127
      %v1483 = vpop.permute.xlu0 %1482
      %1496 = vst.msk [vmem:[#allocation4 + $0x10] sm:$0xff] %vm1217, %v1461
      %1497 = vst.msk [vmem:[#allocation4 + $0x58] sm:$0xff] %vm1217, %v1463
      %1498 = vst.msk [vmem:[#allocation4 + $0xa0] sm:$0xff] %vm1217, %v1465
      %1499 = vst.msk [vmem:[#allocation4 + $0xe8] sm:$0xff] %vm1217, %v1467
      %1500 = vst.msk [vmem:[#allocation4 + $0x130] sm:$0xff] %vm1217, %v1469
      %1501 = vst.msk [vmem:[#allocation4 + $0x178] sm:$0xff] %vm1217, %v1471
      %1502 = vst.msk [vmem:[#allocation4 + $0x1c0] sm:$0xff] %vm1217, %v1473
      %1503 = vst.msk [vmem:[#allocation4 + $0x208] sm:$0xff] %vm1217, %v1475
      %1504 = vst.msk [vmem:[#allocation4 + $0x250] sm:$0xff] %vm1217, %v1477
      %1505 = vst.msk [vmem:[#allocation4 + $0x298] sm:$0xff] %vm1217, %v1479
      %1506 = vst.msk [vmem:[#allocation4 + $0x2e0] sm:$0xff] %vm1217, %v1481
      %1507 = vst.msk [vmem:[#allocation4 + $0x328] sm:$0xff] %vm1217, %v1483
      %1508 = vrot.lane.b32.xlu0 %v1330, 127
      %v1509 = vpop.permute.xlu0 %1508
      %1511 = vst.msk [vmem:[#allocation4 + $0x28] sm:$0xff] %vm1217, %v1463
      %1512 = vst.msk [vmem:[#allocation4 + $0x70] sm:$0xff] %vm1217, %v1465
      %1513 = vst.msk [vmem:[#allocation4 + $0xb8] sm:$0xff] %vm1217, %v1467
      %1514 = vst.msk [vmem:[#allocation4 + $0x100] sm:$0xff] %vm1217, %v1469
      %1515 = vst.msk [vmem:[#allocation4 + $0x148] sm:$0xff] %vm1217, %v1471
      %1516 = vst.msk [vmem:[#allocation4 + $0x190] sm:$0xff] %vm1217, %v1473
      %1517 = vst.msk [vmem:[#allocation4 + $0x1d8] sm:$0xff] %vm1217, %v1475
      %1518 = vst.msk [vmem:[#allocation4 + $0x220] sm:$0xff] %vm1217, %v1477
      %1519 = vst.msk [vmem:[#allocation4 + $0x268] sm:$0xff] %vm1217, %v1479
      %1520 = vst.msk [vmem:[#allocation4 + $0x2b0] sm:$0xff] %vm1217, %v1481
      %1521 = vst.msk [vmem:[#allocation4 + $0x2f8] sm:$0xff] %vm1217, %v1483
      %1522 = vst.msk [vmem:[#allocation4 + $0x340] sm:$0xff] %vm1217, %v1509
      %1523 = vrot.lane.b32.xlu0 %v1331, 127
      %v1524 = vpop.permute.xlu0 %1523
      %1526 = vst.msk [vmem:[#allocation4 + $0x40] sm:$0xff] %vm1217, %v1465
      %1527 = vst.msk [vmem:[#allocation4 + $0x88] sm:$0xff] %vm1217, %v1467
      %1528 = vst.msk [vmem:[#allocation4 + $0xd0] sm:$0xff] %vm1217, %v1469
      %1529 = vst.msk [vmem:[#allocation4 + $0x118] sm:$0xff] %vm1217, %v1471
      %1530 = vst.msk [vmem:[#allocation4 + $0x160] sm:$0xff] %vm1217, %v1473
      %1531 = vst.msk [vmem:[#allocation4 + $0x1a8] sm:$0xff] %vm1217, %v1475
      %1532 = vst.msk [vmem:[#allocation4 + $0x1f0] sm:$0xff] %vm1217, %v1477
      %1533 = vst.msk [vmem:[#allocation4 + $0x238] sm:$0xff] %vm1217, %v1479
      %1534 = vst.msk [vmem:[#allocation4 + $0x280] sm:$0xff] %vm1217, %v1481
      %1535 = vst.msk [vmem:[#allocation4 + $0x2c8] sm:$0xff] %vm1217, %v1483
      %1536 = vst.msk [vmem:[#allocation4 + $0x310] sm:$0xff] %vm1217, %v1509
      %1537 = vst.msk [vmem:[#allocation4 + $0x358] sm:$0xff] %vm1217, %v1524
      %v1538 = vld [vmem:[%s3] sm:$0xff]
      %v1539 = vld [vmem:[#allocation4] sm:$0xff]
      %v1540 = vld [vmem:[#allocation4 + $0x8] sm:$0xff]
      %v1541 = vld [vmem:[#allocation4 + $0x10] sm:$0xff]
      %v1542 = vld [vmem:[#allocation4 + $0x18] sm:$0xff]
      %v1543 = vld [vmem:[#allocation4 + $0x20] sm:$0xff]
      %v1544 = vld [vmem:[#allocation4 + $0x28] sm:$0xff]
      %v1545 = vld [vmem:[#allocation4 + $0x30] sm:$0xff]
      %v1546 = vld [vmem:[#allocation4 + $0x38] sm:$0xff]
      %v1547 = vld [vmem:[#allocation4 + $0x40] sm:$0xff]
      %v1548 = vld [vmem:[#allocation4 + $0x48] sm:$0xff]
      %v1549 = vld [vmem:[#allocation4 + $0x50] sm:$0xff]
      %v1550 = vld [vmem:[#allocation4 + $0x58] sm:$0xff]
      %v1551 = vld [vmem:[#allocation4 + $0x60] sm:$0xff]
      %v1552 = vld [vmem:[#allocation4 + $0x68] sm:$0xff]
      %v1553 = vld [vmem:[#allocation4 + $0x70] sm:$0xff]
      %v1554 = vld [vmem:[#allocation4 + $0x78] sm:$0xff]
      %v1555 = vld [vmem:[#allocation4 + $0x80] sm:$0xff]
      %v1556 = vld [vmem:[#allocation4 + $0x88] sm:$0xff]
      %v1557 = vld [vmem:[#allocation4 + $0x90] sm:$0xff]
      %v1558 = vld [vmem:[#allocation4 + $0x98] sm:$0xff]
      %v1559 = vld [vmem:[#allocation4 + $0xa0] sm:$0xff]
      %v1560 = vld [vmem:[#allocation4 + $0xa8] sm:$0xff]
      %v1561 = vld [vmem:[#allocation4 + $0xb0] sm:$0xff]
      %v1562 = vld [vmem:[#allocation4 + $0xb8] sm:$0xff]
      %v1563 = vld [vmem:[#allocation4 + $0xc0] sm:$0xff]
      %v1564 = vld [vmem:[#allocation4 + $0xc8] sm:$0xff]
      %v1565 = vld [vmem:[#allocation4 + $0xd0] sm:$0xff]
      %v1566 = vld [vmem:[#allocation4 + $0xd8] sm:$0xff]
      %v1567 = vld [vmem:[#allocation4 + $0xe0] sm:$0xff]
      %v1568 = vld [vmem:[#allocation4 + $0xe8] sm:$0xff]
      %v1569 = vld [vmem:[#allocation4 + $0xf0] sm:$0xff]
      %v1570 = vld [vmem:[#allocation4 + $0xf8] sm:$0xff]
      %v1571 = vld [vmem:[#allocation4 + $0x100] sm:$0xff]
      %v1572 = vld [vmem:[#allocation4 + $0x108] sm:$0xff]
      %v1573 = vld [vmem:[#allocation4 + $0x110] sm:$0xff]
      %v1574 = vld [vmem:[#allocation4 + $0x118] sm:$0xff]
      %v1575 = vld [vmem:[#allocation4 + $0x120] sm:$0xff]
      %v1576 = vld [vmem:[#allocation4 + $0x128] sm:$0xff]
      %v1577 = vld [vmem:[#allocation4 + $0x130] sm:$0xff]
      %v1578 = vld [vmem:[#allocation4 + $0x138] sm:$0xff]
      %v1579 = vld [vmem:[#allocation4 + $0x140] sm:$0xff]
      %v1580 = vld [vmem:[#allocation4 + $0x148] sm:$0xff]
      %v1581 = vld [vmem:[#allocation4 + $0x150] sm:$0xff]
      %v1582 = vld [vmem:[#allocation4 + $0x158] sm:$0xff]
      %v1583 = vld [vmem:[#allocation4 + $0x160] sm:$0xff]
      %v1584 = vld [vmem:[#allocation4 + $0x168] sm:$0xff]
      %v1585 = vld [vmem:[#allocation4 + $0x170] sm:$0xff]
      %v1586 = vld [vmem:[#allocation4 + $0x178] sm:$0xff]
      %v1587 = vld [vmem:[#allocation4 + $0x180] sm:$0xff]
      %v1588 = vld [vmem:[#allocation4 + $0x188] sm:$0xff]
      %v1589 = vld [vmem:[#allocation4 + $0x190] sm:$0xff]
      %v1590 = vld [vmem:[#allocation4 + $0x198] sm:$0xff]
      %v1591 = vld [vmem:[#allocation4 + $0x1a0] sm:$0xff]
      %v1592 = vld [vmem:[#allocation4 + $0x1a8] sm:$0xff]
      %v1593 = vld [vmem:[#allocation4 + $0x1b0] sm:$0xff]
      %v1594 = vld [vmem:[#allocation4 + $0x1b8] sm:$0xff]
      %v1595 = vld [vmem:[#allocation4 + $0x1c0] sm:$0xff]
      %v1596 = vld [vmem:[#allocation4 + $0x1c8] sm:$0xff]
      %v1597 = vld [vmem:[#allocation4 + $0x1d0] sm:$0xff]
      %v1598 = vld [vmem:[#allocation4 + $0x1d8] sm:$0xff]
      %v1599 = vld [vmem:[#allocation4 + $0x1e0] sm:$0xff]
      %v1600 = vld [vmem:[#allocation4 + $0x1e8] sm:$0xff]
      %v1601 = vld [vmem:[#allocation4 + $0x1f0] sm:$0xff]
      %v1602 = vld [vmem:[#allocation4 + $0x1f8] sm:$0xff]
      %v1603 = vld [vmem:[#allocation4 + $0x200] sm:$0xff]
      %v1604 = vld [vmem:[#allocation4 + $0x208] sm:$0xff]
      %v1605 = vld [vmem:[#allocation4 + $0x210] sm:$0xff]
      %v1606 = vld [vmem:[#allocation4 + $0x218] sm:$0xff]
      %v1607 = vld [vmem:[#allocation4 + $0x220] sm:$0xff]
      %v1608 = vld [vmem:[#allocation4 + $0x228] sm:$0xff]
      %v1609 = vld [vmem:[#allocation4 + $0x230] sm:$0xff]
      %v1610 = vld [vmem:[#allocation4 + $0x238] sm:$0xff]
      %v1611 = vld [vmem:[#allocation4 + $0x240] sm:$0xff]
      %v1612 = vld [vmem:[#allocation4 + $0x248] sm:$0xff]
      %v1613 = vld [vmem:[#allocation4 + $0x250] sm:$0xff]
      %v1614 = vld [vmem:[#allocation4 + $0x258] sm:$0xff]
      %v1615 = vld [vmem:[#allocation4 + $0x260] sm:$0xff]
      %v1616 = vld [vmem:[#allocation4 + $0x268] sm:$0xff]
      %v1617 = vld [vmem:[#allocation4 + $0x270] sm:$0xff]
      %v1618 = vld [vmem:[#allocation4 + $0x278] sm:$0xff]
      %v1619 = vld [vmem:[#allocation4 + $0x280] sm:$0xff]
      %v1620 = vld [vmem:[#allocation4 + $0x288] sm:$0xff]
      %v1621 = vld [vmem:[#allocation4 + $0x290] sm:$0xff]
      %v1622 = vld [vmem:[#allocation4 + $0x298] sm:$0xff]
      %v1623 = vld [vmem:[#allocation4 + $0x2a0] sm:$0xff]
      %v1624 = vld [vmem:[#allocation4 + $0x2a8] sm:$0xff]
      %v1625 = vld [vmem:[#allocation4 + $0x2b0] sm:$0xff]
      %v1626 = vld [vmem:[#allocation4 + $0x2b8] sm:$0xff]
      %v1627 = vld [vmem:[#allocation4 + $0x2c0] sm:$0xff]
      %v1628 = vld [vmem:[#allocation4 + $0x2c8] sm:$0xff]
      %v1629 = vld [vmem:[#allocation4 + $0x2d0] sm:$0xff]
      %v1630 = vld [vmem:[#allocation4 + $0x2d8] sm:$0xff]
      %v1631 = vld [vmem:[#allocation4 + $0x2e0] sm:$0xff]
      %v1632 = vld [vmem:[#allocation4 + $0x2e8] sm:$0xff]
      %v1633 = vld [vmem:[#allocation4 + $0x2f0] sm:$0xff]
      %v1634 = vld [vmem:[#allocation4 + $0x2f8] sm:$0xff]
      %v1635 = vld [vmem:[#allocation4 + $0x300] sm:$0xff]
      %v1636 = vld [vmem:[#allocation4 + $0x308] sm:$0xff]
      %v1637 = vld [vmem:[#allocation4 + $0x310] sm:$0xff]
      %v1638 = vld [vmem:[#allocation4 + $0x318] sm:$0xff]
      %v1639 = vld [vmem:[#allocation4 + $0x320] sm:$0xff]
      %v1640 = vld [vmem:[#allocation4 + $0x328] sm:$0xff]
      %v1641 = vld [vmem:[#allocation4 + $0x330] sm:$0xff]
      %v1642 = vld [vmem:[#allocation4 + $0x338] sm:$0xff]
      %v1643 = vld [vmem:[#allocation4 + $0x340] sm:$0xff]
      %v1644 = vld [vmem:[#allocation4 + $0x348] sm:$0xff]
      %v1645 = vld [vmem:[#allocation4 + $0x350] sm:$0xff]
      %v1646 = vld [vmem:[#allocation4 + $0x358] sm:$0xff]
      %v1647 = vld [vmem:[%s4] sm:$0xff]
      %1649 = vset.pattern.permute.xlu0 0
      %1650 = vperm.xlu0 %1649, %v1647
      %v1651 = vpop.permute.xlu0 %1650
      %vm1653 = vcmask 588800
      %v1655 = vsel %vm1653, %v1538, 0
      %1657 = vmatpush.msra.mxu0 0.0
      %1658 = vmatpush.msra.mxu0 0.0
      %1659 = vmatpush.msra.mxu0 0.0
      %1660 = vmatpush.msra.mxu0 0.0
      %1661 = vmatpush.msra.mxu0 0.0
      %1662 = vmatpush.msra.mxu0 0.0
      %1663 = vmatpush.msra.mxu0 0.0
      %1664 = vmatpush.msra.mxu0 %v1547
      %1665 = vmatpush.msra.mxu0 %v1546
      %1666 = vmatpush.msra.mxu0 %v1545
      %1667 = vmatpush.msra.mxu0 %v1544
      %1668 = vmatpush.msra.mxu0 %v1543
      %1669 = vmatpush.msra.mxu0 %v1542
      %1670 = vmatpush.msra.mxu0 %v1541
      %1671 = vmatpush.msra.mxu0 %v1540
      %1672 = vmatpush.msra.mxu0 %v1539
      %1673 = vmatmul.f32.gmra.mxu0 %v1655
      %v1674 = vpop.f32.mrf.mxu0
      %v1675 = vadd.f32 %v1651, %v1674
      %1676 = vdwg.mxu0
      %1677 = vmatpush.msra.mxu0 0.0
      %1678 = vmatpush.msra.mxu0 0.0
      %1679 = vmatpush.msra.mxu0 0.0
      %1680 = vmatpush.msra.mxu0 0.0
      %1681 = vmatpush.msra.mxu0 0.0
      %1682 = vmatpush.msra.mxu0 0.0
      %1683 = vmatpush.msra.mxu0 0.0
      %1684 = vmatpush.msra.mxu0 %v1556
      %1685 = vmatpush.msra.mxu0 %v1555
      %1686 = vmatpush.msra.mxu0 %v1554
      %1687 = vmatpush.msra.mxu0 %v1553
      %1688 = vmatpush.msra.mxu0 %v1552
      %1689 = vmatpush.msra.mxu0 %v1551
      %1690 = vmatpush.msra.mxu0 %v1550
      %1691 = vmatpush.msra.mxu0 %v1549
      %1692 = vmatpush.msra.mxu0 %v1548
      %1693 = vmatmul.f32.gmra.mxu0 %v1655
      %v1694 = vpop.f32.mrf.mxu0
      %v1695 = vadd.f32 %v1651, %v1694
      %1696 = vdwg.mxu0
      %1697 = vmatpush.msra.mxu0 0.0
      %1698 = vmatpush.msra.mxu0 0.0
      %1699 = vmatpush.msra.mxu0 0.0
      %1700 = vmatpush.msra.mxu0 0.0
      %1701 = vmatpush.msra.mxu0 0.0
      %1702 = vmatpush.msra.mxu0 0.0
      %1703 = vmatpush.msra.mxu0 0.0
      %1704 = vmatpush.msra.mxu0 %v1565
      %1705 = vmatpush.msra.mxu0 %v1564
      %1706 = vmatpush.msra.mxu0 %v1563
      %1707 = vmatpush.msra.mxu0 %v1562
      %1708 = vmatpush.msra.mxu0 %v1561
      %1709 = vmatpush.msra.mxu0 %v1560
      %1710 = vmatpush.msra.mxu0 %v1559
      %1711 = vmatpush.msra.mxu0 %v1558
      %1712 = vmatpush.msra.mxu0 %v1557
      %1713 = vmatmul.f32.gmra.mxu0 %v1655
      %v1714 = vpop.f32.mrf.mxu0
      %v1715 = vadd.f32 %v1651, %v1714
      %1716 = vdwg.mxu0
      %1717 = vmatpush.msra.mxu0 0.0
      %1718 = vmatpush.msra.mxu0 0.0
      %1719 = vmatpush.msra.mxu0 0.0
      %1720 = vmatpush.msra.mxu0 0.0
      %1721 = vmatpush.msra.mxu0 0.0
      %1722 = vmatpush.msra.mxu0 0.0
      %1723 = vmatpush.msra.mxu0 0.0
      %1724 = vmatpush.msra.mxu0 %v1574
      %1725 = vmatpush.msra.mxu0 %v1573
      %1726 = vmatpush.msra.mxu0 %v1572
      %1727 = vmatpush.msra.mxu0 %v1571
      %1728 = vmatpush.msra.mxu0 %v1570
      %1729 = vmatpush.msra.mxu0 %v1569
      %1730 = vmatpush.msra.mxu0 %v1568
      %1731 = vmatpush.msra.mxu0 %v1567
      %1732 = vmatpush.msra.mxu0 %v1566
      %1733 = vmatmul.f32.gmra.mxu0 %v1655
      %v1734 = vpop.f32.mrf.mxu0
      %v1735 = vadd.f32 %v1651, %v1734
      %1736 = vdwg.mxu0
      %1737 = vmatpush.msra.mxu0 0.0
      %1738 = vmatpush.msra.mxu0 0.0
      %1739 = vmatpush.msra.mxu0 0.0
      %1740 = vmatpush.msra.mxu0 0.0
      %1741 = vmatpush.msra.mxu0 0.0
      %1742 = vmatpush.msra.mxu0 0.0
      %1743 = vmatpush.msra.mxu0 0.0
      %1744 = vmatpush.msra.mxu0 %v1583
      %1745 = vmatpush.msra.mxu0 %v1582
      %1746 = vmatpush.msra.mxu0 %v1581
      %1747 = vmatpush.msra.mxu0 %v1580
      %1748 = vmatpush.msra.mxu0 %v1579
      %1749 = vmatpush.msra.mxu0 %v1578
      %1750 = vmatpush.msra.mxu0 %v1577
      %1751 = vmatpush.msra.mxu0 %v1576
      %1752 = vmatpush.msra.mxu0 %v1575
      %1753 = vmatmul.f32.gmra.mxu0 %v1655
      %v1754 = vpop.f32.mrf.mxu0
      %v1755 = vadd.f32 %v1651, %v1754
      %1756 = vdwg.mxu0
      %1757 = vmatpush.msra.mxu0 0.0
      %1758 = vmatpush.msra.mxu0 0.0
      %1759 = vmatpush.msra.mxu0 0.0
      %1760 = vmatpush.msra.mxu0 0.0
      %1761 = vmatpush.msra.mxu0 0.0
      %1762 = vmatpush.msra.mxu0 0.0
      %1763 = vmatpush.msra.mxu0 0.0
      %1764 = vmatpush.msra.mxu0 %v1592
      %1765 = vmatpush.msra.mxu0 %v1591
      %1766 = vmatpush.msra.mxu0 %v1590
      %1767 = vmatpush.msra.mxu0 %v1589
      %1768 = vmatpush.msra.mxu0 %v1588
      %1769 = vmatpush.msra.mxu0 %v1587
      %1770 = vmatpush.msra.mxu0 %v1586
      %1771 = vmatpush.msra.mxu0 %v1585
      %1772 = vmatpush.msra.mxu0 %v1584
      %1773 = vmatmul.f32.gmra.mxu0 %v1655
      %v1774 = vpop.f32.mrf.mxu0
      %v1775 = vadd.f32 %v1651, %v1774
      %1776 = vdwg.mxu0
      %1777 = vmatpush.msra.mxu0 0.0
      %1778 = vmatpush.msra.mxu0 0.0
      %1779 = vmatpush.msra.mxu0 0.0
      %1780 = vmatpush.msra.mxu0 0.0
      %1781 = vmatpush.msra.mxu0 0.0
      %1782 = vmatpush.msra.mxu0 0.0
      %1783 = vmatpush.msra.mxu0 0.0
      %1784 = vmatpush.msra.mxu0 %v1601
      %1785 = vmatpush.msra.mxu0 %v1600
      %1786 = vmatpush.msra.mxu0 %v1599
      %1787 = vmatpush.msra.mxu0 %v1598
      %1788 = vmatpush.msra.mxu0 %v1597
      %1789 = vmatpush.msra.mxu0 %v1596
      %1790 = vmatpush.msra.mxu0 %v1595
      %1791 = vmatpush.msra.mxu0 %v1594
      %1792 = vmatpush.msra.mxu0 %v1593
      %1793 = vmatmul.f32.gmra.mxu0 %v1655
      %v1794 = vpop.f32.mrf.mxu0
      %v1795 = vadd.f32 %v1651, %v1794
      %1796 = vdwg.mxu0
      %1797 = vmatpush.msra.mxu0 0.0
      %1798 = vmatpush.msra.mxu0 0.0
      %1799 = vmatpush.msra.mxu0 0.0
      %1800 = vmatpush.msra.mxu0 0.0
      %1801 = vmatpush.msra.mxu0 0.0
      %1802 = vmatpush.msra.mxu0 0.0
      %1803 = vmatpush.msra.mxu0 0.0
      %1804 = vmatpush.msra.mxu0 %v1610
      %1805 = vmatpush.msra.mxu0 %v1609
      %1806 = vmatpush.msra.mxu0 %v1608
      %1807 = vmatpush.msra.mxu0 %v1607
      %1808 = vmatpush.msra.mxu0 %v1606
      %1809 = vmatpush.msra.mxu0 %v1605
      %1810 = vmatpush.msra.mxu0 %v1604
      %1811 = vmatpush.msra.mxu0 %v1603
      %1812 = vmatpush.msra.mxu0 %v1602
      %1813 = vmatmul.f32.gmra.mxu0 %v1655
      %v1814 = vpop.f32.mrf.mxu0
      %v1815 = vadd.f32 %v1651, %v1814
      %1816 = vdwg.mxu0
      %1817 = vmatpush.msra.mxu0 0.0
      %1818 = vmatpush.msra.mxu0 0.0
      %1819 = vmatpush.msra.mxu0 0.0
      %1820 = vmatpush.msra.mxu0 0.0
      %1821 = vmatpush.msra.mxu0 0.0
      %1822 = vmatpush.msra.mxu0 0.0
      %1823 = vmatpush.msra.mxu0 0.0
      %1824 = vmatpush.msra.mxu0 %v1619
      %1825 = vmatpush.msra.mxu0 %v1618
      %1826 = vmatpush.msra.mxu0 %v1617
      %1827 = vmatpush.msra.mxu0 %v1616
      %1828 = vmatpush.msra.mxu0 %v1615
      %1829 = vmatpush.msra.mxu0 %v1614
      %1830 = vmatpush.msra.mxu0 %v1613
      %1831 = vmatpush.msra.mxu0 %v1612
      %1832 = vmatpush.msra.mxu0 %v1611
      %1833 = vmatmul.f32.gmra.mxu0 %v1655
      %v1834 = vpop.f32.mrf.mxu0
      %v1835 = vadd.f32 %v1651, %v1834
      %1836 = vdwg.mxu0
      %1837 = vmatpush.msra.mxu0 0.0
      %1838 = vmatpush.msra.mxu0 0.0
      %1839 = vmatpush.msra.mxu0 0.0
      %1840 = vmatpush.msra.mxu0 0.0
      %1841 = vmatpush.msra.mxu0 0.0
      %1842 = vmatpush.msra.mxu0 0.0
      %1843 = vmatpush.msra.mxu0 0.0
      %1844 = vmatpush.msra.mxu0 %v1628
      %1845 = vmatpush.msra.mxu0 %v1627
      %1846 = vmatpush.msra.mxu0 %v1626
      %1847 = vmatpush.msra.mxu0 %v1625
      %1848 = vmatpush.msra.mxu0 %v1624
      %1849 = vmatpush.msra.mxu0 %v1623
      %1850 = vmatpush.msra.mxu0 %v1622
      %1851 = vmatpush.msra.mxu0 %v1621
      %1852 = vmatpush.msra.mxu0 %v1620
      %1853 = vmatmul.f32.gmra.mxu0 %v1655
      %v1854 = vpop.f32.mrf.mxu0
      %v1855 = vadd.f32 %v1651, %v1854
      %1856 = vdwg.mxu0
      %1857 = vmatpush.msra.mxu0 0.0
      %1858 = vmatpush.msra.mxu0 0.0
      %1859 = vmatpush.msra.mxu0 0.0
      %1860 = vmatpush.msra.mxu0 0.0
      %1861 = vmatpush.msra.mxu0 0.0
      %1862 = vmatpush.msra.mxu0 0.0
      %1863 = vmatpush.msra.mxu0 0.0
      %1864 = vmatpush.msra.mxu0 %v1637
      %1865 = vmatpush.msra.mxu0 %v1636
      %1866 = vmatpush.msra.mxu0 %v1635
      %1867 = vmatpush.msra.mxu0 %v1634
      %1868 = vmatpush.msra.mxu0 %v1633
      %1869 = vmatpush.msra.mxu0 %v1632
      %1870 = vmatpush.msra.mxu0 %v1631
      %1871 = vmatpush.msra.mxu0 %v1630
      %1872 = vmatpush.msra.mxu0 %v1629
      %1873 = vmatmul.f32.gmra.mxu0 %v1655
      %v1874 = vpop.f32.mrf.mxu0
      %v1875 = vadd.f32 %v1651, %v1874
      %1876 = vdwg.mxu0
      %1877 = vmatpush.msra.mxu0 0.0
      %1878 = vmatpush.msra.mxu0 0.0
      %1879 = vmatpush.msra.mxu0 0.0
      %1880 = vmatpush.msra.mxu0 0.0
      %1881 = vmatpush.msra.mxu0 0.0
      %1882 = vmatpush.msra.mxu0 0.0
      %1883 = vmatpush.msra.mxu0 0.0
      %1884 = vmatpush.msra.mxu0 %v1646
      %1885 = vmatpush.msra.mxu0 %v1645
      %1886 = vmatpush.msra.mxu0 %v1644
      %1887 = vmatpush.msra.mxu0 %v1643
      %1888 = vmatpush.msra.mxu0 %v1642
      %1889 = vmatpush.msra.mxu0 %v1641
      %1890 = vmatpush.msra.mxu0 %v1640
      %1891 = vmatpush.msra.mxu0 %v1639
      %1892 = vmatpush.msra.mxu0 %v1638
      %1893 = vmatmul.f32.gmra.mxu0 %v1655
      %v1894 = vpop.f32.mrf.mxu0
      %v1895 = vadd.f32 %v1651, %v1894
      %1896 = vdwg.mxu0
      %v1897 = vxor.u32 %v1675, 2147483648
      %v1898 = vxor.u32 %v1695, 2147483648
      %v1899 = vxor.u32 %v1715, 2147483648
      %v1900 = vxor.u32 %v1735, 2147483648
      %v1901 = vxor.u32 %v1755, 2147483648
      %v1902 = vxor.u32 %v1775, 2147483648
      %v1903 = vxor.u32 %v1795, 2147483648
      %v1904 = vxor.u32 %v1815, 2147483648
      %v1905 = vxor.u32 %v1835, 2147483648
      %v1906 = vxor.u32 %v1855, 2147483648
      %v1907 = vxor.u32 %v1875, 2147483648
      %v1908 = vxor.u32 %v1895, 2147483648
      %v1909 = vmul.f32 %v1897, 1.442695
      %v1910 = vpow.pop %v1909
      %v1911 = vmul.f32 %v1898, 1.442695
      %v1912 = vpow.pop %v1911
      %v1913 = vmul.f32 %v1899, 1.442695
      %v1914 = vpow.pop %v1913
      %v1915 = vmul.f32 %v1900, 1.442695
      %v1916 = vpow.pop %v1915
      %v1917 = vmul.f32 %v1901, 1.442695
      %v1918 = vpow.pop %v1917
      %v1919 = vmul.f32 %v1902, 1.442695
      %v1920 = vpow.pop %v1919
      %v1921 = vmul.f32 %v1903, 1.442695
      %v1922 = vpow.pop %v1921
      %v1923 = vmul.f32 %v1904, 1.442695
      %v1924 = vpow.pop %v1923
      %v1925 = vmul.f32 %v1905, 1.442695
      %v1926 = vpow.pop %v1925
      %v1927 = vmul.f32 %v1906, 1.442695
      %v1928 = vpow.pop %v1927
      %v1929 = vmul.f32 %v1907, 1.442695
      %v1930 = vpow.pop %v1929
      %v1931 = vmul.f32 %v1908, 1.442695
      %v1932 = vpow.pop %v1931
      %v1933 = vadd.f32 %v1910, 1.0
      %v1934 = vadd.f32 %v1912, 1.0
      %v1935 = vadd.f32 %v1914, 1.0
      %v1936 = vadd.f32 %v1916, 1.0
      %v1937 = vadd.f32 %v1918, 1.0
      %v1938 = vadd.f32 %v1920, 1.0
      %v1939 = vadd.f32 %v1922, 1.0
      %v1940 = vadd.f32 %v1924, 1.0
      %v1941 = vadd.f32 %v1926, 1.0
      %v1942 = vadd.f32 %v1928, 1.0
      %v1943 = vadd.f32 %v1930, 1.0
      %v1944 = vadd.f32 %v1932, 1.0
      %v1945 = vrcp.pop %v1933
      %v1946 = vmul.f32 %v1933, %v1945
      %v1947 = vsub.f32 1.0, %v1946
      %v1948 = vmul.f32 %v1945, %v1947
      %v1949 = vadd.f32 %v1945, %v1948
      %vm1950 = vweird.f32 %v1933
      %vm1951 = vweird.f32 %v1945
      %vm1952 = vmor %vm1950, %vm1951
      %v1953 = vsel %vm1952, %v1945, %v1949
      %v1954 = vand.u32 2147483647, %v1933
      %vm1955 = vcmp.eq.f32.partialorder %v1954, 8.507059e+37
      %v1956 = vand.u32 %v1933, 2147483648
      %v1957 = vor.u32 1.1754944e-38, %v1956
      %v1958 = vsel %vm1955, %v1957, %v1953
      %v1959 = vmul.f32 1.0, %v1958
      %v1960 = vrcp.pop %v1934
      %v1961 = vmul.f32 %v1934, %v1960
      %v1962 = vsub.f32 1.0, %v1961
      %v1963 = vmul.f32 %v1960, %v1962
      %v1964 = vadd.f32 %v1960, %v1963
      %vm1965 = vweird.f32 %v1934
      %vm1966 = vweird.f32 %v1960
      %vm1967 = vmor %vm1965, %vm1966
      %v1968 = vsel %vm1967, %v1960, %v1964
      %v1969 = vand.u32 2147483647, %v1934
      %vm1970 = vcmp.eq.f32.partialorder %v1969, 8.507059e+37
      %v1971 = vand.u32 %v1934, 2147483648
      %v1972 = vor.u32 1.1754944e-38, %v1971
      %v1973 = vsel %vm1970, %v1972, %v1968
      %v1974 = vmul.f32 1.0, %v1973
      %v1975 = vrcp.pop %v1935
      %v1976 = vmul.f32 %v1935, %v1975
      %v1977 = vsub.f32 1.0, %v1976
      %v1978 = vmul.f32 %v1975, %v1977
      %v1979 = vadd.f32 %v1975, %v1978
      %vm1980 = vweird.f32 %v1935
      %vm1981 = vweird.f32 %v1975
      %vm1982 = vmor %vm1980, %vm1981
      %v1983 = vsel %vm1982, %v1975, %v1979
      %v1984 = vand.u32 2147483647, %v1935
      %vm1985 = vcmp.eq.f32.partialorder %v1984, 8.507059e+37
      %v1986 = vand.u32 %v1935, 2147483648
      %v1987 = vor.u32 1.1754944e-38, %v1986
      %v1988 = vsel %vm1985, %v1987, %v1983
      %v1989 = vmul.f32 1.0, %v1988
      %v1990 = vrcp.pop %v1936
      %v1991 = vmul.f32 %v1936, %v1990
      %v1992 = vsub.f32 1.0, %v1991
      %v1993 = vmul.f32 %v1990, %v1992
      %v1994 = vadd.f32 %v1990, %v1993
      %vm1995 = vweird.f32 %v1936
      %vm1996 = vweird.f32 %v1990
      %vm1997 = vmor %vm1995, %vm1996
      %v1998 = vsel %vm1997, %v1990, %v1994
      %v1999 = vand.u32 2147483647, %v1936
      %vm2000 = vcmp.eq.f32.partialorder %v1999, 8.507059e+37
      %v2001 = vand.u32 %v1936, 2147483648
      %v2002 = vor.u32 1.1754944e-38, %v2001
      %v2003 = vsel %vm2000, %v2002, %v1998
      %v2004 = vmul.f32 1.0, %v2003
      %v2005 = vrcp.pop %v1937
      %v2006 = vmul.f32 %v1937, %v2005
      %v2007 = vsub.f32 1.0, %v2006
      %v2008 = vmul.f32 %v2005, %v2007
      %v2009 = vadd.f32 %v2005, %v2008
      %vm2010 = vweird.f32 %v1937
      %vm2011 = vweird.f32 %v2005
      %vm2012 = vmor %vm2010, %vm2011
      %v2013 = vsel %vm2012, %v2005, %v2009
      %v2014 = vand.u32 2147483647, %v1937
      %vm2015 = vcmp.eq.f32.partialorder %v2014, 8.507059e+37
      %v2016 = vand.u32 %v1937, 2147483648
      %v2017 = vor.u32 1.1754944e-38, %v2016
      %v2018 = vsel %vm2015, %v2017, %v2013
      %v2019 = vmul.f32 1.0, %v2018
      %v2020 = vrcp.pop %v1938
      %v2021 = vmul.f32 %v1938, %v2020
      %v2022 = vsub.f32 1.0, %v2021
      %v2023 = vmul.f32 %v2020, %v2022
      %v2024 = vadd.f32 %v2020, %v2023
      %vm2025 = vweird.f32 %v1938
      %vm2026 = vweird.f32 %v2020
      %vm2027 = vmor %vm2025, %vm2026
      %v2028 = vsel %vm2027, %v2020, %v2024
      %v2029 = vand.u32 2147483647, %v1938
      %vm2030 = vcmp.eq.f32.partialorder %v2029, 8.507059e+37
      %v2031 = vand.u32 %v1938, 2147483648
      %v2032 = vor.u32 1.1754944e-38, %v2031
      %v2033 = vsel %vm2030, %v2032, %v2028
      %v2034 = vmul.f32 1.0, %v2033
      %v2035 = vrcp.pop %v1939
      %v2036 = vmul.f32 %v1939, %v2035
      %v2037 = vsub.f32 1.0, %v2036
      %v2038 = vmul.f32 %v2035, %v2037
      %v2039 = vadd.f32 %v2035, %v2038
      %vm2040 = vweird.f32 %v1939
      %vm2041 = vweird.f32 %v2035
      %vm2042 = vmor %vm2040, %vm2041
      %v2043 = vsel %vm2042, %v2035, %v2039
      %v2044 = vand.u32 2147483647, %v1939
      %vm2045 = vcmp.eq.f32.partialorder %v2044, 8.507059e+37
      %v2046 = vand.u32 %v1939, 2147483648
      %v2047 = vor.u32 1.1754944e-38, %v2046
      %v2048 = vsel %vm2045, %v2047, %v2043
      %v2049 = vmul.f32 1.0, %v2048
      %v2050 = vrcp.pop %v1940
      %v2051 = vmul.f32 %v1940, %v2050
      %v2052 = vsub.f32 1.0, %v2051
      %v2053 = vmul.f32 %v2050, %v2052
      %v2054 = vadd.f32 %v2050, %v2053
      %vm2055 = vweird.f32 %v1940
      %vm2056 = vweird.f32 %v2050
      %vm2057 = vmor %vm2055, %vm2056
      %v2058 = vsel %vm2057, %v2050, %v2054
      %v2059 = vand.u32 2147483647, %v1940
      %vm2060 = vcmp.eq.f32.partialorder %v2059, 8.507059e+37
      %v2061 = vand.u32 %v1940, 2147483648
      %v2062 = vor.u32 1.1754944e-38, %v2061
      %v2063 = vsel %vm2060, %v2062, %v2058
      %v2064 = vmul.f32 1.0, %v2063
      %v2065 = vrcp.pop %v1941
      %v2066 = vmul.f32 %v1941, %v2065
      %v2067 = vsub.f32 1.0, %v2066
      %v2068 = vmul.f32 %v2065, %v2067
      %v2069 = vadd.f32 %v2065, %v2068
      %vm2070 = vweird.f32 %v1941
      %vm2071 = vweird.f32 %v2065
      %vm2072 = vmor %vm2070, %vm2071
      %v2073 = vsel %vm2072, %v2065, %v2069
      %v2074 = vand.u32 2147483647, %v1941
      %vm2075 = vcmp.eq.f32.partialorder %v2074, 8.507059e+37
      %v2076 = vand.u32 %v1941, 2147483648
      %v2077 = vor.u32 1.1754944e-38, %v2076
      %v2078 = vsel %vm2075, %v2077, %v2073
      %v2079 = vmul.f32 1.0, %v2078
      %v2080 = vrcp.pop %v1942
      %v2081 = vmul.f32 %v1942, %v2080
      %v2082 = vsub.f32 1.0, %v2081
      %v2083 = vmul.f32 %v2080, %v2082
      %v2084 = vadd.f32 %v2080, %v2083
      %vm2085 = vweird.f32 %v1942
      %vm2086 = vweird.f32 %v2080
      %vm2087 = vmor %vm2085, %vm2086
      %v2088 = vsel %vm2087, %v2080, %v2084
      %v2089 = vand.u32 2147483647, %v1942
      %vm2090 = vcmp.eq.f32.partialorder %v2089, 8.507059e+37
      %v2091 = vand.u32 %v1942, 2147483648
      %v2092 = vor.u32 1.1754944e-38, %v2091
      %v2093 = vsel %vm2090, %v2092, %v2088
      %v2094 = vmul.f32 1.0, %v2093
      %v2095 = vrcp.pop %v1943
      %v2096 = vmul.f32 %v1943, %v2095
      %v2097 = vsub.f32 1.0, %v2096
      %v2098 = vmul.f32 %v2095, %v2097
      %v2099 = vadd.f32 %v2095, %v2098
      %vm2100 = vweird.f32 %v1943
      %vm2101 = vweird.f32 %v2095
      %vm2102 = vmor %vm2100, %vm2101
      %v2103 = vsel %vm2102, %v2095, %v2099
      %v2104 = vand.u32 2147483647, %v1943
      %vm2105 = vcmp.eq.f32.partialorder %v2104, 8.507059e+37
      %v2106 = vand.u32 %v1943, 2147483648
      %v2107 = vor.u32 1.1754944e-38, %v2106
      %v2108 = vsel %vm2105, %v2107, %v2103
      %v2109 = vmul.f32 1.0, %v2108
      %v2110 = vrcp.pop %v1944
      %v2111 = vmul.f32 %v1944, %v2110
      %v2112 = vsub.f32 1.0, %v2111
      %v2113 = vmul.f32 %v2110, %v2112
      %v2114 = vadd.f32 %v2110, %v2113
      %vm2115 = vweird.f32 %v1944
      %vm2116 = vweird.f32 %v2110
      %vm2117 = vmor %vm2115, %vm2116
      %v2118 = vsel %vm2117, %v2110, %v2114
      %v2119 = vand.u32 2147483647, %v1944
      %vm2120 = vcmp.eq.f32.partialorder %v2119, 8.507059e+37
      %v2121 = vand.u32 %v1944, 2147483648
      %v2122 = vor.u32 1.1754944e-38, %v2121
      %v2123 = vsel %vm2120, %v2122, %v2118
      %v2124 = vmul.f32 1.0, %v2123
      %v2125 = vmul.f32 %v1675, %v1959
      %v2126 = vmul.f32 %v1695, %v1974
      %v2127 = vmul.f32 %v1715, %v1989
      %v2128 = vmul.f32 %v1735, %v2004
      %v2129 = vmul.f32 %v1755, %v2019
      %v2130 = vmul.f32 %v1775, %v2034
      %v2131 = vmul.f32 %v1795, %v2049
      %v2132 = vmul.f32 %v1815, %v2064
      %v2133 = vmul.f32 %v1835, %v2079
      %v2134 = vmul.f32 %v1855, %v2094
      %v2135 = vmul.f32 %v1875, %v2109
      %v2136 = vmul.f32 %v1895, %v2124
      %v2137 = vmax.f32 %v2125, %v2126
      %v2138 = vmax.f32 %v2128, %v2129
      %v2139 = vmax.f32 %v2131, %v2132
      %v2140 = vmax.f32 %v2134, %v2135
      %v2141 = vmax.f32 %v2137, %v2127
      %v2142 = vmax.f32 %v2138, %v2130
      %v2143 = vmax.f32 %v2139, %v2133
      %v2144 = vmax.f32 %v2140, %v2136
      %v2145 = vld [vmem:[%s5] sm:$0xff]
      %v2146 = vld [vmem:[%s5 + $0x8] sm:$0x3f]
      %v2148 = vsel %vm1217, %v2141, 0
      %v2151 = vsel %vm1217, %v2142, 0
      %v2154 = vsel %vm1217, %v2143, 0
      %v2157 = vsel %vm1217, %v2144, 0
      %vm2159 = vcmask 1045504
      %v2161 = vsel %vm2159, %v2146, 0
      %2163 = vmatpush.msra.mxu0 0.0
      %2164 = vmatpush.msra.mxu0 0.0
      %2165 = vmatpush.msra.mxu0 0.0
      %2166 = vmatpush.msra.mxu0 0.0
      %2167 = vmatpush.msra.mxu0 0.0
      %2168 = vmatpush.msra.mxu0 0.0
      %2169 = vmatpush.msra.mxu0 0.0
      %2170 = vmatpush.msra.mxu0 0.0
      %2171 = vmatpush.msra.mxu0 0.0
      %2172 = vmatpush.msra.mxu0 0.0
      %2173 = vmatpush.msra.mxu0 0.0
      %2174 = vmatpush.msra.mxu0 0.0
      %2175 = vmatpush.msra.mxu0 0.0
      %2176 = vmatpush.msra.mxu0 0.0
      %2177 = vmatpush.msra.mxu0 %v2161
      %2178 = vmatpush.msra.mxu0 %v2145
      %2179 = vmatmul.f32.gmra.mxu0 %v2148
      %v2180 = vpop.f32.mrf.mxu0
      %v2181 = vadd.f32 0.0, %v2180
      %2182 = vmatmul.f32.gmra.mxu0 %v2151
      %v2183 = vpop.f32.mrf.mxu0
      %v2184 = vadd.f32 0.0, %v2183
      %2185 = vmatmul.f32.gmra.mxu0 %v2154
      %v2186 = vpop.f32.mrf.mxu0
      %v2187 = vadd.f32 0.0, %v2186
      %2188 = vmatmul.f32.gmra.mxu0 %v2157
      %v2189 = vpop.f32.mrf.mxu0
      %v2190 = vadd.f32 0.0, %v2189
      %2191 = vdwg.mxu0
      %s2192 = scalar_lea.vmem %s5, 16
      %v2193 = vld [vmem:[%s2192] sm:$0xff]
      %v2194 = vld [vmem:[%s2192 + $0x8] sm:$0x3f]
      %v2196 = vsel %vm2159, %v2194, 0
      %2198 = vmatpush.msra.mxu0 0.0
      %2199 = vmatpush.msra.mxu0 0.0
      %2200 = vmatpush.msra.mxu0 0.0
      %2201 = vmatpush.msra.mxu0 0.0
      %2202 = vmatpush.msra.mxu0 0.0
      %2203 = vmatpush.msra.mxu0 0.0
      %2204 = vmatpush.msra.mxu0 0.0
      %2205 = vmatpush.msra.mxu0 0.0
      %2206 = vmatpush.msra.mxu0 0.0
      %2207 = vmatpush.msra.mxu0 0.0
      %2208 = vmatpush.msra.mxu0 0.0
      %2209 = vmatpush.msra.mxu0 0.0
      %2210 = vmatpush.msra.mxu0 0.0
      %2211 = vmatpush.msra.mxu0 0.0
      %2212 = vmatpush.msra.mxu0 %v2196
      %2213 = vmatpush.msra.mxu0 %v2193
      %2214 = vmatmul.f32.gmra.mxu0 %v2148
      %v2215 = vpop.f32.mrf.mxu0
      %v2216 = vadd.f32 0.0, %v2215
      %2217 = vmatmul.f32.gmra.mxu0 %v2151
      %v2218 = vpop.f32.mrf.mxu0
      %v2219 = vadd.f32 0.0, %v2218
      %2220 = vmatmul.f32.gmra.mxu0 %v2154
      %v2221 = vpop.f32.mrf.mxu0
      %v2222 = vadd.f32 0.0, %v2221
      %2223 = vmatmul.f32.gmra.mxu0 %v2157
      %v2224 = vpop.f32.mrf.mxu0
      %v2225 = vadd.f32 0.0, %v2224
      %2226 = vdwg.mxu0
      %s2227 = scalar_lea.vmem %s5, 32
      %v2228 = vld [vmem:[%s2227] sm:$0xff]
      %v2229 = vld [vmem:[%s2227 + $0x8] sm:$0x3f]
      %v2231 = vsel %vm2159, %v2229, 0
      %2233 = vmatpush.msra.mxu0 0.0
      %2234 = vmatpush.msra.mxu0 0.0
      %2235 = vmatpush.msra.mxu0 0.0
      %2236 = vmatpush.msra.mxu0 0.0
      %2237 = vmatpush.msra.mxu0 0.0
      %2238 = vmatpush.msra.mxu0 0.0
      %2239 = vmatpush.msra.mxu0 0.0
      %2240 = vmatpush.msra.mxu0 0.0
      %2241 = vmatpush.msra.mxu0 0.0
      %2242 = vmatpush.msra.mxu0 0.0
      %2243 = vmatpush.msra.mxu0 0.0
      %2244 = vmatpush.msra.mxu0 0.0
      %2245 = vmatpush.msra.mxu0 0.0
      %2246 = vmatpush.msra.mxu0 0.0
      %2247 = vmatpush.msra.mxu0 %v2231
      %2248 = vmatpush.msra.mxu0 %v2228
      %2249 = vmatmul.f32.gmra.mxu0 %v2148
      %v2250 = vpop.f32.mrf.mxu0
      %v2251 = vadd.f32 0.0, %v2250
      %2252 = vmatmul.f32.gmra.mxu0 %v2151
      %v2253 = vpop.f32.mrf.mxu0
      %v2254 = vadd.f32 0.0, %v2253
      %2255 = vmatmul.f32.gmra.mxu0 %v2154
      %v2256 = vpop.f32.mrf.mxu0
      %v2257 = vadd.f32 0.0, %v2256
      %2258 = vmatmul.f32.gmra.mxu0 %v2157
      %v2259 = vpop.f32.mrf.mxu0
      %v2260 = vadd.f32 0.0, %v2259
      %2261 = vdwg.mxu0
      %v2262 = vmax.f32 %v2181, %v2216
      %v2263 = vmax.f32 %v2184, %v2219
      %v2264 = vmax.f32 %v2187, %v2222
      %v2265 = vmax.f32 %v2190, %v2225
      %v2266 = vmax.f32 %v2262, %v2251
      %v2267 = vmax.f32 %v2263, %v2254
      %v2268 = vmax.f32 %v2264, %v2257
      %v2269 = vmax.f32 %v2265, %v2260
      %v2270 = vld [vmem:[%s6] sm:$0xff]
      %v2271 = vld [vmem:[%s6 + $0x8] sm:$0xff]
      %v2272 = vld [vmem:[%s6 + $0x10] sm:$0xff]
      %v2273 = vld [vmem:[%s6 + $0x18] sm:$0xff]
      %v2274 = vld [vmem:[%s6 + $0x20] sm:$0xff]
      %v2275 = vld [vmem:[%s6 + $0x28] sm:$0xff]
      %v2276 = vld [vmem:[%s6 + $0x30] sm:$0xff]
      %v2277 = vld [vmem:[%s6 + $0x38] sm:$0xff]
      %v2278 = vld [vmem:[%s6 + $0x40] sm:$0xff]
      %v2279 = vld [vmem:[%s6 + $0x48] sm:$0xff]
      %v2280 = vld [vmem:[%s6 + $0x50] sm:$0xff]
      %v2281 = vld [vmem:[%s6 + $0x58] sm:$0xff]
      %v2282 = vld [vmem:[%s6 + $0x60] sm:$0xff]
      %v2283 = vld [vmem:[%s6 + $0x68] sm:$0xff]
      %v2284 = vld [vmem:[%s6 + $0x70] sm:$0xff]
      %v2285 = vld [vmem:[%s6 + $0x78] sm:$0xff]
      %v2286 = vld [vmem:[%s6 + $0x80] sm:$0xff]
      %v2287 = vld [vmem:[%s6 + $0x88] sm:$0xff]
      %v2288 = vld [vmem:[%s6 + $0x90] sm:$0xff]
      %v2289 = vld [vmem:[%s6 + $0x98] sm:$0xff]
      %v2290 = vld [vmem:[%s6 + $0xa0] sm:$0xff]
      %v2291 = vld [vmem:[%s6 + $0xa8] sm:$0xff]
      %v2292 = vld [vmem:[%s6 + $0xb0] sm:$0xff]
      %v2293 = vld [vmem:[%s6 + $0xb8] sm:$0xff]
      %v2294 = vld [vmem:[%s6 + $0xc0] sm:$0xff]
      %v2295 = vld [vmem:[%s6 + $0xc8] sm:$0xff]
      %v2296 = vld [vmem:[%s6 + $0xd0] sm:$0xff]
      %v2297 = vld [vmem:[%s6 + $0xd8] sm:$0xff]
      %v2298 = vld [vmem:[%s6 + $0xe0] sm:$0xff]
      %v2299 = vld [vmem:[%s6 + $0xe8] sm:$0xff]
      %v2300 = vld [vmem:[%s6 + $0xf0] sm:$0xff]
      %v2301 = vld [vmem:[%s6 + $0xf8] sm:$0xff]
      %v2302 = vld [vmem:[%s6 + $0x100] sm:$0xff]
      %v2303 = vld [vmem:[%s6 + $0x108] sm:$0xff]
      %v2304 = vld [vmem:[%s6 + $0x110] sm:$0xff]
      %v2305 = vld [vmem:[%s6 + $0x118] sm:$0xff]
      %v2306 = vld [vmem:[%s6 + $0x120] sm:$0xff]
      %v2307 = vld [vmem:[%s6 + $0x128] sm:$0xff]
      %v2308 = vld [vmem:[%s6 + $0x130] sm:$0xff]
      %v2309 = vld [vmem:[%s6 + $0x138] sm:$0xff]
      %v2310 = vmul.f32 %v2266, %v2270
      %v2311 = vmul.f32 %v2267, %v2271
      %v2312 = vmul.f32 %v2268, %v2272
      %v2313 = vmul.f32 %v2269, %v2273
      %v2314 = vmul.f32 %v2266, %v2274
      %v2315 = vmul.f32 %v2267, %v2275
      %v2316 = vmul.f32 %v2268, %v2276
      %v2317 = vmul.f32 %v2269, %v2277
      %v2318 = vmul.f32 %v2266, %v2278
      %v2319 = vmul.f32 %v2267, %v2279
      %v2320 = vmul.f32 %v2268, %v2280
      %v2321 = vmul.f32 %v2269, %v2281
      %v2322 = vmul.f32 %v2266, %v2282
      %v2323 = vmul.f32 %v2267, %v2283
      %v2324 = vmul.f32 %v2268, %v2284
      %v2325 = vmul.f32 %v2269, %v2285
      %v2326 = vmul.f32 %v2266, %v2286
      %v2327 = vmul.f32 %v2267, %v2287
      %v2328 = vmul.f32 %v2268, %v2288
      %v2329 = vmul.f32 %v2269, %v2289
      %v2330 = vmul.f32 %v2266, %v2290
      %v2331 = vmul.f32 %v2267, %v2291
      %v2332 = vmul.f32 %v2268, %v2292
      %v2333 = vmul.f32 %v2269, %v2293
      %v2334 = vmul.f32 %v2266, %v2294
      %v2335 = vmul.f32 %v2267, %v2295
      %v2336 = vmul.f32 %v2268, %v2296
      %v2337 = vmul.f32 %v2269, %v2297
      %v2338 = vmul.f32 %v2266, %v2298
      %v2339 = vmul.f32 %v2267, %v2299
      %v2340 = vmul.f32 %v2268, %v2300
      %v2341 = vmul.f32 %v2269, %v2301
      %v2342 = vmul.f32 %v2266, %v2302
      %v2343 = vmul.f32 %v2267, %v2303
      %v2344 = vmul.f32 %v2268, %v2304
      %v2345 = vmul.f32 %v2269, %v2305
      %v2346 = vmul.f32 %v2266, %v2306
      %v2347 = vmul.f32 %v2267, %v2307
      %v2348 = vmul.f32 %v2268, %v2308
      %v2349 = vmul.f32 %v2269, %v2309
      %vm2350 = vcmask 31744
      %v2351 = vsel %vm2350, %v2310, 0.0
      %2352 = vadd.xlane.f32.xlu0 %v2351
      %v2353 = vpop.xlane.xlu0 %2352
      %v2354 = vsel %vm2350, %v2311, 0.0
      %2355 = vadd.xlane.f32.xlu0 %v2354
      %v2356 = vpop.xlane.xlu0 %2355
      %v2357 = vsel %vm2350, %v2312, 0.0
      %2358 = vadd.xlane.f32.xlu0 %v2357
      %v2359 = vpop.xlane.xlu0 %2358
      %v2360 = vsel %vm2350, %v2313, 0.0
      %2361 = vadd.xlane.f32.xlu0 %v2360
      %v2362 = vpop.xlane.xlu0 %2361
      %v2363 = vsel %vm2350, %v2314, 0.0
      %2364 = vadd.xlane.f32.xlu0 %v2363
      %v2365 = vpop.xlane.xlu0 %2364
      %v2366 = vsel %vm2350, %v2315, 0.0
      %2367 = vadd.xlane.f32.xlu0 %v2366
      %v2368 = vpop.xlane.xlu0 %2367
      %v2369 = vsel %vm2350, %v2316, 0.0
      %2370 = vadd.xlane.f32.xlu0 %v2369
      %v2371 = vpop.xlane.xlu0 %2370
      %v2372 = vsel %vm2350, %v2317, 0.0
      %2373 = vadd.xlane.f32.xlu0 %v2372
      %v2374 = vpop.xlane.xlu0 %2373
      %v2375 = vsel %vm2350, %v2318, 0.0
      %2376 = vadd.xlane.f32.xlu0 %v2375
      %v2377 = vpop.xlane.xlu0 %2376
      %v2378 = vsel %vm2350, %v2319, 0.0
      %2379 = vadd.xlane.f32.xlu0 %v2378
      %v2380 = vpop.xlane.xlu0 %2379
      %v2381 = vsel %vm2350, %v2320, 0.0
      %2382 = vadd.xlane.f32.xlu0 %v2381
      %v2383 = vpop.xlane.xlu0 %2382
      %v2384 = vsel %vm2350, %v2321, 0.0
      %2385 = vadd.xlane.f32.xlu0 %v2384
      %v2386 = vpop.xlane.xlu0 %2385
      %v2387 = vsel %vm2350, %v2322, 0.0
      %2388 = vadd.xlane.f32.xlu0 %v2387
      %v2389 = vpop.xlane.xlu0 %2388
      %v2390 = vsel %vm2350, %v2323, 0.0
      %2391 = vadd.xlane.f32.xlu0 %v2390
      %v2392 = vpop.xlane.xlu0 %2391
      %v2393 = vsel %vm2350, %v2324, 0.0
      %2394 = vadd.xlane.f32.xlu0 %v2393
      %v2395 = vpop.xlane.xlu0 %2394
      %v2396 = vsel %vm2350, %v2325, 0.0
      %2397 = vadd.xlane.f32.xlu0 %v2396
      %v2398 = vpop.xlane.xlu0 %2397
      %v2399 = vsel %vm2350, %v2326, 0.0
      %2400 = vadd.xlane.f32.xlu0 %v2399
      %v2401 = vpop.xlane.xlu0 %2400
      %v2402 = vsel %vm2350, %v2327, 0.0
      %2403 = vadd.xlane.f32.xlu0 %v2402
      %v2404 = vpop.xlane.xlu0 %2403
      %v2405 = vsel %vm2350, %v2328, 0.0
      %2406 = vadd.xlane.f32.xlu0 %v2405
      %v2407 = vpop.xlane.xlu0 %2406
      %v2408 = vsel %vm2350, %v2329, 0.0
      %2409 = vadd.xlane.f32.xlu0 %v2408
      %v2410 = vpop.xlane.xlu0 %2409
      %v2411 = vsel %vm2350, %v2330, 0.0
      %2412 = vadd.xlane.f32.xlu0 %v2411
      %v2413 = vpop.xlane.xlu0 %2412
      %v2414 = vsel %vm2350, %v2331, 0.0
      %2415 = vadd.xlane.f32.xlu0 %v2414
      %v2416 = vpop.xlane.xlu0 %2415
      %v2417 = vsel %vm2350, %v2332, 0.0
      %2418 = vadd.xlane.f32.xlu0 %v2417
      %v2419 = vpop.xlane.xlu0 %2418
      %v2420 = vsel %vm2350, %v2333, 0.0
      %2421 = vadd.xlane.f32.xlu0 %v2420
      %v2422 = vpop.xlane.xlu0 %2421
      %v2423 = vsel %vm2350, %v2334, 0.0
      %2424 = vadd.xlane.f32.xlu0 %v2423
      %v2425 = vpop.xlane.xlu0 %2424
      %v2426 = vsel %vm2350, %v2335, 0.0
      %2427 = vadd.xlane.f32.xlu0 %v2426
      %v2428 = vpop.xlane.xlu0 %2427
      %v2429 = vsel %vm2350, %v2336, 0.0
      %2430 = vadd.xlane.f32.xlu0 %v2429
      %v2431 = vpop.xlane.xlu0 %2430
      %v2432 = vsel %vm2350, %v2337, 0.0
      %2433 = vadd.xlane.f32.xlu0 %v2432
      %v2434 = vpop.xlane.xlu0 %2433
      %v2435 = vsel %vm2350, %v2338, 0.0
      %2436 = vadd.xlane.f32.xlu0 %v2435
      %v2437 = vpop.xlane.xlu0 %2436
      %v2438 = vsel %vm2350, %v2339, 0.0
      %2439 = vadd.xlane.f32.xlu0 %v2438
      %v2440 = vpop.xlane.xlu0 %2439
      %v2441 = vsel %vm2350, %v2340, 0.0
      %2442 = vadd.xlane.f32.xlu0 %v2441
      %v2443 = vpop.xlane.xlu0 %2442
      %v2444 = vsel %vm2350, %v2341, 0.0
      %2445 = vadd.xlane.f32.xlu0 %v2444
      %v2446 = vpop.xlane.xlu0 %2445
      %v2447 = vsel %vm2350, %v2342, 0.0
      %2448 = vadd.xlane.f32.xlu0 %v2447
      %v2449 = vpop.xlane.xlu0 %2448
      %v2450 = vsel %vm2350, %v2343, 0.0
      %2451 = vadd.xlane.f32.xlu0 %v2450
      %v2452 = vpop.xlane.xlu0 %2451
      %v2453 = vsel %vm2350, %v2344, 0.0
      %2454 = vadd.xlane.f32.xlu0 %v2453
      %v2455 = vpop.xlane.xlu0 %2454
      %v2456 = vsel %vm2350, %v2345, 0.0
      %2457 = vadd.xlane.f32.xlu0 %v2456
      %v2458 = vpop.xlane.xlu0 %2457
      %v2459 = vsel %vm2350, %v2346, 0.0
      %2460 = vadd.xlane.f32.xlu0 %v2459
      %v2461 = vpop.xlane.xlu0 %2460
      %v2462 = vsel %vm2350, %v2347, 0.0
      %2463 = vadd.xlane.f32.xlu0 %v2462
      %v2464 = vpop.xlane.xlu0 %2463
      %v2465 = vsel %vm2350, %v2348, 0.0
      %2466 = vadd.xlane.f32.xlu0 %v2465
      %v2467 = vpop.xlane.xlu0 %2466
      %v2468 = vsel %vm2350, %v2349, 0.0
      %2469 = vadd.xlane.f32.xlu0 %v2468
      %v2470 = vpop.xlane.xlu0 %2469
      %v2511 = vperm.slane %v2353, %v1201
      %v2512 = vadd.s32 %v1201, 4294967288
      %v2513 = vperm.slane %v2356, %v2512
      %vm2514 = vcmask 130112
      %v2515 = vsel %vm2514, %v2513, %v2511
      %v2516 = vadd.s32 %v1201, 4294967280
      %v2517 = vperm.slane %v2359, %v2516
      %vm2518 = vcmask 195712
      %v2519 = vsel %vm2518, %v2517, %v2515
      %v2520 = vadd.s32 %v1201, 4294967272
      %v2521 = vperm.slane %v2362, %v2520
      %vm2522 = vcmask 261312
      %v2523 = vsel %vm2522, %v2521, %v2519
      %v2524 = vperm.slane %v2365, %v1201
      %v2525 = vperm.slane %v2368, %v2512
      %v2526 = vsel %vm2514, %v2525, %v2524
      %v2527 = vperm.slane %v2371, %v2516
      %v2528 = vsel %vm2518, %v2527, %v2526
      %v2529 = vperm.slane %v2374, %v2520
      %v2530 = vsel %vm2522, %v2529, %v2528
      %v2531 = vperm.slane %v2377, %v1201
      %v2532 = vperm.slane %v2380, %v2512
      %v2533 = vsel %vm2514, %v2532, %v2531
      %v2534 = vperm.slane %v2383, %v2516
      %v2535 = vsel %vm2518, %v2534, %v2533
      %v2536 = vperm.slane %v2386, %v2520
      %v2537 = vsel %vm2522, %v2536, %v2535
      %v2538 = vperm.slane %v2389, %v1201
      %v2539 = vperm.slane %v2392, %v2512
      %v2540 = vsel %vm2514, %v2539, %v2538
      %v2541 = vperm.slane %v2395, %v2516
      %v2542 = vsel %vm2518, %v2541, %v2540
      %v2543 = vperm.slane %v2398, %v2520
      %v2544 = vsel %vm2522, %v2543, %v2542
      %v2545 = vperm.slane %v2401, %v1201
      %v2546 = vperm.slane %v2404, %v2512
      %v2547 = vsel %vm2514, %v2546, %v2545
      %v2548 = vperm.slane %v2407, %v2516
      %v2549 = vsel %vm2518, %v2548, %v2547
      %v2550 = vperm.slane %v2410, %v2520
      %v2551 = vsel %vm2522, %v2550, %v2549
      %v2552 = vperm.slane %v2413, %v1201
      %v2553 = vperm.slane %v2416, %v2512
      %v2554 = vsel %vm2514, %v2553, %v2552
      %v2555 = vperm.slane %v2419, %v2516
      %v2556 = vsel %vm2518, %v2555, %v2554
      %v2557 = vperm.slane %v2422, %v2520
      %v2558 = vsel %vm2522, %v2557, %v2556
      %v2559 = vperm.slane %v2425, %v1201
      %v2560 = vperm.slane %v2428, %v2512
      %v2561 = vsel %vm2514, %v2560, %v2559
      %v2562 = vperm.slane %v2431, %v2516
      %v2563 = vsel %vm2518, %v2562, %v2561
      %v2564 = vperm.slane %v2434, %v2520
      %v2565 = vsel %vm2522, %v2564, %v2563
      %v2566 = vperm.slane %v2437, %v1201
      %v2567 = vperm.slane %v2440, %v2512
      %v2568 = vsel %vm2514, %v2567, %v2566
      %v2569 = vperm.slane %v2443, %v2516
      %v2570 = vsel %vm2518, %v2569, %v2568
      %v2571 = vperm.slane %v2446, %v2520
      %v2572 = vsel %vm2522, %v2571, %v2570
      %v2573 = vperm.slane %v2449, %v1201
      %v2574 = vperm.slane %v2452, %v2512
      %v2575 = vsel %vm2514, %v2574, %v2573
      %v2576 = vperm.slane %v2455, %v2516
      %v2577 = vsel %vm2518, %v2576, %v2575
      %v2578 = vperm.slane %v2458, %v2520
      %v2579 = vsel %vm2522, %v2578, %v2577
      %v2580 = vperm.slane %v2461, %v1201
      %v2581 = vperm.slane %v2464, %v2512
      %v2582 = vsel %vm2514, %v2581, %v2580
      %v2583 = vperm.slane %v2467, %v2516
      %v2584 = vsel %vm2518, %v2583, %v2582
      %v2585 = vperm.slane %v2470, %v2520
      %v2586 = vsel %vm2522, %v2585, %v2584
      %vm2587 = vcmask 1041409
      %v2588 = vsel %vm2587, %v2530, %v2523
      %vm2589 = vcmask 1042434
      %v2590 = vsel %vm2589, %v2537, %v2588
      %vm2591 = vcmask 1043459
      %v2592 = vsel %vm2591, %v2544, %v2590
      %vm2593 = vcmask 1044484
      %v2594 = vsel %vm2593, %v2551, %v2592
      %vm2595 = vcmask 1045509
      %v2596 = vsel %vm2595, %v2558, %v2594
      %vm2597 = vcmask 1046534
      %v2598 = vsel %vm2597, %v2565, %v2596
      %vm2599 = vcmask 1047559
      %v2600 = vsel %vm2599, %v2572, %v2598
      %v2601 = vsel %vm2587, %v2586, %v2579
      %vm2604 = vcmask 261120
      %v2605 = vsel %vm2604, %v2600, 0.0
      %2606 = vadd.xlane.f32.xlu0 %v2605
      %v2607 = vpop.xlane.xlu0 %2606
      %vm2608 = vcmask 254976
      %v2609 = vsel %vm2608, %v2601, 0.0
      %2610 = vadd.xlane.f32.xlu0 %v2609
      %v2611 = vpop.xlane.xlu0 %2610
      %v2612 = vld [vmem:[%s7] sm:$0xff]
      %v2613 = vld [vmem:[%s7 + $0x8] sm:$0x3]
      %v2614 = vadd.f32 %v2607, %v2612
      %v2615 = vadd.f32 %v2611, %v2613
      %vm2616 = vcmask 7168
      %v2617 = vsel %vm2616, %v2614, -inf
      %vm2618 = vcmask 1024
      %v2619 = vsel %vm2618, %v2615, -inf
      %v2620 = vmax.f32 %v2617, %v2619
      %v2621 = vrot.slane %v2620, 4
      %v2622 = vmax.f32 %v2620, %v2621
      %v2623 = vrot.slane %v2622, 2
      %v2624 = vmax.f32 %v2622, %v2623
      %v2625 = vrot.slane %v2624, 1
      %v2626 = vmax.f32 %v2624, %v2625
      %v2627 = vsub.f32 %v2614, %v2626
      %v2628 = vsub.f32 %v2615, %v2626
      %v2629 = vmul.f32 %v2627, 1.442695
      %v2630 = vpow.pop %v2629
      %v2631 = vmul.f32 %v2628, 1.442695
      %v2632 = vpow.pop %v2631
      %v2633 = vsel %vm2616, %v2630, 0.0
      %v2634 = vsel %vm2618, %v2632, 0.0
      %v2635 = vadd.f32 %v2633, %v2634
      %v2636 = vrot.slane %v2635, 4
      %v2637 = vadd.f32 %v2635, %v2636
      %v2638 = vrot.slane %v2637, 2
      %v2639 = vadd.f32 %v2637, %v2638
      %v2640 = vrot.slane %v2639, 1
      %v2641 = vadd.f32 %v2639, %v2640
      %v2642 = vrcp.pop %v2641
      %v2643 = vmul.f32 %v2641, %v2642
      %v2644 = vsub.f32 1.0, %v2643
      %v2645 = vmul.f32 %v2642, %v2644
      %v2646 = vadd.f32 %v2642, %v2645
      %vm2647 = vweird.f32 %v2641
      %vm2648 = vweird.f32 %v2642
      %vm2649 = vmor %vm2647, %vm2648
      %v2650 = vsel %vm2649, %v2642, %v2646
      %v2651 = vand.u32 2147483647, %v2641
      %vm2652 = vcmp.eq.f32.partialorder %v2651, 8.507059e+37
      %v2653 = vand.u32 %v2641, 2147483648
      %v2654 = vor.u32 1.1754944e-38, %v2653
      %v2655 = vsel %vm2652, %v2654, %v2650
      %v2656 = vmul.f32 %v2630, %v2655
      %v2657 = vmul.f32 %v2632, %v2655
      %2658 = vst.msk [vmem:[%s305] sm:$0xff] %vm2616, %v2656
      %2659 = vst.msk [vmem:[%s305 + $0x8] sm:$0x3] %vm2618, %v2657
      %p2660 = scmp.lt.s32.totalorder %s19, 1
      %s2661 = scalar_select %p2660, %s19, 1
      %s2662 = smul.addr %s2661, 2
      %s2663 = smul.addr %s2662, 8
      %s2664 = scalar_lea.vmem %s8, %s2663
      // Predicated region
      $region53: #{maml_forward.1} parent=51 // pred_check
        %p2665 = pneg %p210
      $region54: #{maml_forward.1} parent=51 // pred_check_branch
        %2667 = sbr.rel (%p2665) target = $region56
      $region55: #{maml_forward.1} parent=51 // pred_region
        _
      $region56: #{maml_forward.1} parent=51 // pred_fallthru
        _
    $region52: #{maml_forward.1} parent=5 // pred_fallthru
      _
    %p2668 = scmp.le.s32.totalorder 2, %s14
    // Predicated region
    $region57: #{maml_forward.1} parent=5 // pred_check
      %p2669 = pneg %p2668
    $region58: #{maml_forward.1} parent=5 // pred_check_branch
      %2671 = sbr.rel (%p2669) target = $region60
    $region59: #{maml_forward.1} parent=5 // pred_region
      %s2672 = ssub.s32 %s14, 2
      // Predicated region
      $region61: #{maml_forward.1} parent=59 // pred_check
        %p2673 = pneg %p216
      $region62: #{maml_forward.1} parent=59 // pred_check_branch
        %2675 = sbr.rel (%p2673) target = $region64
      $region63: #{maml_forward.1} parent=59 // pred_region
        %p2676 = scmp.lt.s32.totalorder %s20, 1
        %s2677 = scalar_select %p2676, %s20, 1
        %s2678 = smul.addr %s2677, 2
        %s2679 = smul.addr %s2678, 8
        %s2680 = scalar_lea.vmem %s8, %s2679
      $region64: #{maml_forward.1} parent=59 // pred_fallthru
        _
    $region60: #{maml_forward.1} parent=5 // pred_fallthru
      _
  $region6: #{maml_forward.1} parent=0 // loop_footer
    %s18 = sadd.s32 1, %s14
  $region7: #{maml_forward.1} parent=0 // loop_footer_branch
    %13 = sbr.rel target = $region3
  $region8: #{maml_forward.1} parent=0 // loop_exit
    _

</llo_original>
